<compile_context>
chip_gen: v7x
topology: tpu7x:2x2x1
jax: 0.10.0
libtpu: 0.0.40
codegen_flags: <defaults>
</compile_context>

<pallas_src>
import math

import jax
import jax.numpy as jnp
from jax.experimental import pallas as pl
from jax.experimental.pallas import tpu as pltpu


# ----------------------------------------------------------------------------
# Kernel 1: input projection for both directions
#   gates_x[d] = emb_2d @ W_ih[d] + b[d]         (one big MXU matmul per direction)
# ----------------------------------------------------------------------------
def _proj_kernel(x_ref, w_ref, b_ref, o_ref):
    o_ref[0] = (jnp.dot(x_ref[...], w_ref[0],
                        preferred_element_type=jnp.float32)
                + b_ref[0])


def run_projection(emb, w_ih, b):
    """emb: (S,B,E) f32, w_ih: (2,E,4H), b: (2,1,4H)  ->  gates_x: (2,S,B,4H)."""
    S, B, E = emb.shape
    H4 = w_ih.shape[-1]
    SB = S * B
    x2d = emb.reshape(SB, E)

    R = SB if SB <= 512 else 512            # row tile (full when small)
    n_r = pl.cdiv(SB, R)

    out = pl.pallas_call(
        _proj_kernel,
        out_shape=jax.ShapeDtypeStruct((2, SB, H4), jnp.float32),
        grid_spec=pltpu.PrefetchScalarGridSpec(
            num_scalar_prefetch=0,
            grid=(2, n_r),                   # weights stay resident across row tiles
            in_specs=[
                pl.BlockSpec((R, E), lambda d, r: (r, 0)),
                pl.BlockSpec((1, E, H4), lambda d, r: (d, 0, 0)),
                pl.BlockSpec((1, 1, H4), lambda d, r: (d, 0, 0)),
            ],
            out_specs=pl.BlockSpec((1, R, H4), lambda d, r: (d, r, 0)),
        ),
        compiler_params=pltpu.CompilerParams(
            dimension_semantics=("parallel", "parallel")),
    )(x2d, w_ih, b)
    return out.reshape(2, S, B, H4)


# ----------------------------------------------------------------------------
# Kernel 2: fused bidirectional LSTM recurrence (input projection already done)
#   grid = (direction, time_block); direction is megacore-parallel.
#   Backward direction: time reversal handled entirely by index_maps + an
#   in-register reorder of the unrolled time block (no HBM reversal copies).
# ----------------------------------------------------------------------------
def _bilstm_kernel(gx_ref, whh_ref, enc_ref, hT_ref, cT_ref, h_sc, c_sc):
    d = pl.program_id(0)                    # 0 = forward, 1 = backward
    tb = pl.program_id(1)
    n_tb = pl.num_programs(1)

    T_blk = gx_ref.shape[1]
    H = h_sc.shape[-1]

    @pl.when(tb == 0)
    def _():
        h_sc[...] = jnp.zeros_like(h_sc)
        c_sc[...] = jnp.zeros_like(c_sc)

    whh = whh_ref[0]                        # (H, 4H) — resident across time blocks
    gx = gx_ref[0]                          # (T_blk, B, 4H) precomputed x-gates
    h = h_sc[...]
    c = c_sc[...]

    hs = []                                 # hidden states in processing order
    for k in range(T_blk):                  # static unroll (T_blk <= 8)
        # forward processes local step k, backward processes local step T_blk-1-k
        xk = jnp.where(d == 0, gx[k], gx[T_blk - 1 - k])        # (B, 4H)
        gates = xk + jnp.dot(h, whh, preferred_element_type=jnp.float32)
        i_g = jax.nn.sigmoid(gates[:, 0 * H:1 * H])
        f_g = jax.nn.sigmoid(gates[:, 1 * H:2 * H])
        g_g = jnp.tanh(gates[:, 2 * H:3 * H])
        o_g = jax.nn.sigmoid(gates[:, 3 * H:4 * H])
        c = f_g * c + i_g * g_g
        h = o_g * jnp.tanh(c)
        hs.append(h)

    h_sc[...] = h
    c_sc[...] = c

    # Store hidden states back in ascending local-time order (reverse for backward).
    for j in range(T_blk):
        enc_ref[j] = jnp.where(d == 0, hs[j], hs[T_blk - 1 - j])

    @pl.when(tb == n_tb - 1)
    def _():
        hT_ref[0] = h
        cT_ref[0] = c


def run_bilstm(gates_x, w_hh, t_blk_max=8):
    """gates_x: (2,S,B,4H), w_hh: (2,H,4H)
       -> encoder_states (S,B,2H), h_final (2,B,H), c_final (2,B,H)."""
    _, S, B, H4 = gates_x.shape
    H = H4 // 4
    assert H % 128 == 0, "hidden size must be a multiple of 128 (lane alignment)"

    t_blk = math.gcd(S, t_blk_max)          # time block that divides S
    n_tb = S // t_blk

    def time_block(d, t):
        # forward walks blocks 0..n_tb-1, backward walks n_tb-1..0
        return (1 - d) * t + d * (n_tb - 1 - t)

    return pl.pallas_call(
        _bilstm_kernel,
        out_shape=(
            jax.ShapeDtypeStruct((S, B, 2 * H), jnp.float32),
            jax.ShapeDtypeStruct((2, B, H), jnp.float32),
            jax.ShapeDtypeStruct((2, B, H), jnp.float32),
        ),
        grid_spec=pltpu.PrefetchScalarGridSpec(
            num_scalar_prefetch=0,
            grid=(2, n_tb),
            in_specs=[
                pl.BlockSpec((1, t_blk, B, H4),
                             lambda d, t: (d, time_block(d, t), 0, 0)),
                pl.BlockSpec((1, H, H4), lambda d, t: (d, 0, 0)),
            ],
            out_specs=[
                # write directly into the fwd/bwd halves of (S, B, 2H)
                pl.BlockSpec((t_blk, B, H),
                             lambda d, t: (time_block(d, t), 0, d)),
                pl.BlockSpec((1, B, H), lambda d, t: (d, 0, 0)),
                pl.BlockSpec((1, B, H), lambda d, t: (d, 0, 0)),
            ],
            scratch_shapes=[
                pltpu.VMEM((B, H), jnp.float32),    # h carry (per direction / per core)
                pltpu.VMEM((B, H), jnp.float32),    # c carry
            ],
        ),
        compiler_params=pltpu.CompilerParams(
            dimension_semantics=("parallel", "arbitrary")),
    )(gates_x, w_hh)


# ----------------------------------------------------------------------------
# Kernel 3: fused fc_hidden + fc_cell on stacked final states (no concats)
#   hidden = [h_f | h_b] @ Wh + bh ,   cell = [c_f | c_b] @ Wc + bc
# ----------------------------------------------------------------------------
def _fc_kernel(hT_ref, cT_ref, wh_ref, bh_ref, wc_ref, bc_ref, hid_ref, cell_ref):
    H = hT_ref.shape[-1]
    wh = wh_ref[...]
    wc = wc_ref[...]
    hid_ref[...] = (jnp.dot(hT_ref[0], wh[:H], preferred_element_type=jnp.float32)
                    + jnp.dot(hT_ref[1], wh[H:], preferred_element_type=jnp.float32)
                    + bh_ref[...])
    cell_ref[...] = (jnp.dot(cT_ref[0], wc[:H], preferred_element_type=jnp.float32)
                     + jnp.dot(cT_ref[1], wc[H:], preferred_element_type=jnp.float32)
                     + bc_ref[...])


def run_fc(hT, cT, wh, bh, wc, bc):
    _, B, H = hT.shape
    return pl.pallas_call(
        _fc_kernel,
        out_shape=(jax.ShapeDtypeStruct((B, H), jnp.float32),
                   jax.ShapeDtypeStruct((B, H), jnp.float32)),
    )(hT, cT, wh, bh, wc, bc)


# ----------------------------------------------------------------------------
# Encoder forward
# ----------------------------------------------------------------------------
@jax.jit
def encoder_forward(tokens, params):
    # Embedding lookup (XLA gather) + dropout.
    # TODO(synk): dropout is applied as identity (eval-mode semantics); training-mode RNG drop not modeled.
    emb = jnp.take(params["embedding"], tokens, axis=0)            # (S, B, E)

    # Hoisted input projection for both directions (one big matmul each).
    gates_x = run_projection(emb, params["w_ih"], params["b"])     # (2, S, B, 4H)

    # Fused bidirectional recurrence; writes encoder_states halves in place.
    encoder_states, hT, cT = run_bilstm(gates_x, params["w_hh"])

    # Fused fc_hidden / fc_cell on the stacked final states.
    hidden, cell = run_fc(hT, cT, params["fc_h_w"], params["fc_h_b"],
                          params["fc_c_w"], params["fc_c_b"])
    return encoder_states, hidden[None], cell[None]                 # (1, B, H) each


def init_params(key, vocab, emb_size, hidden):
    ks = jax.random.split(key, 8)
    scale = 1.0 / jnp.sqrt(hidden)
    u = lambda k, shape: jax.random.uniform(k, shape, jnp.float32, -scale, scale)
    return {
        "embedding": jax.random.normal(ks[0], (vocab, emb_size), jnp.float32),
        # stacked LSTM weights: index 0 = forward, 1 = backward; gate order (i, f, g, o)
        "w_ih": u(ks[1], (2, emb_size, 4 * hidden)),
        "w_hh": u(ks[2], (2, hidden, 4 * hidden)),
        "b":    u(ks[3], (2, 1, 4 * hidden)),        # b_ih + b_hh folded
        # fc_hidden / fc_cell  (stored (in=2H, out=H))
        "fc_h_w": u(ks[4], (2 * hidden, hidden)),
        "fc_h_b": u(ks[5], (1, hidden)),
        "fc_c_w": u(ks[6], (2 * hidden, hidden)),
        "fc_c_b": u(ks[7], (1, hidden)),
    }


if __name__ == "__main__":
    SEQ, BATCH = 8, 2
    VOCAB, EMB, HIDDEN = 50, 128, 128        # H multiple of 128 (spec uses 1024)

    key = jax.random.PRNGKey(0)
    k_tok, k_par = jax.random.split(key)
    tokens = jax.random.randint(k_tok, (SEQ, BATCH), 0, VOCAB, dtype=jnp.int32)
    params = init_params(k_par, VOCAB, EMB, HIDDEN)

    encoder_states, hidden, cell = encoder_forward(tokens, params)
    jax.block_until_ready((encoder_states, hidden, cell))

    assert encoder_states.shape == (SEQ, BATCH, 2 * HIDDEN)
    assert hidden.shape == (1, BATCH, HIDDEN)
    assert cell.shape == (1, BATCH, HIDDEN)
    print("KERNEL_OK")
</pallas_src>

<mosaic_0001>
module attributes {stable_mosaic.version = 11 : i64} {
  func.func @_fc_kernel(%arg0: memref<2x2x128xf32, #tpu.memory_space<vmem>>, %arg1: memref<2x2x128xf32, #tpu.memory_space<vmem>>, %arg2: memref<256x128xf32, #tpu.memory_space<vmem>>, %arg3: memref<1x128xf32, #tpu.memory_space<vmem>>, %arg4: memref<256x128xf32, #tpu.memory_space<vmem>>, %arg5: memref<1x128xf32, #tpu.memory_space<vmem>>, %arg6: memref<2x128xf32, #tpu.memory_space<vmem>>, %arg7: memref<2x128xf32, #tpu.memory_space<vmem>>) attributes {dimension_semantics = [], scalar_prefetch = 0 : i64, scratch_operands = 0 : i64, tpu.core_type = #tpu.core_type<tc>} {
    %c0 = arith.constant 0 : index
    %c0_0 = arith.constant 0 : index
    %0 = vector.load %arg2[%c0, %c0_0] : memref<256x128xf32, #tpu.memory_space<vmem>>, vector<256x128xf32>
    %c0_1 = arith.constant 0 : index
    %c0_2 = arith.constant 0 : index
    %1 = vector.load %arg4[%c0_1, %c0_2] : memref<256x128xf32, #tpu.memory_space<vmem>>, vector<256x128xf32>
    %c0_3 = arith.constant 0 : index
    %c0_4 = arith.constant 0 : index
    %c0_5 = arith.constant 0 : index
    %2 = vector.load %arg0[%c0_3, %c0_4, %c0_5] : memref<2x2x128xf32, #tpu.memory_space<vmem>>, vector<1x2x128xf32>
    %3 = vector.shape_cast %2 : vector<1x2x128xf32> to vector<2x128xf32>
    %4 = vector.extract_strided_slice %0 {offsets = [0, 0], sizes = [128, 128], strides = [1, 1]} : vector<256x128xf32> to vector<128x128xf32>
    %cst = arith.constant dense<0.000000e+00> : vector<2x128xf32>
    %5 = tpu.matmul %3, %4, %cst {dimension_numbers = #tpu.dot_dimension_numbers<[1], [0], [0], [1], [0, 0, 1, 1], [], []>} : vector<2x128xf32>, vector<128x128xf32>, vector<2x128xf32> -> vector<2x128xf32>
    %c1 = arith.constant 1 : index
    %c0_6 = arith.constant 0 : index
    %c0_7 = arith.constant 0 : index
    %6 = vector.load %arg0[%c1, %c0_6, %c0_7] : memref<2x2x128xf32, #tpu.memory_space<vmem>>, vector<1x2x128xf32>
    %7 = vector.shape_cast %6 : vector<1x2x128xf32> to vector<2x128xf32>
    %8 = vector.extract_strided_slice %0 {offsets = [128, 0], sizes = [128, 128], strides = [1, 1]} : vector<256x128xf32> to vector<128x128xf32>
    %cst_8 = arith.constant dense<0.000000e+00> : vector<2x128xf32>
    %9 = tpu.matmul %7, %8, %cst_8 {dimension_numbers = #tpu.dot_dimension_numbers<[1], [0], [0], [1], [0, 0, 1, 1], [], []>} : vector<2x128xf32>, vector<128x128xf32>, vector<2x128xf32> -> vector<2x128xf32>
    %10 = arith.addf %5, %9 : vector<2x128xf32>
    %c0_9 = arith.constant 0 : index
    %c0_10 = arith.constant 0 : index
    %11 = vector.load %arg3[%c0_9, %c0_10] : memref<1x128xf32, #tpu.memory_space<vmem>>, vector<1x128xf32>
    %12 = vector.broadcast %11 : vector<1x128xf32> to vector<2x128xf32>
    %13 = arith.addf %10, %12 : vector<2x128xf32>
    %c0_11 = arith.constant 0 : index
    %c0_12 = arith.constant 0 : index
    %14 = vector.load %arg6[%c0_11, %c0_12] : memref<2x128xf32, #tpu.memory_space<vmem>>, vector<2x128xf32>
    tpu.vector_store %arg6[%c0_11, %c0_12], %13 {strides = array<i32>} : memref<2x128xf32, #tpu.memory_space<vmem>>, vector<2x128xf32>,
    %c0_13 = arith.constant 0 : index
    %c0_14 = arith.constant 0 : index
    %c0_15 = arith.constant 0 : index
    %15 = vector.load %arg1[%c0_13, %c0_14, %c0_15] : memref<2x2x128xf32, #tpu.memory_space<vmem>>, vector<1x2x128xf32>
    %16 = vector.shape_cast %15 : vector<1x2x128xf32> to vector<2x128xf32>
    %17 = vector.extract_strided_slice %1 {offsets = [0, 0], sizes = [128, 128], strides = [1, 1]} : vector<256x128xf32> to vector<128x128xf32>
    %cst_16 = arith.constant dense<0.000000e+00> : vector<2x128xf32>
    %18 = tpu.matmul %16, %17, %cst_16 {dimension_numbers = #tpu.dot_dimension_numbers<[1], [0], [0], [1], [0, 0, 1, 1], [], []>} : vector<2x128xf32>, vector<128x128xf32>, vector<2x128xf32> -> vector<2x128xf32>
    %c1_17 = arith.constant 1 : index
    %c0_18 = arith.constant 0 : index
    %c0_19 = arith.constant 0 : index
    %19 = vector.load %arg1[%c1_17, %c0_18, %c0_19] : memref<2x2x128xf32, #tpu.memory_space<vmem>>, vector<1x2x128xf32>
    %20 = vector.shape_cast %19 : vector<1x2x128xf32> to vector<2x128xf32>
    %21 = vector.extract_strided_slice %1 {offsets = [128, 0], sizes = [128, 128], strides = [1, 1]} : vector<256x128xf32> to vector<128x128xf32>
    %cst_20 = arith.constant dense<0.000000e+00> : vector<2x128xf32>
    %22 = tpu.matmul %20, %21, %cst_20 {dimension_numbers = #tpu.dot_dimension_numbers<[1], [0], [0], [1], [0, 0, 1, 1], [], []>} : vector<2x128xf32>, vector<128x128xf32>, vector<2x128xf32> -> vector<2x128xf32>
    %23 = arith.addf %18, %22 : vector<2x128xf32>
    %c0_21 = arith.constant 0 : index
    %c0_22 = arith.constant 0 : index
    %24 = vector.load %arg5[%c0_21, %c0_22] : memref<1x128xf32, #tpu.memory_space<vmem>>, vector<1x128xf32>
    %25 = vector.broadcast %24 : vector<1x128xf32> to vector<2x128xf32>
    %26 = arith.addf %23, %25 : vector<2x128xf32>
    %c0_23 = arith.constant 0 : index
    %c0_24 = arith.constant 0 : index
    %27 = vector.load %arg7[%c0_23, %c0_24] : memref<2x128xf32, #tpu.memory_space<vmem>>, vector<2x128xf32>
    tpu.vector_store %arg7[%c0_23, %c0_24], %26 {strides = array<i32>} : memref<2x128xf32, #tpu.memory_space<vmem>>, vector<2x128xf32>,
    return
  }
}

module attributes {stable_mosaic.version = 11 : i64} {
  func.func @_proj_kernel(%arg0: i32, %arg1: i32, %arg2: memref<16x128xf32, #tpu.memory_space<vmem>>, %arg3: memref<1x128x512xf32, #tpu.memory_space<vmem>>, %arg4: memref<1x1x512xf32, #tpu.memory_space<vmem>>, %arg5: memref<1x16x512xf32, #tpu.memory_space<vmem>>) attributes {dimension_semantics = [#tpu.dimension_semantics<parallel>, #tpu.dimension_semantics<parallel>], iteration_bounds = array<i64: 2, 1>, scalar_prefetch = 0 : i64, scratch_operands = 0 : i64, tpu.core_type = #tpu.core_type<tc>, window_params = [{transform_indices = @transform_0, window_bounds = array<i64: 16, 128>}, {transform_indices = @transform_1, window_bounds = array<i64: 1, 128, 512>}, {transform_indices = @transform_2, window_bounds = array<i64: 1, 1, 512>}, {transform_indices = @transform_3, window_bounds = array<i64: 1, 16, 512>}]} {
    %c0 = arith.constant 0 : index
    %c0_0 = arith.constant 0 : index
    %0 = vector.load %arg2[%c0, %c0_0] : memref<16x128xf32, #tpu.memory_space<vmem>>, vector<16x128xf32>
    %c0_1 = arith.constant 0 : index
    %c0_2 = arith.constant 0 : index
    %c0_3 = arith.constant 0 : index
    %1 = vector.load %arg3[%c0_1, %c0_2, %c0_3] : memref<1x128x512xf32, #tpu.memory_space<vmem>>, vector<1x128x512xf32>
    %2 = vector.shape_cast %1 : vector<1x128x512xf32> to vector<128x512xf32>
    %cst = arith.constant dense<0.000000e+00> : vector<16x512xf32>
    %3 = tpu.matmul %0, %2, %cst {dimension_numbers = #tpu.dot_dimension_numbers<[1], [0], [0], [1], [0, 0, 1, 1], [], []>} : vector<16x128xf32>, vector<128x512xf32>, vector<16x512xf32> -> vector<16x512xf32>
    %c0_4 = arith.constant 0 : index
    %c0_5 = arith.constant 0 : index
    %c0_6 = arith.constant 0 : index
    %4 = vector.load %arg4[%c0_4, %c0_5, %c0_6] : memref<1x1x512xf32, #tpu.memory_space<vmem>>, vector<1x1x512xf32>
    %5 = vector.shape_cast %4 : vector<1x1x512xf32> to vector<1x512xf32>
    %6 = vector.broadcast %5 : vector<1x512xf32> to vector<16x512xf32>
    %7 = arith.addf %3, %6 : vector<16x512xf32>
    %c0_7 = arith.constant 0 : index
    %c0_8 = arith.constant 0 : index
    %c0_9 = arith.constant 0 : index
    %8 = vector.load %arg5[%c0_7, %c0_8, %c0_9] : memref<1x16x512xf32, #tpu.memory_space<vmem>>, vector<1x16x512xf32>
    %9 = vector.shape_cast %8 : vector<1x16x512xf32> to vector<16x512xf32>
    %10 = vector.shape_cast %7 : vector<16x512xf32> to vector<1x16x512xf32>
    tpu.vector_store %arg5[%c0_7, %c0_8, %c0_9], %10 {strides = array<i32>} : memref<1x16x512xf32, #tpu.memory_space<vmem>>, vector<1x16x512xf32>,
    return
  }
  func.func @transform_0(%arg0: i32, %arg1: i32) -> (i32, i32) {
    %c0_i32 = arith.constant 0 : i32
    %c0_i32_0 = arith.constant 0 : i32
    return %arg1, %c0_i32 : i32, i32
  }
  func.func @transform_1(%arg0: i32, %arg1: i32) -> (i32, i32, i32) {
    %c0_i32 = arith.constant 0 : i32
    %c0_i32_0 = arith.constant 0 : i32
    %c0_i32_1 = arith.constant 0 : i32
    return %arg0, %c0_i32, %c0_i32_0 : i32, i32, i32
  }
  func.func @transform_2(%arg0: i32, %arg1: i32) -> (i32, i32, i32) {
    %c0_i32 = arith.constant 0 : i32
    %c0_i32_0 = arith.constant 0 : i32
    %c0_i32_1 = arith.constant 0 : i32
    return %arg0, %c0_i32, %c0_i32_0 : i32, i32, i32
  }
  func.func @transform_3(%arg0: i32, %arg1: i32) -> (i32, i32, i32) {
    %c0_i32 = arith.constant 0 : i32
    %c0_i32_0 = arith.constant 0 : i32
    return %arg0, %arg1, %c0_i32 : i32, i32, i32
  }
}

module attributes {stable_mosaic.version = 11 : i64} {
  func.func @_bilstm_kernel(%arg0: i32, %arg1: i32, %arg2: memref<1x8x2x512xf32, #tpu.memory_space<vmem>>, %arg3: memref<1x128x512xf32, #tpu.memory_space<vmem>>, %arg4: memref<8x2x128xf32, #tpu.memory_space<vmem>>, %arg5: memref<1x2x128xf32, #tpu.memory_space<vmem>>, %arg6: memref<1x2x128xf32, #tpu.memory_space<vmem>>, %arg7: memref<2x128xf32, #tpu.memory_space<vmem>>, %arg8: memref<2x128xf32, #tpu.memory_space<vmem>>) attributes {dimension_semantics = [#tpu.dimension_semantics<parallel>, #tpu.dimension_semantics<arbitrary>], iteration_bounds = array<i64: 2, 1>, scalar_prefetch = 0 : i64, scratch_operands = 2 : i64, tpu.core_type = #tpu.core_type<tc>, window_params = [{transform_indices = @transform_0, window_bounds = array<i64: 1, 8, 2, 512>}, {transform_indices = @transform_1, window_bounds = array<i64: 1, 128, 512>}, {transform_indices = @transform_2, window_bounds = array<i64: 8, 2, 128>}, {transform_indices = @transform_3, window_bounds = array<i64: 1, 2, 128>}, {transform_indices = @transform_4, window_bounds = array<i64: 1, 2, 128>}]} {
    %c0_i32 = arith.constant 0 : i32
    %0 = arith.cmpi eq, %arg1, %c0_i32 : i32
    %1 = arith.extui %0 : i1 to i32
    %c0_i32_0 = arith.constant 0 : i32
    %2 = arith.cmpi ne, %1, %c0_i32_0 : i32
    scf.if %2 {
      %cst_81 = arith.constant 0.000000e+00 : f32
      %318 = vector.broadcast %cst_81 : f32 to vector<2x128xf32>
      %c0_82 = arith.constant 0 : index
      %c0_83 = arith.constant 0 : index
      %319 = vector.load %arg7[%c0_82, %c0_83] : memref<2x128xf32, #tpu.memory_space<vmem>>, vector<2x128xf32>
      tpu.vector_store %arg7[%c0_82, %c0_83], %318 {strides = array<i32>} : memref<2x128xf32, #tpu.memory_space<vmem>>, vector<2x128xf32>,
      %cst_84 = arith.constant 0.000000e+00 : f32
      %320 = vector.broadcast %cst_84 : f32 to vector<2x128xf32>
      %c0_85 = arith.constant 0 : index
      %c0_86 = arith.constant 0 : index
      %321 = vector.load %arg8[%c0_85, %c0_86] : memref<2x128xf32, #tpu.memory_space<vmem>>, vector<2x128xf32>
      tpu.vector_store %arg8[%c0_85, %c0_86], %320 {strides = array<i32>} : memref<2x128xf32, #tpu.memory_space<vmem>>, vector<2x128xf32>,
    } else {
    }
    %c0 = arith.constant 0 : index
    %c0_1 = arith.constant 0 : index
    %c0_2 = arith.constant 0 : index
    %3 = vector.load %arg3[%c0, %c0_1, %c0_2] : memref<1x128x512xf32, #tpu.memory_space<vmem>>, vector<1x128x512xf32>
    %4 = vector.shape_cast %3 : vector<1x128x512xf32> to vector<128x512xf32>
    %c0_3 = arith.constant 0 : index
    %c0_4 = arith.constant 0 : index
    %c0_5 = arith.constant 0 : index
    %c0_6 = arith.constant 0 : index
    %5 = vector.load %arg2[%c0_3, %c0_4, %c0_5, %c0_6] : memref<1x8x2x512xf32, #tpu.memory_space<vmem>>, vector<1x8x2x512xf32>
    %6 = vector.shape_cast %5 : vector<1x8x2x512xf32> to vector<8x2x512xf32>
    %c0_7 = arith.constant 0 : index
    %c0_8 = arith.constant 0 : index
    %7 = vector.load %arg7[%c0_7, %c0_8] : memref<2x128xf32, #tpu.memory_space<vmem>>, vector<2x128xf32>
    %c0_9 = arith.constant 0 : index
    %c0_10 = arith.constant 0 : index
    %8 = vector.load %arg8[%c0_9, %c0_10] : memref<2x128xf32, #tpu.memory_space<vmem>>, vector<2x128xf32>
    %c0_i32_11 = arith.constant 0 : i32
    %9 = arith.cmpi eq, %arg0, %c0_i32_11 : i32
    %10 = vector.extract_strided_slice %6 {offsets = [0, 0, 0], sizes = [1, 2, 512], strides = [1, 1, 1]} : vector<8x2x512xf32> to vector<1x2x512xf32>
    %11 = vector.shape_cast %10 : vector<1x2x512xf32> to vector<2x512xf32>
    %12 = vector.extract_strided_slice %6 {offsets = [7, 0, 0], sizes = [1, 2, 512], strides = [1, 1, 1]} : vector<8x2x512xf32> to vector<1x2x512xf32>
    %13 = vector.shape_cast %12 : vector<1x2x512xf32> to vector<2x512xf32>
    %14 = arith.select %9, %11, %13 : vector<2x512xf32>
    %cst = arith.constant dense<0.000000e+00> : vector<2x512xf32>
    %15 = tpu.matmul %7, %4, %cst {dimension_numbers = #tpu.dot_dimension_numbers<[1], [0], [0], [1], [0, 0, 1, 1], [], []>} : vector<2x128xf32>, vector<128x512xf32>, vector<2x512xf32> -> vector<2x512xf32>
    %16 = arith.addf %14, %15 : vector<2x512xf32>
    %17 = vector.extract_strided_slice %16 {offsets = [0, 0], sizes = [2, 128], strides = [1, 1]} : vector<2x512xf32> to vector<2x128xf32>
    %18 = arith.negf %17 : vector<2x128xf32>
    %19 = math.exp %18 : vector<2x128xf32>
    %cst_12 = arith.constant 1.000000e+00 : f32
    %20 = vector.broadcast %cst_12 : f32 to vector<2x128xf32>
    %21 = arith.addf %20, %19 : vector<2x128xf32>
    %22 = arith.divf %20, %21 : vector<2x128xf32>
    %23 = vector.extract_strided_slice %16 {offsets = [0, 128], sizes = [2, 128], strides = [1, 1]} : vector<2x512xf32> to vector<2x128xf32>
    %24 = arith.negf %23 : vector<2x128xf32>
    %25 = math.exp %24 : vector<2x128xf32>
    %cst_13 = arith.constant 1.000000e+00 : f32
    %26 = vector.broadcast %cst_13 : f32 to vector<2x128xf32>
    %27 = arith.addf %26, %25 : vector<2x128xf32>
    %28 = arith.divf %26, %27 : vector<2x128xf32>
    %29 = vector.extract_strided_slice %16 {offsets = [0, 256], sizes = [2, 128], strides = [1, 1]} : vector<2x512xf32> to vector<2x128xf32>
    %30 = math.tanh %29 : vector<2x128xf32>
    %31 = vector.extract_strided_slice %16 {offsets = [0, 384], sizes = [2, 128], strides = [1, 1]} : vector<2x512xf32> to vector<2x128xf32>
    %32 = arith.negf %31 : vector<2x128xf32>
    %33 = math.exp %32 : vector<2x128xf32>
    %cst_14 = arith.constant 1.000000e+00 : f32
    %34 = vector.broadcast %cst_14 : f32 to vector<2x128xf32>
    %35 = arith.addf %34, %33 : vector<2x128xf32>
    %36 = arith.divf %34, %35 : vector<2x128xf32>
    %37 = arith.mulf %28, %8 : vector<2x128xf32>
    %38 = arith.mulf %22, %30 : vector<2x128xf32>
    %39 = arith.addf %37, %38 : vector<2x128xf32>
    %40 = math.tanh %39 : vector<2x128xf32>
    %41 = arith.mulf %36, %40 : vector<2x128xf32>
    %c0_i32_15 = arith.constant 0 : i32
    %42 = arith.cmpi eq, %arg0, %c0_i32_15 : i32
    %43 = vector.extract_strided_slice %6 {offsets = [1, 0, 0], sizes = [1, 2, 512], strides = [1, 1, 1]} : vector<8x2x512xf32> to vector<1x2x512xf32>
    %44 = vector.shape_cast %43 : vector<1x2x512xf32> to vector<2x512xf32>
    %45 = vector.extract_strided_slice %6 {offsets = [6, 0, 0], sizes = [1, 2, 512], strides = [1, 1, 1]} : vector<8x2x512xf32> to vector<1x2x512xf32>
    %46 = vector.shape_cast %45 : vector<1x2x512xf32> to vector<2x512xf32>
    %47 = arith.select %42, %44, %46 : vector<2x512xf32>
    %cst_16 = arith.constant dense<0.000000e+00> : vector<2x512xf32>
    %48 = tpu.matmul %41, %4, %cst_16 {dimension_numbers = #tpu.dot_dimension_numbers<[1], [0], [0], [1], [0, 0, 1, 1], [], []>} : vector<2x128xf32>, vector<128x512xf32>, vector<2x512xf32> -> vector<2x512xf32>
    %49 = arith.addf %47, %48 : vector<2x512xf32>
    %50 = vector.extract_strided_slice %49 {offsets = [0, 0], sizes = [2, 128], strides = [1, 1]} : vector<2x512xf32> to vector<2x128xf32>
    %51 = arith.negf %50 : vector<2x128xf32>
    %52 = math.exp %51 : vector<2x128xf32>
    %cst_17 = arith.constant 1.000000e+00 : f32
    %53 = vector.broadcast %cst_17 : f32 to vector<2x128xf32>
    %54 = arith.addf %53, %52 : vector<2x128xf32>
    %55 = arith.divf %53, %54 : vector<2x128xf32>
    %56 = vector.extract_strided_slice %49 {offsets = [0, 128], sizes = [2, 128], strides = [1, 1]} : vector<2x512xf32> to vector<2x128xf32>
    %57 = arith.negf %56 : vector<2x128xf32>
    %58 = math.exp %57 : vector<2x128xf32>
    %cst_18 = arith.constant 1.000000e+00 : f32
    %59 = vector.broadcast %cst_18 : f32 to vector<2x128xf32>
    %60 = arith.addf %59, %58 : vector<2x128xf32>
    %61 = arith.divf %59, %60 : vector<2x128xf32>
    %62 = vector.extract_strided_slice %49 {offsets = [0, 256], sizes = [2, 128], strides = [1, 1]} : vector<2x512xf32> to vector<2x128xf32>
    %63 = math.tanh %62 : vector<2x128xf32>
    %64 = vector.extract_strided_slice %49 {offsets = [0, 384], sizes = [2, 128], strides = [1, 1]} : vector<2x512xf32> to vector<2x128xf32>
    %65 = arith.negf %64 : vector<2x128xf32>
    %66 = math.exp %65 : vector<2x128xf32>
    %cst_19 = arith.constant 1.000000e+00 : f32
    %67 = vector.broadcast %cst_19 : f32 to vector<2x128xf32>
    %68 = arith.addf %67, %66 : vector<2x128xf32>
    %69 = arith.divf %67, %68 : vector<2x128xf32>
    %70 = arith.mulf %61, %39 : vector<2x128xf32>
    %71 = arith.mulf %55, %63 : vector<2x128xf32>
    %72 = arith.addf %70, %71 : vector<2x128xf32>
    %73 = math.tanh %72 : vector<2x128xf32>
    %74 = arith.mulf %69, %73 : vector<2x128xf32>
    %c0_i32_20 = arith.constant 0 : i32
    %75 = arith.cmpi eq, %arg0, %c0_i32_20 : i32
    %76 = vector.extract_strided_slice %6 {offsets = [2, 0, 0], sizes = [1, 2, 512], strides = [1, 1, 1]} : vector<8x2x512xf32> to vector<1x2x512xf32>
    %77 = vector.shape_cast %76 : vector<1x2x512xf32> to vector<2x512xf32>
    %78 = vector.extract_strided_slice %6 {offsets = [5, 0, 0], sizes = [1, 2, 512], strides = [1, 1, 1]} : vector<8x2x512xf32> to vector<1x2x512xf32>
    %79 = vector.shape_cast %78 : vector<1x2x512xf32> to vector<2x512xf32>
    %80 = arith.select %75, %77, %79 : vector<2x512xf32>
    %cst_21 = arith.constant dense<0.000000e+00> : vector<2x512xf32>
    %81 = tpu.matmul %74, %4, %cst_21 {dimension_numbers = #tpu.dot_dimension_numbers<[1], [0], [0], [1], [0, 0, 1, 1], [], []>} : vector<2x128xf32>, vector<128x512xf32>, vector<2x512xf32> -> vector<2x512xf32>
    %82 = arith.addf %80, %81 : vector<2x512xf32>
    %83 = vector.extract_strided_slice %82 {offsets = [0, 0], sizes = [2, 128], strides = [1, 1]} : vector<2x512xf32> to vector<2x128xf32>
    %84 = arith.negf %83 : vector<2x128xf32>
    %85 = math.exp %84 : vector<2x128xf32>
    %cst_22 = arith.constant 1.000000e+00 : f32
    %86 = vector.broadcast %cst_22 : f32 to vector<2x128xf32>
    %87 = arith.addf %86, %85 : vector<2x128xf32>
    %88 = arith.divf %86, %87 : vector<2x128xf32>
    %89 = vector.extract_strided_slice %82 {offsets = [0, 128], sizes = [2, 128], strides = [1, 1]} : vector<2x512xf32> to vector<2x128xf32>
    %90 = arith.negf %89 : vector<2x128xf32>
    %91 = math.exp %90 : vector<2x128xf32>
    %cst_23 = arith.constant 1.000000e+00 : f32
    %92 = vector.broadcast %cst_23 : f32 to vector<2x128xf32>
    %93 = arith.addf %92, %91 : vector<2x128xf32>
    %94 = arith.divf %92, %93 : vector<2x128xf32>
    %95 = vector.extract_strided_slice %82 {offsets = [0, 256], sizes = [2, 128], strides = [1, 1]} : vector<2x512xf32> to vector<2x128xf32>
    %96 = math.tanh %95 : vector<2x128xf32>
    %97 = vector.extract_strided_slice %82 {offsets = [0, 384], sizes = [2, 128], strides = [1, 1]} : vector<2x512xf32> to vector<2x128xf32>
    %98 = arith.negf %97 : vector<2x128xf32>
    %99 = math.exp %98 : vector<2x128xf32>
    %cst_24 = arith.constant 1.000000e+00 : f32
    %100 = vector.broadcast %cst_24 : f32 to vector<2x128xf32>
    %101 = arith.addf %100, %99 : vector<2x128xf32>
    %102 = arith.divf %100, %101 : vector<2x128xf32>
    %103 = arith.mulf %94, %72 : vector<2x128xf32>
    %104 = arith.mulf %88, %96 : vector<2x128xf32>
    %105 = arith.addf %103, %104 : vector<2x128xf32>
    %106 = math.tanh %105 : vector<2x128xf32>
    %107 = arith.mulf %102, %106 : vector<2x128xf32>
    %c0_i32_25 = arith.constant 0 : i32
    %108 = arith.cmpi eq, %arg0, %c0_i32_25 : i32
    %109 = vector.extract_strided_slice %6 {offsets = [3, 0, 0], sizes = [1, 2, 512], strides = [1, 1, 1]} : vector<8x2x512xf32> to vector<1x2x512xf32>
    %110 = vector.shape_cast %109 : vector<1x2x512xf32> to vector<2x512xf32>
    %111 = vector.extract_strided_slice %6 {offsets = [4, 0, 0], sizes = [1, 2, 512], strides = [1, 1, 1]} : vector<8x2x512xf32> to vector<1x2x512xf32>
    %112 = vector.shape_cast %111 : vector<1x2x512xf32> to vector<2x512xf32>
    %113 = arith.select %108, %110, %112 : vector<2x512xf32>
    %cst_26 = arith.constant dense<0.000000e+00> : vector<2x512xf32>
    %114 = tpu.matmul %107, %4, %cst_26 {dimension_numbers = #tpu.dot_dimension_numbers<[1], [0], [0], [1], [0, 0, 1, 1], [], []>} : vector<2x128xf32>, vector<128x512xf32>, vector<2x512xf32> -> vector<2x512xf32>
    %115 = arith.addf %113, %114 : vector<2x512xf32>
    %116 = vector.extract_strided_slice %115 {offsets = [0, 0], sizes = [2, 128], strides = [1, 1]} : vector<2x512xf32> to vector<2x128xf32>
    %117 = arith.negf %116 : vector<2x128xf32>
    %118 = math.exp %117 : vector<2x128xf32>
    %cst_27 = arith.constant 1.000000e+00 : f32
    %119 = vector.broadcast %cst_27 : f32 to vector<2x128xf32>
    %120 = arith.addf %119, %118 : vector<2x128xf32>
    %121 = arith.divf %119, %120 : vector<2x128xf32>
    %122 = vector.extract_strided_slice %115 {offsets = [0, 128], sizes = [2, 128], strides = [1, 1]} : vector<2x512xf32> to vector<2x128xf32>
    %123 = arith.negf %122 : vector<2x128xf32>
    %124 = math.exp %123 : vector<2x128xf32>
    %cst_28 = arith.constant 1.000000e+00 : f32
    %125 = vector.broadcast %cst_28 : f32 to vector<2x128xf32>
    %126 = arith.addf %125, %124 : vector<2x128xf32>
    %127 = arith.divf %125, %126 : vector<2x128xf32>
    %128 = vector.extract_strided_slice %115 {offsets = [0, 256], sizes = [2, 128], strides = [1, 1]} : vector<2x512xf32> to vector<2x128xf32>
    %129 = math.tanh %128 : vector<2x128xf32>
    %130 = vector.extract_strided_slice %115 {offsets = [0, 384], sizes = [2, 128], strides = [1, 1]} : vector<2x512xf32> to vector<2x128xf32>
    %131 = arith.negf %130 : vector<2x128xf32>
    %132 = math.exp %131 : vector<2x128xf32>
    %cst_29 = arith.constant 1.000000e+00 : f32
    %133 = vector.broadcast %cst_29 : f32 to vector<2x128xf32>
    %134 = arith.addf %133, %132 : vector<2x128xf32>
    %135 = arith.divf %133, %134 : vector<2x128xf32>
    %136 = arith.mulf %127, %105 : vector<2x128xf32>
    %137 = arith.mulf %121, %129 : vector<2x128xf32>
    %138 = arith.addf %136, %137 : vector<2x128xf32>
    %139 = math.tanh %138 : vector<2x128xf32>
    %140 = arith.mulf %135, %139 : vector<2x128xf32>
    %c0_i32_30 = arith.constant 0 : i32
    %141 = arith.cmpi eq, %arg0, %c0_i32_30 : i32
    %142 = vector.extract_strided_slice %6 {offsets = [4, 0, 0], sizes = [1, 2, 512], strides = [1, 1, 1]} : vector<8x2x512xf32> to vector<1x2x512xf32>
    %143 = vector.shape_cast %142 : vector<1x2x512xf32> to vector<2x512xf32>
    %144 = vector.extract_strided_slice %6 {offsets = [3, 0, 0], sizes = [1, 2, 512], strides = [1, 1, 1]} : vector<8x2x512xf32> to vector<1x2x512xf32>
    %145 = vector.shape_cast %144 : vector<1x2x512xf32> to vector<2x512xf32>
    %146 = arith.select %141, %143, %145 : vector<2x512xf32>
    %cst_31 = arith.constant dense<0.000000e+00> : vector<2x512xf32>
    %147 = tpu.matmul %140, %4, %cst_31 {dimension_numbers = #tpu.dot_dimension_numbers<[1], [0], [0], [1], [0, 0, 1, 1], [], []>} : vector<2x128xf32>, vector<128x512xf32>, vector<2x512xf32> -> vector<2x512xf32>
    %148 = arith.addf %146, %147 : vector<2x512xf32>
    %149 = vector.extract_strided_slice %148 {offsets = [0, 0], sizes = [2, 128], strides = [1, 1]} : vector<2x512xf32> to vector<2x128xf32>
    %150 = arith.negf %149 : vector<2x128xf32>
    %151 = math.exp %150 : vector<2x128xf32>
    %cst_32 = arith.constant 1.000000e+00 : f32
    %152 = vector.broadcast %cst_32 : f32 to vector<2x128xf32>
    %153 = arith.addf %152, %151 : vector<2x128xf32>
    %154 = arith.divf %152, %153 : vector<2x128xf32>
    %155 = vector.extract_strided_slice %148 {offsets = [0, 128], sizes = [2, 128], strides = [1, 1]} : vector<2x512xf32> to vector<2x128xf32>
    %156 = arith.negf %155 : vector<2x128xf32>
    %157 = math.exp %156 : vector<2x128xf32>
    %cst_33 = arith.constant 1.000000e+00 : f32
    %158 = vector.broadcast %cst_33 : f32 to vector<2x128xf32>
    %159 = arith.addf %158, %157 : vector<2x128xf32>
    %160 = arith.divf %158, %159 : vector<2x128xf32>
    %161 = vector.extract_strided_slice %148 {offsets = [0, 256], sizes = [2, 128], strides = [1, 1]} : vector<2x512xf32> to vector<2x128xf32>
    %162 = math.tanh %161 : vector<2x128xf32>
    %163 = vector.extract_strided_slice %148 {offsets = [0, 384], sizes = [2, 128], strides = [1, 1]} : vector<2x512xf32> to vector<2x128xf32>
    %164 = arith.negf %163 : vector<2x128xf32>
    %165 = math.exp %164 : vector<2x128xf32>
    %cst_34 = arith.constant 1.000000e+00 : f32
    %166 = vector.broadcast %cst_34 : f32 to vector<2x128xf32>
    %167 = arith.addf %166, %165 : vector<2x128xf32>
    %168 = arith.divf %166, %167 : vector<2x128xf32>
    %169 = arith.mulf %160, %138 : vector<2x128xf32>
    %170 = arith.mulf %154, %162 : vector<2x128xf32>
    %171 = arith.addf %169, %170 : vector<2x128xf32>
    %172 = math.tanh %171 : vector<2x128xf32>
    %173 = arith.mulf %168, %172 : vector<2x128xf32>
    %c0_i32_35 = arith.constant 0 : i32
    %174 = arith.cmpi eq, %arg0, %c0_i32_35 : i32
    %175 = vector.extract_strided_slice %6 {offsets = [5, 0, 0], sizes = [1, 2, 512], strides = [1, 1, 1]} : vector<8x2x512xf32> to vector<1x2x512xf32>
    %176 = vector.shape_cast %175 : vector<1x2x512xf32> to vector<2x512xf32>
    %177 = vector.extract_strided_slice %6 {offsets = [2, 0, 0], sizes = [1, 2, 512], strides = [1, 1, 1]} : vector<8x2x512xf32> to vector<1x2x512xf32>
    %178 = vector.shape_cast %177 : vector<1x2x512xf32> to vector<2x512xf32>
    %179 = arith.select %174, %176, %178 : vector<2x512xf32>
    %cst_36 = arith.constant dense<0.000000e+00> : vector<2x512xf32>
    %180 = tpu.matmul %173, %4, %cst_36 {dimension_numbers = #tpu.dot_dimension_numbers<[1], [0], [0], [1], [0, 0, 1, 1], [], []>} : vector<2x128xf32>, vector<128x512xf32>, vector<2x512xf32> -> vector<2x512xf32>
    %181 = arith.addf %179, %180 : vector<2x512xf32>
    %182 = vector.extract_strided_slice %181 {offsets = [0, 0], sizes = [2, 128], strides = [1, 1]} : vector<2x512xf32> to vector<2x128xf32>
    %183 = arith.negf %182 : vector<2x128xf32>
    %184 = math.exp %183 : vector<2x128xf32>
    %cst_37 = arith.constant 1.000000e+00 : f32
    %185 = vector.broadcast %cst_37 : f32 to vector<2x128xf32>
    %186 = arith.addf %185, %184 : vector<2x128xf32>
    %187 = arith.divf %185, %186 : vector<2x128xf32>
    %188 = vector.extract_strided_slice %181 {offsets = [0, 128], sizes = [2, 128], strides = [1, 1]} : vector<2x512xf32> to vector<2x128xf32>
    %189 = arith.negf %188 : vector<2x128xf32>
    %190 = math.exp %189 : vector<2x128xf32>
    %cst_38 = arith.constant 1.000000e+00 : f32
    %191 = vector.broadcast %cst_38 : f32 to vector<2x128xf32>
    %192 = arith.addf %191, %190 : vector<2x128xf32>
    %193 = arith.divf %191, %192 : vector<2x128xf32>
    %194 = vector.extract_strided_slice %181 {offsets = [0, 256], sizes = [2, 128], strides = [1, 1]} : vector<2x512xf32> to vector<2x128xf32>
    %195 = math.tanh %194 : vector<2x128xf32>
    %196 = vector.extract_strided_slice %181 {offsets = [0, 384], sizes = [2, 128], strides = [1, 1]} : vector<2x512xf32> to vector<2x128xf32>
    %197 = arith.negf %196 : vector<2x128xf32>
    %198 = math.exp %197 : vector<2x128xf32>
    %cst_39 = arith.constant 1.000000e+00 : f32
    %199 = vector.broadcast %cst_39 : f32 to vector<2x128xf32>
    %200 = arith.addf %199, %198 : vector<2x128xf32>
    %201 = arith.divf %199, %200 : vector<2x128xf32>
    %202 = arith.mulf %193, %171 : vector<2x128xf32>
    %203 = arith.mulf %187, %195 : vector<2x128xf32>
    %204 = arith.addf %202, %203 : vector<2x128xf32>
    %205 = math.tanh %204 : vector<2x128xf32>
    %206 = arith.mulf %201, %205 : vector<2x128xf32>
    %c0_i32_40 = arith.constant 0 : i32
    %207 = arith.cmpi eq, %arg0, %c0_i32_40 : i32
    %208 = vector.extract_strided_slice %6 {offsets = [6, 0, 0], sizes = [1, 2, 512], strides = [1, 1, 1]} : vector<8x2x512xf32> to vector<1x2x512xf32>
    %209 = vector.shape_cast %208 : vector<1x2x512xf32> to vector<2x512xf32>
    %210 = vector.extract_strided_slice %6 {offsets = [1, 0, 0], sizes = [1, 2, 512], strides = [1, 1, 1]} : vector<8x2x512xf32> to vector<1x2x512xf32>
    %211 = vector.shape_cast %210 : vector<1x2x512xf32> to vector<2x512xf32>
    %212 = arith.select %207, %209, %211 : vector<2x512xf32>
    %cst_41 = arith.constant dense<0.000000e+00> : vector<2x512xf32>
    %213 = tpu.matmul %206, %4, %cst_41 {dimension_numbers = #tpu.dot_dimension_numbers<[1], [0], [0], [1], [0, 0, 1, 1], [], []>} : vector<2x128xf32>, vector<128x512xf32>, vector<2x512xf32> -> vector<2x512xf32>
    %214 = arith.addf %212, %213 : vector<2x512xf32>
    %215 = vector.extract_strided_slice %214 {offsets = [0, 0], sizes = [2, 128], strides = [1, 1]} : vector<2x512xf32> to vector<2x128xf32>
    %216 = arith.negf %215 : vector<2x128xf32>
    %217 = math.exp %216 : vector<2x128xf32>
    %cst_42 = arith.constant 1.000000e+00 : f32
    %218 = vector.broadcast %cst_42 : f32 to vector<2x128xf32>
    %219 = arith.addf %218, %217 : vector<2x128xf32>
    %220 = arith.divf %218, %219 : vector<2x128xf32>
    %221 = vector.extract_strided_slice %214 {offsets = [0, 128], sizes = [2, 128], strides = [1, 1]} : vector<2x512xf32> to vector<2x128xf32>
    %222 = arith.negf %221 : vector<2x128xf32>
    %223 = math.exp %222 : vector<2x128xf32>
    %cst_43 = arith.constant 1.000000e+00 : f32
    %224 = vector.broadcast %cst_43 : f32 to vector<2x128xf32>
    %225 = arith.addf %224, %223 : vector<2x128xf32>
    %226 = arith.divf %224, %225 : vector<2x128xf32>
    %227 = vector.extract_strided_slice %214 {offsets = [0, 256], sizes = [2, 128], strides = [1, 1]} : vector<2x512xf32> to vector<2x128xf32>
    %228 = math.tanh %227 : vector<2x128xf32>
    %229 = vector.extract_strided_slice %214 {offsets = [0, 384], sizes = [2, 128], strides = [1, 1]} : vector<2x512xf32> to vector<2x128xf32>
    %230 = arith.negf %229 : vector<2x128xf32>
    %231 = math.exp %230 : vector<2x128xf32>
    %cst_44 = arith.constant 1.000000e+00 : f32
    %232 = vector.broadcast %cst_44 : f32 to vector<2x128xf32>
    %233 = arith.addf %232, %231 : vector<2x128xf32>
    %234 = arith.divf %232, %233 : vector<2x128xf32>
    %235 = arith.mulf %226, %204 : vector<2x128xf32>
    %236 = arith.mulf %220, %228 : vector<2x128xf32>
    %237 = arith.addf %235, %236 : vector<2x128xf32>
    %238 = math.tanh %237 : vector<2x128xf32>
    %239 = arith.mulf %234, %238 : vector<2x128xf32>
    %c0_i32_45 = arith.constant 0 : i32
    %240 = arith.cmpi eq, %arg0, %c0_i32_45 : i32
    %241 = vector.extract_strided_slice %6 {offsets = [7, 0, 0], sizes = [1, 2, 512], strides = [1, 1, 1]} : vector<8x2x512xf32> to vector<1x2x512xf32>
    %242 = vector.shape_cast %241 : vector<1x2x512xf32> to vector<2x512xf32>
    %243 = vector.extract_strided_slice %6 {offsets = [0, 0, 0], sizes = [1, 2, 512], strides = [1, 1, 1]} : vector<8x2x512xf32> to vector<1x2x512xf32>
    %244 = vector.shape_cast %243 : vector<1x2x512xf32> to vector<2x512xf32>
    %245 = arith.select %240, %242, %244 : vector<2x512xf32>
    %cst_46 = arith.constant dense<0.000000e+00> : vector<2x512xf32>
    %246 = tpu.matmul %239, %4, %cst_46 {dimension_numbers = #tpu.dot_dimension_numbers<[1], [0], [0], [1], [0, 0, 1, 1], [], []>} : vector<2x128xf32>, vector<128x512xf32>, vector<2x512xf32> -> vector<2x512xf32>
    %247 = arith.addf %245, %246 : vector<2x512xf32>
    %248 = vector.extract_strided_slice %247 {offsets = [0, 0], sizes = [2, 128], strides = [1, 1]} : vector<2x512xf32> to vector<2x128xf32>
    %249 = arith.negf %248 : vector<2x128xf32>
    %250 = math.exp %249 : vector<2x128xf32>
    %cst_47 = arith.constant 1.000000e+00 : f32
    %251 = vector.broadcast %cst_47 : f32 to vector<2x128xf32>
    %252 = arith.addf %251, %250 : vector<2x128xf32>
    %253 = arith.divf %251, %252 : vector<2x128xf32>
    %254 = vector.extract_strided_slice %247 {offsets = [0, 128], sizes = [2, 128], strides = [1, 1]} : vector<2x512xf32> to vector<2x128xf32>
    %255 = arith.negf %254 : vector<2x128xf32>
    %256 = math.exp %255 : vector<2x128xf32>
    %cst_48 = arith.constant 1.000000e+00 : f32
    %257 = vector.broadcast %cst_48 : f32 to vector<2x128xf32>
    %258 = arith.addf %257, %256 : vector<2x128xf32>
    %259 = arith.divf %257, %258 : vector<2x128xf32>
    %260 = vector.extract_strided_slice %247 {offsets = [0, 256], sizes = [2, 128], strides = [1, 1]} : vector<2x512xf32> to vector<2x128xf32>
    %261 = math.tanh %260 : vector<2x128xf32>
    %262 = vector.extract_strided_slice %247 {offsets = [0, 384], sizes = [2, 128], strides = [1, 1]} : vector<2x512xf32> to vector<2x128xf32>
    %263 = arith.negf %262 : vector<2x128xf32>
    %264 = math.exp %263 : vector<2x128xf32>
    %cst_49 = arith.constant 1.000000e+00 : f32
    %265 = vector.broadcast %cst_49 : f32 to vector<2x128xf32>
    %266 = arith.addf %265, %264 : vector<2x128xf32>
    %267 = arith.divf %265, %266 : vector<2x128xf32>
    %268 = arith.mulf %259, %237 : vector<2x128xf32>
    %269 = arith.mulf %253, %261 : vector<2x128xf32>
    %270 = arith.addf %268, %269 : vector<2x128xf32>
    %271 = math.tanh %270 : vector<2x128xf32>
    %272 = arith.mulf %267, %271 : vector<2x128xf32>
    %c0_50 = arith.constant 0 : index
    %c0_51 = arith.constant 0 : index
    %273 = vector.load %arg7[%c0_50, %c0_51] : memref<2x128xf32, #tpu.memory_space<vmem>>, vector<2x128xf32>
    tpu.vector_store %arg7[%c0_50, %c0_51], %272 {strides = array<i32>} : memref<2x128xf32, #tpu.memory_space<vmem>>, vector<2x128xf32>,
    %c0_52 = arith.constant 0 : index
    %c0_53 = arith.constant 0 : index
    %274 = vector.load %arg8[%c0_52, %c0_53] : memref<2x128xf32, #tpu.memory_space<vmem>>, vector<2x128xf32>
    tpu.vector_store %arg8[%c0_52, %c0_53], %270 {strides = array<i32>} : memref<2x128xf32, #tpu.memory_space<vmem>>, vector<2x128xf32>,
    %c0_i32_54 = arith.constant 0 : i32
    %275 = arith.cmpi eq, %arg0, %c0_i32_54 : i32
    %276 = arith.select %275, %41, %272 : vector<2x128xf32>
    %c0_55 = arith.constant 0 : index
    %c0_56 = arith.constant 0 : index
    %c0_57 = arith.constant 0 : index
    %277 = vector.load %arg4[%c0_55, %c0_56, %c0_57] : memref<8x2x128xf32, #tpu.memory_space<vmem>>, vector<1x2x128xf32>
    %278 = vector.shape_cast %277 : vector<1x2x128xf32> to vector<2x128xf32>
    %279 = vector.shape_cast %276 : vector<2x128xf32> to vector<1x2x128xf32>
    tpu.vector_store %arg4[%c0_55, %c0_56, %c0_57], %279 {strides = array<i32>} : memref<8x2x128xf32, #tpu.memory_space<vmem>>, vector<1x2x128xf32>,
    %c0_i32_58 = arith.constant 0 : i32
    %280 = arith.cmpi eq, %arg0, %c0_i32_58 : i32
    %281 = arith.select %280, %74, %239 : vector<2x128xf32>
    %c1 = arith.constant 1 : index
    %c0_59 = arith.constant 0 : index
    %c0_60 = arith.constant 0 : index
    %282 = vector.load %arg4[%c1, %c0_59, %c0_60] : memref<8x2x128xf32, #tpu.memory_space<vmem>>, vector<1x2x128xf32>
    %283 = vector.shape_cast %282 : vector<1x2x128xf32> to vector<2x128xf32>
    %284 = vector.shape_cast %281 : vector<2x128xf32> to vector<1x2x128xf32>
    tpu.vector_store %arg4[%c1, %c0_59, %c0_60], %284 {strides = array<i32>} : memref<8x2x128xf32, #tpu.memory_space<vmem>>, vector<1x2x128xf32>,
    %c0_i32_61 = arith.constant 0 : i32
    %285 = arith.cmpi eq, %arg0, %c0_i32_61 : i32
    %286 = arith.select %285, %107, %206 : vector<2x128xf32>
    %c2 = arith.constant 2 : index
    %c0_62 = arith.constant 0 : index
    %c0_63 = arith.constant 0 : index
    %287 = vector.load %arg4[%c2, %c0_62, %c0_63] : memref<8x2x128xf32, #tpu.memory_space<vmem>>, vector<1x2x128xf32>
    %288 = vector.shape_cast %287 : vector<1x2x128xf32> to vector<2x128xf32>
    %289 = vector.shape_cast %286 : vector<2x128xf32> to vector<1x2x128xf32>
    tpu.vector_store %arg4[%c2, %c0_62, %c0_63], %289 {strides = array<i32>} : memref<8x2x128xf32, #tpu.memory_space<vmem>>, vector<1x2x128xf32>,
    %c0_i32_64 = arith.constant 0 : i32
    %290 = arith.cmpi eq, %arg0, %c0_i32_64 : i32
    %291 = arith.select %290, %140, %173 : vector<2x128xf32>
    %c3 = arith.constant 3 : index
    %c0_65 = arith.constant 0 : index
    %c0_66 = arith.constant 0 : index
    %292 = vector.load %arg4[%c3, %c0_65, %c0_66] : memref<8x2x128xf32, #tpu.memory_space<vmem>>, vector<1x2x128xf32>
    %293 = vector.shape_cast %292 : vector<1x2x128xf32> to vector<2x128xf32>
    %294 = vector.shape_cast %291 : vector<2x128xf32> to vector<1x2x128xf32>
    tpu.vector_store %arg4[%c3, %c0_65, %c0_66], %294 {strides = array<i32>} : memref<8x2x128xf32, #tpu.memory_space<vmem>>, vector<1x2x128xf32>,
    %c0_i32_67 = arith.constant 0 : i32
    %295 = arith.cmpi eq, %arg0, %c0_i32_67 : i32
    %296 = arith.select %295, %173, %140 : vector<2x128xf32>
    %c4 = arith.constant 4 : index
    %c0_68 = arith.constant 0 : index
    %c0_69 = arith.constant 0 : index
    %297 = vector.load %arg4[%c4, %c0_68, %c0_69] : memref<8x2x128xf32, #tpu.memory_space<vmem>>, vector<1x2x128xf32>
    %298 = vector.shape_cast %297 : vector<1x2x128xf32> to vector<2x128xf32>
    %299 = vector.shape_cast %296 : vector<2x128xf32> to vector<1x2x128xf32>
    tpu.vector_store %arg4[%c4, %c0_68, %c0_69], %299 {strides = array<i32>} : memref<8x2x128xf32, #tpu.memory_space<vmem>>, vector<1x2x128xf32>,
    %c0_i32_70 = arith.constant 0 : i32
    %300 = arith.cmpi eq, %arg0, %c0_i32_70 : i32
    %301 = arith.select %300, %206, %107 : vector<2x128xf32>
    %c5 = arith.constant 5 : index
    %c0_71 = arith.constant 0 : index
    %c0_72 = arith.constant 0 : index
    %302 = vector.load %arg4[%c5, %c0_71, %c0_72] : memref<8x2x128xf32, #tpu.memory_space<vmem>>, vector<1x2x128xf32>
    %303 = vector.shape_cast %302 : vector<1x2x128xf32> to vector<2x128xf32>
    %304 = vector.shape_cast %301 : vector<2x128xf32> to vector<1x2x128xf32>
    tpu.vector_store %arg4[%c5, %c0_71, %c0_72], %304 {strides = array<i32>} : memref<8x2x128xf32, #tpu.memory_space<vmem>>, vector<1x2x128xf32>,
    %c0_i32_73 = arith.constant 0 : i32
    %305 = arith.cmpi eq, %arg0, %c0_i32_73 : i32
    %306 = arith.select %305, %239, %74 : vector<2x128xf32>
    %c6 = arith.constant 6 : index
    %c0_74 = arith.constant 0 : index
    %c0_75 = arith.constant 0 : index
    %307 = vector.load %arg4[%c6, %c0_74, %c0_75] : memref<8x2x128xf32, #tpu.memory_space<vmem>>, vector<1x2x128xf32>
    %308 = vector.shape_cast %307 : vector<1x2x128xf32> to vector<2x128xf32>
    %309 = vector.shape_cast %306 : vector<2x128xf32> to vector<1x2x128xf32>
    tpu.vector_store %arg4[%c6, %c0_74, %c0_75], %309 {strides = array<i32>} : memref<8x2x128xf32, #tpu.memory_space<vmem>>, vector<1x2x128xf32>,
    %c0_i32_76 = arith.constant 0 : i32
    %310 = arith.cmpi eq, %arg0, %c0_i32_76 : i32
    %311 = arith.select %310, %272, %41 : vector<2x128xf32>
    %c7 = arith.constant 7 : index
    %c0_77 = arith.constant 0 : index
    %c0_78 = arith.constant 0 : index
    %312 = vector.load %arg4[%c7, %c0_77, %c0_78] : memref<8x2x128xf32, #tpu.memory_space<vmem>>, vector<1x2x128xf32>
    %313 = vector.shape_cast %312 : vector<1x2x128xf32> to vector<2x128xf32>
    %314 = vector.shape_cast %311 : vector<2x128xf32> to vector<1x2x128xf32>
    tpu.vector_store %arg4[%c7, %c0_77, %c0_78], %314 {strides = array<i32>} : memref<8x2x128xf32, #tpu.memory_space<vmem>>, vector<1x2x128xf32>,
    %c0_i32_79 = arith.constant 0 : i32
    %315 = arith.cmpi eq, %arg1, %c0_i32_79 : i32
    %316 = arith.extui %315 : i1 to i32
    %c0_i32_80 = arith.constant 0 : i32
    %317 = arith.cmpi ne, %316, %c0_i32_80 : i32
    scf.if %317 {
      %c0_81 = arith.constant 0 : index
      %c0_82 = arith.constant 0 : index
      %c0_83 = arith.constant 0 : index
      %318 = vector.load %arg5[%c0_81, %c0_82, %c0_83] : memref<1x2x128xf32, #tpu.memory_space<vmem>>, vector<1x2x128xf32>
      %319 = vector.shape_cast %318 : vector<1x2x128xf32> to vector<2x128xf32>
      %320 = vector.shape_cast %272 : vector<2x128xf32> to vector<1x2x128xf32>
      tpu.vector_store %arg5[%c0_81, %c0_82, %c0_83], %320 {strides = array<i32>} : memref<1x2x128xf32, #tpu.memory_space<vmem>>, vector<1x2x128xf32>,
      %c0_84 = arith.constant 0 : index
      %c0_85 = arith.constant 0 : index
      %c0_86 = arith.constant 0 : index
      %321 = vector.load %arg6[%c0_84, %c0_85, %c0_86] : memref<1x2x128xf32, #tpu.memory_space<vmem>>, vector<1x2x128xf32>
      %322 = vector.shape_cast %321 : vector<1x2x128xf32> to vector<2x128xf32>
      %323 = vector.shape_cast %270 : vector<2x128xf32> to vector<1x2x128xf32>
      tpu.vector_store %arg6[%c0_84, %c0_85, %c0_86], %323 {strides = array<i32>} : memref<1x2x128xf32, #tpu.memory_space<vmem>>, vector<1x2x128xf32>,
    } else {
    }
    return
  }
  func.func @transform_0(%arg0: i32, %arg1: i32) -> (i32, i32, i32, i32) {
    %c1_i32 = arith.constant 1 : i32
    %0 = arith.subi %c1_i32, %arg0 : i32
    %1 = arith.muli %0, %arg1 : i32
    %c0_i32 = arith.constant 0 : i32
    %2 = arith.subi %c0_i32, %arg1 : i32
    %3 = arith.muli %arg0, %2 : i32
    %4 = arith.addi %1, %3 : i32
    %c0_i32_0 = arith.constant 0 : i32
    %c0_i32_1 = arith.constant 0 : i32
    %c0_i32_2 = arith.constant 0 : i32
    return %arg0, %4, %c0_i32_0, %c0_i32_1 : i32, i32, i32, i32
  }
  func.func @transform_1(%arg0: i32, %arg1: i32) -> (i32, i32, i32) {
    %c0_i32 = arith.constant 0 : i32
    %c0_i32_0 = arith.constant 0 : i32
    %c0_i32_1 = arith.constant 0 : i32
    return %arg0, %c0_i32, %c0_i32_0 : i32, i32, i32
  }
  func.func @transform_2(%arg0: i32, %arg1: i32) -> (i32, i32, i32) {
    %c1_i32 = arith.constant 1 : i32
    %0 = arith.subi %c1_i32, %arg0 : i32
    %1 = arith.muli %0, %arg1 : i32
    %c0_i32 = arith.constant 0 : i32
    %2 = arith.subi %c0_i32, %arg1 : i32
    %3 = arith.muli %arg0, %2 : i32
    %4 = arith.addi %1, %3 : i32
    %c0_i32_0 = arith.constant 0 : i32
    %c0_i32_1 = arith.constant 0 : i32
    return %4, %c0_i32_0, %arg0 : i32, i32, i32
  }
  func.func @transform_3(%arg0: i32, %arg1: i32) -> (i32, i32, i32) {
    %c0_i32 = arith.constant 0 : i32
    %c0_i32_0 = arith.constant 0 : i32
    %c0_i32_1 = arith.constant 0 : i32
    return %arg0, %c0_i32, %c0_i32_0 : i32, i32, i32
  }
  func.func @transform_4(%arg0: i32, %arg1: i32) -> (i32, i32, i32) {
    %c0_i32 = arith.constant 0 : i32
    %c0_i32_0 = arith.constant 0 : i32
    %c0_i32_1 = arith.constant 0 : i32
    return %arg0, %c0_i32, %c0_i32_0 : i32, i32, i32
  }
}

</mosaic_0001>

<llo_original>
// kernel: encoder_forward.3
$region0: #{encoder_forward.3}
  #allocation0 [shape = 'u32[]', space=smem, size = 0x4, offset = 0x4, fixed_abs, tag = 'smem constant byte address 0x4 - core index']
  #allocation1 [shape = 'u32[144,128]{1,0:T(1,128)}', space=vmem, size = 0x12000, scoped, tag = 'internal scratch']
  %s0 = inlined_call_operand.vmem [shape: f32[16,128], index: 0, kind: input, shape index: {}]
  %s1 = inlined_call_operand.hbm [shape: f32[2,128,512], index: 1, kind: input, shape index: {}]
  %s2 = inlined_call_operand.hbm [shape: f32[2,1,512], index: 2, kind: input, shape index: {}]
  %s3 = inlined_call_operand.vmem [shape: f32[2,16,512], index: 3, kind: output, shape index: {}]
  %s4 = sld [smem:[#allocation0]]
  $region53: #{encoder_forward.3} parent=0
    _
  %s6 = ssub.s32 1, %s4
  %s7 = scalar_select 0, %s6, %s4
  $region1: #{encoder_forward.3} parent=0
    #allocation2 [shape = 'u8[524288]{0}', space=vmem, size = 0x80000, scoped, tag = 'input window, operand 1']
    #allocation3 [shape = 's32[2]{0}', space=sflag, size = 0x8, scoped, tag = 'scoped memory for encoder_forward.3']
    #allocation4 [shape = 'u8[4096]{0}', space=vmem, size = 0x1000, scoped, tag = 'input window, operand 2']
    #allocation5 [shape = 's32[2]{0}', space=sflag, size = 0x8, scoped, tag = 'scoped memory for encoder_forward.3']
    %8 = vsyncpa [#allocation3], 0
    %s9 = scalar_lea.sflag [#allocation3], 1
    %10 = vsyncpa %s9, 0
    %11 = vsyncpa [#allocation5], 0
    %s12 = scalar_lea.sflag [#allocation5], 1
    %13 = vsyncpa %s12, 0
    loop: start=0, step=1, limit=4
    $region2: #{encoder_forward.3} parent=1 // loop_pre_header
      _
    $region3: #{encoder_forward.3} parent=1 // loop_header
      %s15 = sphi 0, %s19
      %p16 = scmp.ge.s32.totalorder %s15, 4
      %s22 = sphi 0, %s34
      %s23 = sphi 0, %s30
      %s24 = sphi 0, %s22
      %s25 = sphi 0, %s23
      %s26 = sphi 0, %s24
      %s27 = sphi 0, %s25
      %s37 = sphi 0, %s39
      %s40 = sphi 0, %s37
      %s41 = sphi 0, %s40
      %s57 = sphi 0, %s41
      %s63 = sphi 0, %s65
      %s66 = sphi 0, %s63
      %s67 = sphi 0, %s66
      %s83 = sphi 0, %s67
      %s89 = sphi 0, %s91
      %s92 = sphi 0, %s89
      %s93 = sphi 0, %s92
      %s109 = sphi 0, %s93
      %s117 = sphi 0, %s119
      %s120 = sphi 0, %s117
      %s121 = sphi 0, %s120
      %s137 = sphi 0, %s121
    $region4: #{encoder_forward.3} parent=1 // loop_header_branch
      %18 = sbr.rel (%p16) target = $region8
    $region5: #{encoder_forward.3} parent=1 // loop_body
      %s20 = ssub.s32 %s15, 1
      %s21 = ssub.s32 %s15, 2
      %s28 = sadd.s32 1, %s23
      %p29 = scmp.ge.s32.totalorder %s28, 1
      %s30 = scalar_select %p29, 0, %s28
      %s31 = sadd.s32 1, %s22
      %s32 = scalar_select %p29, %s31, %s22
      %p33 = scmp.ge.s32.totalorder %s32, 2
      %s34 = scalar_select %p33, 0, %s32
      %s35 = ssub.s32 %s23, %s30
      %p36 = scmp.eq.s32.totalorder %s35, 0
      %s38 = sadd.s32 %s37, 1
      %s39 = scalar_select %p36, %s37, %s38
      %p42 = pneg %p36
      %p43 = scmp.eq.s32.totalorder %s15, 1
      %p44 = por %p42, %p43
      %p45 = scmp.ne.s32.totalorder %s37, %s40
      %p46 = scmp.eq.s32.totalorder %s15, 0
      %p47 = por %p45, %p46
      %p48 = scmp.ne.s32.totalorder %s37, %s40
      %p49 = scmp.eq.s32.totalorder %s20, 1
      %p50 = por %p48, %p49
      %p51 = scmp.ne.s32.totalorder %s40, %s41
      %p52 = scmp.eq.s32.totalorder %s20, 0
      %p53 = por %p51, %p52
      %p54 = scmp.ne.s32.totalorder %s40, %s41
      %p55 = scmp.eq.s32.totalorder %s21, 1
      %p56 = por %p54, %p55
      %p58 = scmp.ne.s32.totalorder %s41, %s57
      %p59 = scmp.eq.s32.totalorder %s21, 0
      %p60 = por %p58, %p59
      %s61 = ssub.s32 %s22, %s34
      %p62 = scmp.eq.s32.totalorder %s61, 0
      %s64 = sadd.s32 %s63, 1
      %s65 = scalar_select %p62, %s63, %s64
      %p68 = pneg %p62
      %p69 = scmp.eq.s32.totalorder %s15, 1
      %p70 = por %p68, %p69
      %p71 = scmp.ne.s32.totalorder %s63, %s66
      %p72 = scmp.eq.s32.totalorder %s15, 0
      %p73 = por %p71, %p72
      %p74 = scmp.ne.s32.totalorder %s63, %s66
      %p75 = scmp.eq.s32.totalorder %s20, 1
      %p76 = por %p74, %p75
      %p77 = scmp.ne.s32.totalorder %s66, %s67
      %p78 = scmp.eq.s32.totalorder %s20, 0
      %p79 = por %p77, %p78
      %p80 = scmp.ne.s32.totalorder %s66, %s67
      %p81 = scmp.eq.s32.totalorder %s21, 1
      %p82 = por %p80, %p81
      %p84 = scmp.ne.s32.totalorder %s67, %s83
      %p85 = scmp.eq.s32.totalorder %s21, 0
      %p86 = por %p84, %p85
      %s87 = ssub.s32 %s22, %s34
      %p88 = scmp.eq.s32.totalorder %s87, 0
      %s90 = sadd.s32 %s89, 1
      %s91 = scalar_select %p88, %s89, %s90
      %p94 = pneg %p88
      %p95 = scmp.eq.s32.totalorder %s15, 1
      %p96 = por %p94, %p95
      %p97 = scmp.ne.s32.totalorder %s89, %s92
      %p98 = scmp.eq.s32.totalorder %s15, 0
      %p99 = por %p97, %p98
      %p100 = scmp.ne.s32.totalorder %s89, %s92
      %p101 = scmp.eq.s32.totalorder %s20, 1
      %p102 = por %p100, %p101
      %p103 = scmp.ne.s32.totalorder %s92, %s93
      %p104 = scmp.eq.s32.totalorder %s20, 0
      %p105 = por %p103, %p104
      %p106 = scmp.ne.s32.totalorder %s92, %s93
      %p107 = scmp.eq.s32.totalorder %s21, 1
      %p108 = por %p106, %p107
      %p110 = scmp.ne.s32.totalorder %s93, %s109
      %p111 = scmp.eq.s32.totalorder %s21, 0
      %p112 = por %p110, %p111
      %s113 = ssub.s32 %s22, %s34
      %s114 = ssub.s32 %s23, %s30
      %s115 = sor.u32 %s113, %s114
      %p116 = scmp.eq.s32.totalorder %s115, 0
      %s118 = sadd.s32 %s117, 1
      %s119 = scalar_select %p116, %s117, %s118
      %p122 = pneg %p116
      %p123 = scmp.eq.s32.totalorder %s15, 1
      %p124 = por %p122, %p123
      %p125 = scmp.ne.s32.totalorder %s117, %s120
      %p126 = scmp.eq.s32.totalorder %s15, 0
      %p127 = por %p125, %p126
      %p128 = scmp.ne.s32.totalorder %s117, %s120
      %p129 = scmp.eq.s32.totalorder %s20, 1
      %p130 = por %p128, %p129
      %p131 = scmp.ne.s32.totalorder %s120, %s121
      %p132 = scmp.eq.s32.totalorder %s20, 0
      %p133 = por %p131, %p132
      %p134 = scmp.ne.s32.totalorder %s120, %s121
      %p135 = scmp.eq.s32.totalorder %s21, 1
      %p136 = por %p134, %p135
      %p138 = scmp.ne.s32.totalorder %s121, %s137
      %p139 = scmp.eq.s32.totalorder %s21, 0
      %p140 = por %p138, %p139
      %p141 = scmp.le.s32.totalorder 1, %s15
      %p142 = scmp.lt.s32.totalorder %s15, 3
      %p143 = pnand %p141, %p142
      %p144 = pneg %p143
      // Predicated region
      $region9: #{encoder_forward.3} parent=5 // pred_check
        _
      $region10: #{encoder_forward.3} parent=5 // pred_check_branch
        %146 = sbr.rel (%p143) target = $region12
      $region11: #{encoder_forward.3} parent=5 // pred_region
        %s147 = ssub.s32 %s15, 1
        // Predicated region
        $region13: #{encoder_forward.3} parent=11 // pred_check
          %p148 = pneg %p53
        $region14: #{encoder_forward.3} parent=11 // pred_check_branch
          %150 = sbr.rel (%p148) target = $region16
        $region15: #{encoder_forward.3} parent=11 // pred_region
          %s151 = smul.u32 2, %s25
          %p152 = scmp.lt.s32.totalorder %s151, 1
          %s153 = scalar_select %p152, %s151, 1
          %s154 = smul.addr %s153, 8
          %s155 = scalar_lea.vmem %s0, %s154
          %s156 = smul.u32 2, %s25
        $region16: #{encoder_forward.3} parent=11 // pred_fallthru
          _
      $region12: #{encoder_forward.3} parent=5 // pred_fallthru
        _
      %p157 = scmp.lt.s32.totalorder %s15, 2
      // Predicated region
      $region17: #{encoder_forward.3} parent=5 // pred_check
        %p158 = pneg %p157
      $region18: #{encoder_forward.3} parent=5 // pred_check_branch
        %160 = sbr.rel (%p158) target = $region20
      $region19: #{encoder_forward.3} parent=5 // pred_region
        // Predicated region
        $region21: #{encoder_forward.3} parent=19 // pred_check
          %p161 = pneg %p73
        $region22: #{encoder_forward.3} parent=19 // pred_check_branch
          %163 = sbr.rel (%p161) target = $region24
        $region23: #{encoder_forward.3} parent=19 // pred_region
          %s164 = sand.u32 %s63, 1
          %s165 = scalar_lea.sflag [#allocation3], %s164
          %s166 = sand.u32 %s63, 1
          %s167 = smul.addr %s166, 512
          %s168 = scalar_lea.vmem [#allocation2], %s167
          %s170 = ssub.s32 8192, 8192
          %171 = vsyncadd %s165, %s170
          %s172 = smul.addr %s22, 64
          %s173 = smul.addr %s172, 128
          %s174 = scalar_lea.hbm %s1, %s173
          %s175 = sshll.u32 %s168, 4
          %s176 = int_to_ptr.vmem [resolvable:$true] %s175
          %181 = dma.hbm_to_vmem [thread:$0]  %s174, 8192, %s176, %s165, 512, 512, 32
        $region24: #{encoder_forward.3} parent=19 // pred_fallthru
          _
        // Predicated region
        $region25: #{encoder_forward.3} parent=19 // pred_check
          %p182 = pneg %p99
        $region26: #{encoder_forward.3} parent=19 // pred_check_branch
          %184 = sbr.rel (%p182) target = $region28
        $region27: #{encoder_forward.3} parent=19 // pred_region
          %s185 = sand.u32 %s89, 1
          %s186 = scalar_lea.sflag [#allocation5], %s185
          %s187 = sand.u32 %s89, 1
          %s188 = smul.addr %s187, 4
          %s189 = scalar_lea.vmem [#allocation4], %s188
          %s191 = ssub.s32 64, 64
          %192 = vsyncadd %s186, %s191
          %s193 = smul.addr %s22, 4
          %s194 = smul.addr %s193, 16
          %s195 = scalar_lea.hbm %s2, %s194
          %s197 = sshll.u32 %s189, 4
          %s198 = int_to_ptr.vmem [resolvable:$true] %s197
          %200 = dma.hbm_to_vmem [thread:$0]  %s195, 64, %s198, %s186
        $region28: #{encoder_forward.3} parent=19 // pred_fallthru
          _
      $region20: #{encoder_forward.3} parent=5 // pred_fallthru
        _
      %p201 = scmp.le.s32.totalorder 1, %s15
      %p202 = scmp.lt.s32.totalorder %s15, 3
      %p203 = pnand %p201, %p202
      %p204 = pneg %p203
      // Predicated region
      $region29: #{encoder_forward.3} parent=5 // pred_check
        _
      $region30: #{encoder_forward.3} parent=5 // pred_check_branch
        %206 = sbr.rel (%p203) target = $region32
      $region31: #{encoder_forward.3} parent=5 // pred_region
        %s207 = ssub.s32 %s15, 1
        %s208 = sand.u32 %s66, 1
        %s209 = scalar_lea.sflag [#allocation3], %s208
        %s210 = sand.u32 %s66, 1
        %s211 = smul.addr %s210, 512
        %s212 = scalar_lea.vmem [#allocation2], %s211
        // Predicated region
        $region33: #{encoder_forward.3} parent=31 // pred_check
          %p213 = pneg %p79
        $region34: #{encoder_forward.3} parent=31 // pred_check_branch
          %215 = sbr.rel (%p213) target = $region36
        $region35: #{encoder_forward.3} parent=31 // pred_region
          %216 = dma.done %s209, 8192
        $region36: #{encoder_forward.3} parent=31 // pred_fallthru
          _
        %s217 = sand.u32 %s92, 1
        %s218 = scalar_lea.sflag [#allocation5], %s217
        %s219 = sand.u32 %s92, 1
        %s220 = smul.addr %s219, 4
        %s221 = scalar_lea.vmem [#allocation4], %s220
        // Predicated region
        $region37: #{encoder_forward.3} parent=31 // pred_check
          %p222 = pneg %p105
        $region38: #{encoder_forward.3} parent=31 // pred_check_branch
          %224 = sbr.rel (%p222) target = $region40
        $region39: #{encoder_forward.3} parent=31 // pred_region
          %225 = dma.done %s218, 64
        $region40: #{encoder_forward.3} parent=31 // pred_fallthru
          _
        %s226 = smul.u32 2, %s25
        %p227 = scmp.lt.s32.totalorder %s226, 1
        %s228 = scalar_select %p227, %s226, 1
        %s229 = smul.addr %s228, 8
        %s230 = scalar_lea.vmem %s0, %s229
        %p231 = pneg %p53
        %p232 = pneg %p50
        %s233 = sand.u32 %s66, 1
        %s234 = scalar_lea.sflag [#allocation3], %s233
        %s235 = sand.u32 %s66, 1
        %s236 = smul.addr %s235, 512
        %s237 = scalar_lea.vmem [#allocation2], %s236
        %p238 = pneg %p79
        %p239 = pneg %p76
        %s240 = sand.u32 %s92, 1
        %s241 = scalar_lea.sflag [#allocation5], %s240
        %s242 = sand.u32 %s92, 1
        %s243 = smul.addr %s242, 4
        %s244 = scalar_lea.vmem [#allocation4], %s243
        %p245 = pneg %p105
        %p246 = pneg %p102
        %p247 = pneg %p133
        %p248 = pneg %p130
        %s249 = smul.u32 2, %s25
        %p250 = scmp.lt.s32.totalorder %s24, 1
        %s251 = scalar_select %p250, %s24, 1
        %p252 = scmp.lt.s32.totalorder %s249, 1
        %s253 = scalar_select %p252, %s249, 1
        %s254 = smul.addr %s253, 4
        %s255 = smul.addr %s251, 8
        %s256 = sadd.s32 %s254, %s255
        %s257 = smul.addr %s256, 8
        %s258 = scalar_lea.vmem %s3, %s257
        %s259 = smul.u32 2, %s25
        %p260 = scmp.lt.s32.totalorder %s259, 1
        %s261 = scalar_select %p260, %s259, 1
        %s262 = smul.addr %s261, 8
        %s263 = scalar_lea.vmem %s0, %s262
        %s264 = smul.u32 2, %s25
        %s265 = smul.u32 2, %s25
        %p266 = scmp.lt.s32.totalorder %s24, 1
        %s267 = scalar_select %p266, %s24, 1
        %p268 = scmp.lt.s32.totalorder %s265, 1
        %s269 = scalar_select %p268, %s265, 1
        %s270 = smul.addr %s269, 4
        %s271 = smul.addr %s267, 8
        %s272 = sadd.s32 %s270, %s271
        %s273 = smul.addr %s272, 8
        %s274 = scalar_lea.vmem %s3, %s273
        %s275 = smul.u32 2, %s25
        %v276 = vld [vmem:[%s263] sm:$0xff]
        %v277 = vld [vmem:[%s263 + $0x8] sm:$0xff]
        %v278 = vld [vmem:[%s212] sm:$0xff]
        %v279 = vld [vmem:[%s212 + $0x8] sm:$0xff]
        %v280 = vld [vmem:[%s212 + $0x10] sm:$0xff]
        %v281 = vld [vmem:[%s212 + $0x18] sm:$0xff]
        %v282 = vld [vmem:[%s212 + $0x20] sm:$0xff]
        %v283 = vld [vmem:[%s212 + $0x28] sm:$0xff]
        %v284 = vld [vmem:[%s212 + $0x30] sm:$0xff]
        %v285 = vld [vmem:[%s212 + $0x38] sm:$0xff]
        %v286 = vld [vmem:[%s212 + $0x40] sm:$0xff]
        %v287 = vld [vmem:[%s212 + $0x48] sm:$0xff]
        %v288 = vld [vmem:[%s212 + $0x50] sm:$0xff]
        %v289 = vld [vmem:[%s212 + $0x58] sm:$0xff]
        %v290 = vld [vmem:[%s212 + $0x60] sm:$0xff]
        %v291 = vld [vmem:[%s212 + $0x68] sm:$0xff]
        %v292 = vld [vmem:[%s212 + $0x70] sm:$0xff]
        %v293 = vld [vmem:[%s212 + $0x78] sm:$0xff]
        %v294 = vld [vmem:[%s212 + $0x80] sm:$0xff]
        %v295 = vld [vmem:[%s212 + $0x88] sm:$0xff]
        %v296 = vld [vmem:[%s212 + $0x90] sm:$0xff]
        %v297 = vld [vmem:[%s212 + $0x98] sm:$0xff]
        %v298 = vld [vmem:[%s212 + $0xa0] sm:$0xff]
        %v299 = vld [vmem:[%s212 + $0xa8] sm:$0xff]
        %v300 = vld [vmem:[%s212 + $0xb0] sm:$0xff]
        %v301 = vld [vmem:[%s212 + $0xb8] sm:$0xff]
        %v302 = vld [vmem:[%s212 + $0xc0] sm:$0xff]
        %v303 = vld [vmem:[%s212 + $0xc8] sm:$0xff]
        %v304 = vld [vmem:[%s212 + $0xd0] sm:$0xff]
        %v305 = vld [vmem:[%s212 + $0xd8] sm:$0xff]
        %v306 = vld [vmem:[%s212 + $0xe0] sm:$0xff]
        %v307 = vld [vmem:[%s212 + $0xe8] sm:$0xff]
        %v308 = vld [vmem:[%s212 + $0xf0] sm:$0xff]
        %v309 = vld [vmem:[%s212 + $0xf8] sm:$0xff]
        %v310 = vld [vmem:[%s212 + $0x100] sm:$0xff]
        %v311 = vld [vmem:[%s212 + $0x108] sm:$0xff]
        %v312 = vld [vmem:[%s212 + $0x110] sm:$0xff]
        %v313 = vld [vmem:[%s212 + $0x118] sm:$0xff]
        %v314 = vld [vmem:[%s212 + $0x120] sm:$0xff]
        %v315 = vld [vmem:[%s212 + $0x128] sm:$0xff]
        %v316 = vld [vmem:[%s212 + $0x130] sm:$0xff]
        %v317 = vld [vmem:[%s212 + $0x138] sm:$0xff]
        %v318 = vld [vmem:[%s212 + $0x140] sm:$0xff]
        %v319 = vld [vmem:[%s212 + $0x148] sm:$0xff]
        %v320 = vld [vmem:[%s212 + $0x150] sm:$0xff]
        %v321 = vld [vmem:[%s212 + $0x158] sm:$0xff]
        %v322 = vld [vmem:[%s212 + $0x160] sm:$0xff]
        %v323 = vld [vmem:[%s212 + $0x168] sm:$0xff]
        %v324 = vld [vmem:[%s212 + $0x170] sm:$0xff]
        %v325 = vld [vmem:[%s212 + $0x178] sm:$0xff]
        %v326 = vld [vmem:[%s212 + $0x180] sm:$0xff]
        %v327 = vld [vmem:[%s212 + $0x188] sm:$0xff]
        %v328 = vld [vmem:[%s212 + $0x190] sm:$0xff]
        %v329 = vld [vmem:[%s212 + $0x198] sm:$0xff]
        %v330 = vld [vmem:[%s212 + $0x1a0] sm:$0xff]
        %v331 = vld [vmem:[%s212 + $0x1a8] sm:$0xff]
        %v332 = vld [vmem:[%s212 + $0x1b0] sm:$0xff]
        %v333 = vld [vmem:[%s212 + $0x1b8] sm:$0xff]
        %v334 = vld [vmem:[%s212 + $0x1c0] sm:$0xff]
        %v335 = vld [vmem:[%s212 + $0x1c8] sm:$0xff]
        %v336 = vld [vmem:[%s212 + $0x1d0] sm:$0xff]
        %v337 = vld [vmem:[%s212 + $0x1d8] sm:$0xff]
        %v338 = vld [vmem:[%s212 + $0x1e0] sm:$0xff]
        %v339 = vld [vmem:[%s212 + $0x1e8] sm:$0xff]
        %v340 = vld [vmem:[%s212 + $0x1f0] sm:$0xff]
        %v341 = vld [vmem:[%s212 + $0x1f8] sm:$0xff]
        %v342 = vld [vmem:[%s221] sm:$0xf]
        %v344 = vlaneseq
        %v345 = vshrl.u32 %v344, 7
        %v346 = vsub.s32 0, %v345
        %v347 = vrot.slane %v342, %v346
        %v348 = vlaneseq
        %v349 = vshrl.u32 %v348, 7
        %v350 = vsub.s32 1, %v349
        %v351 = vrot.slane %v342, %v350
        %v352 = vlaneseq
        %v353 = vshrl.u32 %v352, 7
        %v354 = vsub.s32 2, %v353
        %v355 = vrot.slane %v342, %v354
        %v356 = vlaneseq
        %v357 = vshrl.u32 %v356, 7
        %v358 = vsub.s32 3, %v357
        %v359 = vrot.slane %v342, %v358
        %364 = vmatprep.subr.mxu0 %v279
        %365 = vmatpush1.msra.mxu0 %v278
        %366 = vmatprep.subr.mxu0 %v283
        %367 = vmatpush1.msra.mxu0 %v282
        %368 = vmatprep.subr.mxu0 %v287
        %369 = vmatpush1.msra.mxu0 %v286
        %370 = vmatprep.subr.mxu0 %v291
        %371 = vmatpush1.msra.mxu0 %v290
        %372 = vmatprep.subr.mxu0 %v295
        %373 = vmatpush1.msra.mxu0 %v294
        %374 = vmatprep.subr.mxu0 %v299
        %375 = vmatpush1.msra.mxu0 %v298
        %376 = vmatprep.subr.mxu0 %v303
        %377 = vmatpush1.msra.mxu0 %v302
        %378 = vmatprep.subr.mxu0 %v307
        %379 = vmatpush1.msra.mxu0 %v306
        %380 = vmatprep.subr.mxu0 %v311
        %381 = vmatpush1.msra.mxu0 %v310
        %382 = vmatprep.subr.mxu0 %v315
        %383 = vmatpush1.msra.mxu0 %v314
        %384 = vmatprep.subr.mxu0 %v319
        %385 = vmatpush1.msra.mxu0 %v318
        %386 = vmatprep.subr.mxu0 %v323
        %387 = vmatpush1.msra.mxu0 %v322
        %388 = vmatprep.subr.mxu0 %v327
        %389 = vmatpush1.msra.mxu0 %v326
        %390 = vmatprep.subr.mxu0 %v331
        %391 = vmatpush1.msra.mxu0 %v330
        %392 = vmatprep.subr.mxu0 %v335
        %393 = vmatpush1.msra.mxu0 %v334
        %394 = vmatprep.subr.mxu0 %v339
        %395 = vmatpush1.msra.mxu0 %v338
        %396 = vmatprep.subr.mxu0 0.0
        %397 = vmatpush1.msra.mxu0 0.0
        %398 = vmatprep.subr.mxu0 0.0
        %399 = vmatpush1.msra.mxu0 0.0
        %400 = vmatprep.subr.mxu0 0.0
        %401 = vmatpush1.msra.mxu0 0.0
        %402 = vmatprep.subr.mxu0 0.0
        %403 = vmatpush1.msra.mxu0 0.0
        %404 = vmatprep.subr.mxu0 0.0
        %405 = vmatpush1.msra.mxu0 0.0
        %406 = vmatprep.subr.mxu0 0.0
        %407 = vmatpush1.msra.mxu0 0.0
        %408 = vmatprep.subr.mxu0 0.0
        %409 = vmatpush1.msra.mxu0 0.0
        %410 = vmatprep.subr.mxu0 0.0
        %411 = vmatpush1.msra.mxu0 0.0
        %412 = vmatprep.subr.mxu0 0.0
        %413 = vmatpush1.msra.mxu0 0.0
        %414 = vmatprep.subr.mxu0 0.0
        %415 = vmatpush1.msra.mxu0 0.0
        %416 = vmatprep.subr.mxu0 0.0
        %417 = vmatpush1.msra.mxu0 0.0
        %418 = vmatprep.subr.mxu0 0.0
        %419 = vmatpush1.msra.mxu0 0.0
        %420 = vmatprep.subr.mxu0 0.0
        %421 = vmatpush1.msra.mxu0 0.0
        %422 = vmatprep.subr.mxu0 0.0
        %423 = vmatpush1.msra.mxu0 0.0
        %424 = vmatprep.subr.mxu0 0.0
        %425 = vmatpush1.msra.mxu0 0.0
        %426 = vmatprep.subr.mxu0 0.0
        %427 = vmatpush1.msra.mxu0 0.0
        %428 = vmatprep.mubr.f32.mxu0 0.0
        %429 = vmatmul.mubr.f32.gmra.mrb[0].mxu0 %v276
        %v430 = vpop.f32.mrb[0].mxu0
        %v431 = vadd.f32 %v347, %v430
        %v432 = vpop.f32.mrb[0].mxu0
        %v433 = vadd.f32 %v351, %v432
        %434 = vmatprep.mubr.f32.mxu0 0.0
        %435 = vmatmul.mubr.f32.gmra.mrb[0].mxu0 %v277
        %v436 = vpop.f32.mrb[0].mxu0
        %v437 = vadd.f32 %v347, %v436
        %v438 = vpop.f32.mrb[0].mxu0
        %v439 = vadd.f32 %v351, %v438
        %440 = vdwg.mxu0
        %441 = vmatprep.subr.mxu0 %v281
        %442 = vmatpush1.msra.mxu0 %v280
        %443 = vmatprep.subr.mxu0 %v285
        %444 = vmatpush1.msra.mxu0 %v284
        %445 = vmatprep.subr.mxu0 %v289
        %446 = vmatpush1.msra.mxu0 %v288
        %447 = vmatprep.subr.mxu0 %v293
        %448 = vmatpush1.msra.mxu0 %v292
        %449 = vmatprep.subr.mxu0 %v297
        %450 = vmatpush1.msra.mxu0 %v296
        %451 = vmatprep.subr.mxu0 %v301
        %452 = vmatpush1.msra.mxu0 %v300
        %453 = vmatprep.subr.mxu0 %v305
        %454 = vmatpush1.msra.mxu0 %v304
        %455 = vmatprep.subr.mxu0 %v309
        %456 = vmatpush1.msra.mxu0 %v308
        %457 = vmatprep.subr.mxu0 %v313
        %458 = vmatpush1.msra.mxu0 %v312
        %459 = vmatprep.subr.mxu0 %v317
        %460 = vmatpush1.msra.mxu0 %v316
        %461 = vmatprep.subr.mxu0 %v321
        %462 = vmatpush1.msra.mxu0 %v320
        %463 = vmatprep.subr.mxu0 %v325
        %464 = vmatpush1.msra.mxu0 %v324
        %465 = vmatprep.subr.mxu0 %v329
        %466 = vmatpush1.msra.mxu0 %v328
        %467 = vmatprep.subr.mxu0 %v333
        %468 = vmatpush1.msra.mxu0 %v332
        %469 = vmatprep.subr.mxu0 %v337
        %470 = vmatpush1.msra.mxu0 %v336
        %471 = vmatprep.subr.mxu0 %v341
        %472 = vmatpush1.msra.mxu0 %v340
        %473 = vmatprep.subr.mxu0 0.0
        %474 = vmatpush1.msra.mxu0 0.0
        %475 = vmatprep.subr.mxu0 0.0
        %476 = vmatpush1.msra.mxu0 0.0
        %477 = vmatprep.subr.mxu0 0.0
        %478 = vmatpush1.msra.mxu0 0.0
        %479 = vmatprep.subr.mxu0 0.0
        %480 = vmatpush1.msra.mxu0 0.0
        %481 = vmatprep.subr.mxu0 0.0
        %482 = vmatpush1.msra.mxu0 0.0
        %483 = vmatprep.subr.mxu0 0.0
        %484 = vmatpush1.msra.mxu0 0.0
        %485 = vmatprep.subr.mxu0 0.0
        %486 = vmatpush1.msra.mxu0 0.0
        %487 = vmatprep.subr.mxu0 0.0
        %488 = vmatpush1.msra.mxu0 0.0
        %489 = vmatprep.subr.mxu0 0.0
        %490 = vmatpush1.msra.mxu0 0.0
        %491 = vmatprep.subr.mxu0 0.0
        %492 = vmatpush1.msra.mxu0 0.0
        %493 = vmatprep.subr.mxu0 0.0
        %494 = vmatpush1.msra.mxu0 0.0
        %495 = vmatprep.subr.mxu0 0.0
        %496 = vmatpush1.msra.mxu0 0.0
        %497 = vmatprep.subr.mxu0 0.0
        %498 = vmatpush1.msra.mxu0 0.0
        %499 = vmatprep.subr.mxu0 0.0
        %500 = vmatpush1.msra.mxu0 0.0
        %501 = vmatprep.subr.mxu0 0.0
        %502 = vmatpush1.msra.mxu0 0.0
        %503 = vmatprep.subr.mxu0 0.0
        %504 = vmatpush1.msra.mxu0 0.0
        %505 = vmatprep.mubr.f32.mxu0 0.0
        %506 = vmatmul.mubr.f32.gmra.mrb[0].mxu0 %v276
        %v507 = vpop.f32.mrb[0].mxu0
        %v508 = vadd.f32 %v355, %v507
        %v509 = vpop.f32.mrb[0].mxu0
        %v510 = vadd.f32 %v359, %v509
        %511 = vmatprep.mubr.f32.mxu0 0.0
        %512 = vmatmul.mubr.f32.gmra.mrb[0].mxu0 %v277
        %v513 = vpop.f32.mrb[0].mxu0
        %v514 = vadd.f32 %v355, %v513
        %v515 = vpop.f32.mrb[0].mxu0
        %v516 = vadd.f32 %v359, %v515
        %517 = vdwg.mxu0
        %518 = vst [vmem:[%s274] sm:$0xff] %v431
        %519 = vst [vmem:[%s274 + $0x8] sm:$0xff] %v433
        %520 = vst [vmem:[%s274 + $0x10] sm:$0xff] %v508
        %521 = vst [vmem:[%s274 + $0x18] sm:$0xff] %v510
        %522 = vst [vmem:[%s274 + $0x20] sm:$0xff] %v437
        %523 = vst [vmem:[%s274 + $0x28] sm:$0xff] %v439
        %524 = vst [vmem:[%s274 + $0x30] sm:$0xff] %v514
        %525 = vst [vmem:[%s274 + $0x38] sm:$0xff] %v516
        %s526 = smul.u32 2, %s25
        %p527 = scmp.lt.s32.totalorder %s24, 1
        %s528 = scalar_select %p527, %s24, 1
        %p529 = scmp.lt.s32.totalorder %s526, 1
        %s530 = scalar_select %p529, %s526, 1
        %s531 = smul.addr %s530, 4
        %s532 = smul.addr %s528, 8
        %s533 = sadd.s32 %s531, %s532
        %s534 = smul.addr %s533, 8
        %s535 = scalar_lea.vmem %s3, %s534
        // Predicated region
        $region41: #{encoder_forward.3} parent=31 // pred_check
          %p536 = pneg %p130
        $region42: #{encoder_forward.3} parent=31 // pred_check_branch
          %538 = sbr.rel (%p536) target = $region44
        $region43: #{encoder_forward.3} parent=31 // pred_region
          %s539 = smul.u32 2, %s25
        $region44: #{encoder_forward.3} parent=31 // pred_fallthru
          _
      $region32: #{encoder_forward.3} parent=5 // pred_fallthru
        _
      %p540 = scmp.le.s32.totalorder 2, %s15
      // Predicated region
      $region45: #{encoder_forward.3} parent=5 // pred_check
        %p541 = pneg %p540
      $region46: #{encoder_forward.3} parent=5 // pred_check_branch
        %543 = sbr.rel (%p541) target = $region48
      $region47: #{encoder_forward.3} parent=5 // pred_region
        %s544 = ssub.s32 %s15, 2
        // Predicated region
        $region49: #{encoder_forward.3} parent=47 // pred_check
          %p545 = pneg %p136
        $region50: #{encoder_forward.3} parent=47 // pred_check_branch
          %547 = sbr.rel (%p545) target = $region52
        $region51: #{encoder_forward.3} parent=47 // pred_region
          %s548 = smul.u32 2, %s27
          %p549 = scmp.lt.s32.totalorder %s26, 1
          %s550 = scalar_select %p549, %s26, 1
          %p551 = scmp.lt.s32.totalorder %s548, 1
          %s552 = scalar_select %p551, %s548, 1
          %s553 = smul.addr %s552, 4
          %s554 = smul.addr %s550, 8
          %s555 = sadd.s32 %s553, %s554
          %s556 = smul.addr %s555, 8
          %s557 = scalar_lea.vmem %s3, %s556
        $region52: #{encoder_forward.3} parent=47 // pred_fallthru
          _
      $region48: #{encoder_forward.3} parent=5 // pred_fallthru
        _
    $region6: #{encoder_forward.3} parent=1 // loop_footer
      %s19 = sadd.s32 1, %s15
    $region7: #{encoder_forward.3} parent=1 // loop_footer_branch
      %14 = sbr.rel target = $region3
    $region8: #{encoder_forward.3} parent=1 // loop_exit
      _
    %558 = vsyncpa [#allocation3], 1
    %s559 = scalar_lea.sflag [#allocation3], 1
    %560 = vsyncpa %s559, 1
    %561 = vsyncpa [#allocation5], 1
    %s562 = scalar_lea.sflag [#allocation5], 1
    %563 = vsyncpa %s562, 1

// kernel: encoder_forward.5
$region0: #{encoder_forward.5}
  #allocation0 [shape = 'u32[]', space=smem, size = 0x4, offset = 0x4, fixed_abs, tag = 'smem constant byte address 0x4 - core index']
  #allocation1 [shape = 'u32[144,128]{1,0:T(1,128)}', space=vmem, size = 0x12000, scoped, tag = 'internal scratch']
  %s0 = inlined_call_operand.vmem [shape: f32[2,2,128], index: 0, kind: input, shape index: {}]
  %s1 = inlined_call_operand.vmem [shape: f32[2,2,128], index: 1, kind: input, shape index: {}]
  %s2 = inlined_call_operand.vmem [shape: f32[256,128], index: 2, kind: input, shape index: {}]
  %s3 = inlined_call_operand.vmem [shape: f32[1,128], index: 3, kind: input, shape index: {}]
  %s4 = inlined_call_operand.vmem [shape: f32[256,128], index: 4, kind: input, shape index: {}]
  %s5 = inlined_call_operand.vmem [shape: f32[1,128], index: 5, kind: input, shape index: {}]
  %s6 = inlined_call_operand.hbm [shape: f32[2,128], index: 6, kind: output, shape index: {0}]
  %s7 = inlined_call_operand.hbm [shape: f32[2,128], index: 7, kind: output, shape index: {1}]
  %8 = xla_tuple %s6, %s7
  %s9 = sld [smem:[#allocation0]]
  $region42: #{encoder_forward.5} parent=0
    _
  %s11 = ssub.s32 1, %s9
  %s12 = scalar_select 0, %s11, %s9
  $region1: #{encoder_forward.5} parent=0
    #allocation2 [shape = 'u8[1024]{0}', space=vmem, size = 0x400, scoped, tag = 'output window, operand 0, single buffered']
    #allocation3 [shape = 's32[1]{0}', space=sflag, size = 0x4, scoped, tag = 'scoped memory for encoder_forward.5']
    #allocation4 [shape = 'u8[1024]{0}', space=vmem, size = 0x400, scoped, tag = 'output window, operand 1, single buffered']
    #allocation5 [shape = 's32[1]{0}', space=sflag, size = 0x4, scoped, tag = 'scoped memory for encoder_forward.5']
    %13 = vsyncpa [#allocation3], 0
    %14 = vsyncpa [#allocation5], 0
    // Predicated region
    $region2: #{encoder_forward.5} parent=1 // pred_check
      _
    $region3: #{encoder_forward.5} parent=1 // pred_check_branch
      %16 = sbr.rel (0) target = $region5
    $region4: #{encoder_forward.5} parent=1 // pred_region
      _
    $region5: #{encoder_forward.5} parent=1 // pred_fallthru
      _
    // Predicated region
    $region6: #{encoder_forward.5} parent=1 // pred_check
      _
    $region7: #{encoder_forward.5} parent=1 // pred_check_branch
      %18 = sbr.rel (0) target = $region9
    $region8: #{encoder_forward.5} parent=1 // pred_region
      _
    $region9: #{encoder_forward.5} parent=1 // pred_fallthru
      _
    // Predicated region
    $region10: #{encoder_forward.5} parent=1 // pred_check
      _
    $region11: #{encoder_forward.5} parent=1 // pred_check_branch
      %20 = sbr.rel (0) target = $region13
    $region12: #{encoder_forward.5} parent=1 // pred_region
      _
    $region13: #{encoder_forward.5} parent=1 // pred_fallthru
      _
    // Predicated region
    $region14: #{encoder_forward.5} parent=1 // pred_check
      _
    $region15: #{encoder_forward.5} parent=1 // pred_check_branch
      %22 = sbr.rel (0) target = $region17
    $region16: #{encoder_forward.5} parent=1 // pred_region
      _
    $region17: #{encoder_forward.5} parent=1 // pred_fallthru
      _
    // Predicated region
    $region18: #{encoder_forward.5} parent=1 // pred_check
      _
    $region19: #{encoder_forward.5} parent=1 // pred_check_branch
      %24 = sbr.rel (0) target = $region21
    $region20: #{encoder_forward.5} parent=1 // pred_region
      _
    $region21: #{encoder_forward.5} parent=1 // pred_fallthru
      _
    // Predicated region
    $region22: #{encoder_forward.5} parent=1 // pred_check
      _
    $region23: #{encoder_forward.5} parent=1 // pred_check_branch
      %26 = sbr.rel (0) target = $region25
    $region24: #{encoder_forward.5} parent=1 // pred_region
      _
    $region25: #{encoder_forward.5} parent=1 // pred_fallthru
      _
    %v27 = vld [vmem:[%s2] sm:$0xff]
    %v28 = vld [vmem:[%s2 + $0x8] sm:$0xff]
    %v29 = vld [vmem:[%s2 + $0x10] sm:$0xff]
    %v30 = vld [vmem:[%s2 + $0x18] sm:$0xff]
    %v31 = vld [vmem:[%s2 + $0x20] sm:$0xff]
    %v32 = vld [vmem:[%s2 + $0x28] sm:$0xff]
    %v33 = vld [vmem:[%s2 + $0x30] sm:$0xff]
    %v34 = vld [vmem:[%s2 + $0x38] sm:$0xff]
    %v35 = vld [vmem:[%s2 + $0x40] sm:$0xff]
    %v36 = vld [vmem:[%s2 + $0x48] sm:$0xff]
    %v37 = vld [vmem:[%s2 + $0x50] sm:$0xff]
    %v38 = vld [vmem:[%s2 + $0x58] sm:$0xff]
    %v39 = vld [vmem:[%s2 + $0x60] sm:$0xff]
    %v40 = vld [vmem:[%s2 + $0x68] sm:$0xff]
    %v41 = vld [vmem:[%s2 + $0x70] sm:$0xff]
    %v42 = vld [vmem:[%s2 + $0x78] sm:$0xff]
    %v43 = vld [vmem:[%s2 + $0x80] sm:$0xff]
    %v44 = vld [vmem:[%s2 + $0x88] sm:$0xff]
    %v45 = vld [vmem:[%s2 + $0x90] sm:$0xff]
    %v46 = vld [vmem:[%s2 + $0x98] sm:$0xff]
    %v47 = vld [vmem:[%s2 + $0xa0] sm:$0xff]
    %v48 = vld [vmem:[%s2 + $0xa8] sm:$0xff]
    %v49 = vld [vmem:[%s2 + $0xb0] sm:$0xff]
    %v50 = vld [vmem:[%s2 + $0xb8] sm:$0xff]
    %v51 = vld [vmem:[%s2 + $0xc0] sm:$0xff]
    %v52 = vld [vmem:[%s2 + $0xc8] sm:$0xff]
    %v53 = vld [vmem:[%s2 + $0xd0] sm:$0xff]
    %v54 = vld [vmem:[%s2 + $0xd8] sm:$0xff]
    %v55 = vld [vmem:[%s2 + $0xe0] sm:$0xff]
    %v56 = vld [vmem:[%s2 + $0xe8] sm:$0xff]
    %v57 = vld [vmem:[%s2 + $0xf0] sm:$0xff]
    %v58 = vld [vmem:[%s2 + $0xf8] sm:$0xff]
    %v59 = vld [vmem:[%s4] sm:$0xff]
    %v60 = vld [vmem:[%s4 + $0x8] sm:$0xff]
    %v61 = vld [vmem:[%s4 + $0x10] sm:$0xff]
    %v62 = vld [vmem:[%s4 + $0x18] sm:$0xff]
    %v63 = vld [vmem:[%s4 + $0x20] sm:$0xff]
    %v64 = vld [vmem:[%s4 + $0x28] sm:$0xff]
    %v65 = vld [vmem:[%s4 + $0x30] sm:$0xff]
    %v66 = vld [vmem:[%s4 + $0x38] sm:$0xff]
    %v67 = vld [vmem:[%s4 + $0x40] sm:$0xff]
    %v68 = vld [vmem:[%s4 + $0x48] sm:$0xff]
    %v69 = vld [vmem:[%s4 + $0x50] sm:$0xff]
    %v70 = vld [vmem:[%s4 + $0x58] sm:$0xff]
    %v71 = vld [vmem:[%s4 + $0x60] sm:$0xff]
    %v72 = vld [vmem:[%s4 + $0x68] sm:$0xff]
    %v73 = vld [vmem:[%s4 + $0x70] sm:$0xff]
    %v74 = vld [vmem:[%s4 + $0x78] sm:$0xff]
    %v75 = vld [vmem:[%s4 + $0x80] sm:$0xff]
    %v76 = vld [vmem:[%s4 + $0x88] sm:$0xff]
    %v77 = vld [vmem:[%s4 + $0x90] sm:$0xff]
    %v78 = vld [vmem:[%s4 + $0x98] sm:$0xff]
    %v79 = vld [vmem:[%s4 + $0xa0] sm:$0xff]
    %v80 = vld [vmem:[%s4 + $0xa8] sm:$0xff]
    %v81 = vld [vmem:[%s4 + $0xb0] sm:$0xff]
    %v82 = vld [vmem:[%s4 + $0xb8] sm:$0xff]
    %v83 = vld [vmem:[%s4 + $0xc0] sm:$0xff]
    %v84 = vld [vmem:[%s4 + $0xc8] sm:$0xff]
    %v85 = vld [vmem:[%s4 + $0xd0] sm:$0xff]
    %v86 = vld [vmem:[%s4 + $0xd8] sm:$0xff]
    %v87 = vld [vmem:[%s4 + $0xe0] sm:$0xff]
    %v88 = vld [vmem:[%s4 + $0xe8] sm:$0xff]
    %v89 = vld [vmem:[%s4 + $0xf0] sm:$0xff]
    %v90 = vld [vmem:[%s4 + $0xf8] sm:$0xff]
    %v91 = vld [vmem:[%s0] sm:$0x3]
    %s92 = scalar_lea.vmem %s0, 2
    %v93 = vld [vmem:[%s92] sm:$0x3]
    %94 = vmatprep.subr.mxu0 0.0
    %95 = vmatpush1.msra.mxu0 %v43
    %96 = vmatprep.subr.mxu0 0.0
    %97 = vmatpush1.msra.mxu0 %v44
    %98 = vmatprep.subr.mxu0 0.0
    %99 = vmatpush1.msra.mxu0 %v45
    %100 = vmatprep.subr.mxu0 0.0
    %101 = vmatpush1.msra.mxu0 %v46
    %102 = vmatprep.subr.mxu0 0.0
    %103 = vmatpush1.msra.mxu0 %v47
    %104 = vmatprep.subr.mxu0 0.0
    %105 = vmatpush1.msra.mxu0 %v48
    %106 = vmatprep.subr.mxu0 0.0
    %107 = vmatpush1.msra.mxu0 %v49
    %108 = vmatprep.subr.mxu0 0.0
    %109 = vmatpush1.msra.mxu0 %v50
    %110 = vmatprep.subr.mxu0 0.0
    %111 = vmatpush1.msra.mxu0 %v51
    %112 = vmatprep.subr.mxu0 0.0
    %113 = vmatpush1.msra.mxu0 %v52
    %114 = vmatprep.subr.mxu0 0.0
    %115 = vmatpush1.msra.mxu0 %v53
    %116 = vmatprep.subr.mxu0 0.0
    %117 = vmatpush1.msra.mxu0 %v54
    %118 = vmatprep.subr.mxu0 0.0
    %119 = vmatpush1.msra.mxu0 %v55
    %120 = vmatprep.subr.mxu0 0.0
    %121 = vmatpush1.msra.mxu0 %v56
    %122 = vmatprep.subr.mxu0 0.0
    %123 = vmatpush1.msra.mxu0 %v57
    %124 = vmatprep.subr.mxu0 0.0
    %125 = vmatpush1.msra.mxu0 %v58
    %126 = vmatprep.subr.mxu0 0.0
    %127 = vmatpush1.msra.mxu0 0.0
    %128 = vmatprep.subr.mxu0 0.0
    %129 = vmatpush1.msra.mxu0 0.0
    %130 = vmatprep.subr.mxu0 0.0
    %131 = vmatpush1.msra.mxu0 0.0
    %132 = vmatprep.subr.mxu0 0.0
    %133 = vmatpush1.msra.mxu0 0.0
    %134 = vmatprep.subr.mxu0 0.0
    %135 = vmatpush1.msra.mxu0 0.0
    %136 = vmatprep.subr.mxu0 0.0
    %137 = vmatpush1.msra.mxu0 0.0
    %138 = vmatprep.subr.mxu0 0.0
    %139 = vmatpush1.msra.mxu0 0.0
    %140 = vmatprep.subr.mxu0 0.0
    %141 = vmatpush1.msra.mxu0 0.0
    %142 = vmatprep.subr.mxu0 0.0
    %143 = vmatpush1.msra.mxu0 0.0
    %144 = vmatprep.subr.mxu0 0.0
    %145 = vmatpush1.msra.mxu0 0.0
    %146 = vmatprep.subr.mxu0 0.0
    %147 = vmatpush1.msra.mxu0 0.0
    %148 = vmatprep.subr.mxu0 0.0
    %149 = vmatpush1.msra.mxu0 0.0
    %150 = vmatprep.subr.mxu0 0.0
    %151 = vmatpush1.msra.mxu0 0.0
    %152 = vmatprep.subr.mxu0 0.0
    %153 = vmatpush1.msra.mxu0 0.0
    %154 = vmatprep.subr.mxu0 0.0
    %155 = vmatpush1.msra.mxu0 0.0
    %156 = vmatprep.subr.mxu0 0.0
    %157 = vmatpush1.msra.mxu0 0.0
    %158 = vmatprep.mubr.f32.mxu0 0.0
    %159 = vmatmul.mubr.f32.gmra.mrb[0].mxu0 %v93
    %v160 = vpop.f32.mrb[0].mxu0
    %v161 = vadd.f32 0.0, %v160
    %v162 = vpop.f32.mrb[0].mxu0
    %163 = vdwg.mxu0
    %164 = vmatprep.subr.mxu0 0.0
    %165 = vmatpush1.msra.mxu0 %v27
    %166 = vmatprep.subr.mxu0 0.0
    %167 = vmatpush1.msra.mxu0 %v28
    %168 = vmatprep.subr.mxu0 0.0
    %169 = vmatpush1.msra.mxu0 %v29
    %170 = vmatprep.subr.mxu0 0.0
    %171 = vmatpush1.msra.mxu0 %v30
    %172 = vmatprep.subr.mxu0 0.0
    %173 = vmatpush1.msra.mxu0 %v31
    %174 = vmatprep.subr.mxu0 0.0
    %175 = vmatpush1.msra.mxu0 %v32
    %176 = vmatprep.subr.mxu0 0.0
    %177 = vmatpush1.msra.mxu0 %v33
    %178 = vmatprep.subr.mxu0 0.0
    %179 = vmatpush1.msra.mxu0 %v34
    %180 = vmatprep.subr.mxu0 0.0
    %181 = vmatpush1.msra.mxu0 %v35
    %182 = vmatprep.subr.mxu0 0.0
    %183 = vmatpush1.msra.mxu0 %v36
    %184 = vmatprep.subr.mxu0 0.0
    %185 = vmatpush1.msra.mxu0 %v37
    %186 = vmatprep.subr.mxu0 0.0
    %187 = vmatpush1.msra.mxu0 %v38
    %188 = vmatprep.subr.mxu0 0.0
    %189 = vmatpush1.msra.mxu0 %v39
    %190 = vmatprep.subr.mxu0 0.0
    %191 = vmatpush1.msra.mxu0 %v40
    %192 = vmatprep.subr.mxu0 0.0
    %193 = vmatpush1.msra.mxu0 %v41
    %194 = vmatprep.subr.mxu0 0.0
    %195 = vmatpush1.msra.mxu0 %v42
    %196 = vmatprep.subr.mxu0 0.0
    %197 = vmatpush1.msra.mxu0 0.0
    %198 = vmatprep.subr.mxu0 0.0
    %199 = vmatpush1.msra.mxu0 0.0
    %200 = vmatprep.subr.mxu0 0.0
    %201 = vmatpush1.msra.mxu0 0.0
    %202 = vmatprep.subr.mxu0 0.0
    %203 = vmatpush1.msra.mxu0 0.0
    %204 = vmatprep.subr.mxu0 0.0
    %205 = vmatpush1.msra.mxu0 0.0
    %206 = vmatprep.subr.mxu0 0.0
    %207 = vmatpush1.msra.mxu0 0.0
    %208 = vmatprep.subr.mxu0 0.0
    %209 = vmatpush1.msra.mxu0 0.0
    %210 = vmatprep.subr.mxu0 0.0
    %211 = vmatpush1.msra.mxu0 0.0
    %212 = vmatprep.subr.mxu0 0.0
    %213 = vmatpush1.msra.mxu0 0.0
    %214 = vmatprep.subr.mxu0 0.0
    %215 = vmatpush1.msra.mxu0 0.0
    %216 = vmatprep.subr.mxu0 0.0
    %217 = vmatpush1.msra.mxu0 0.0
    %218 = vmatprep.subr.mxu0 0.0
    %219 = vmatpush1.msra.mxu0 0.0
    %220 = vmatprep.subr.mxu0 0.0
    %221 = vmatpush1.msra.mxu0 0.0
    %222 = vmatprep.subr.mxu0 0.0
    %223 = vmatpush1.msra.mxu0 0.0
    %224 = vmatprep.subr.mxu0 0.0
    %225 = vmatpush1.msra.mxu0 0.0
    %226 = vmatprep.subr.mxu0 0.0
    %227 = vmatpush1.msra.mxu0 0.0
    %228 = vmatprep.mubr.f32.mxu0 0.0
    %229 = vmatmul.mubr.f32.gmra.mrb[0].mxu0 %v91
    %v230 = vpop.f32.mrb[0].mxu0
    %v231 = vadd.f32 %v161, %v230
    %v232 = vpop.f32.mrb[0].mxu0
    %233 = vdwg.mxu0
    %v234 = vld [vmem:[%s3] sm:$0x1]
    %v236 = vlaneseq
    %v237 = vshrl.u32 %v236, 7
    %v238 = vsub.s32 0, %v237
    %v239 = vrot.slane %v234, %v238
    %v241 = vadd.f32 %v231, %v239
    %242 = vst [vmem:[#allocation2] sm:$0x3] %v241
    %v243 = vld [vmem:[%s1] sm:$0x3]
    %s244 = scalar_lea.vmem %s1, 2
    %v245 = vld [vmem:[%s244] sm:$0x3]
    %246 = vmatprep.subr.mxu0 0.0
    %247 = vmatpush1.msra.mxu0 %v75
    %248 = vmatprep.subr.mxu0 0.0
    %249 = vmatpush1.msra.mxu0 %v76
    %250 = vmatprep.subr.mxu0 0.0
    %251 = vmatpush1.msra.mxu0 %v77
    %252 = vmatprep.subr.mxu0 0.0
    %253 = vmatpush1.msra.mxu0 %v78
    %254 = vmatprep.subr.mxu0 0.0
    %255 = vmatpush1.msra.mxu0 %v79
    %256 = vmatprep.subr.mxu0 0.0
    %257 = vmatpush1.msra.mxu0 %v80
    %258 = vmatprep.subr.mxu0 0.0
    %259 = vmatpush1.msra.mxu0 %v81
    %260 = vmatprep.subr.mxu0 0.0
    %261 = vmatpush1.msra.mxu0 %v82
    %262 = vmatprep.subr.mxu0 0.0
    %263 = vmatpush1.msra.mxu0 %v83
    %264 = vmatprep.subr.mxu0 0.0
    %265 = vmatpush1.msra.mxu0 %v84
    %266 = vmatprep.subr.mxu0 0.0
    %267 = vmatpush1.msra.mxu0 %v85
    %268 = vmatprep.subr.mxu0 0.0
    %269 = vmatpush1.msra.mxu0 %v86
    %270 = vmatprep.subr.mxu0 0.0
    %271 = vmatpush1.msra.mxu0 %v87
    %272 = vmatprep.subr.mxu0 0.0
    %273 = vmatpush1.msra.mxu0 %v88
    %274 = vmatprep.subr.mxu0 0.0
    %275 = vmatpush1.msra.mxu0 %v89
    %276 = vmatprep.subr.mxu0 0.0
    %277 = vmatpush1.msra.mxu0 %v90
    %278 = vmatprep.subr.mxu0 0.0
    %279 = vmatpush1.msra.mxu0 0.0
    %280 = vmatprep.subr.mxu0 0.0
    %281 = vmatpush1.msra.mxu0 0.0
    %282 = vmatprep.subr.mxu0 0.0
    %283 = vmatpush1.msra.mxu0 0.0
    %284 = vmatprep.subr.mxu0 0.0
    %285 = vmatpush1.msra.mxu0 0.0
    %286 = vmatprep.subr.mxu0 0.0
    %287 = vmatpush1.msra.mxu0 0.0
    %288 = vmatprep.subr.mxu0 0.0
    %289 = vmatpush1.msra.mxu0 0.0
    %290 = vmatprep.subr.mxu0 0.0
    %291 = vmatpush1.msra.mxu0 0.0
    %292 = vmatprep.subr.mxu0 0.0
    %293 = vmatpush1.msra.mxu0 0.0
    %294 = vmatprep.subr.mxu0 0.0
    %295 = vmatpush1.msra.mxu0 0.0
    %296 = vmatprep.subr.mxu0 0.0
    %297 = vmatpush1.msra.mxu0 0.0
    %298 = vmatprep.subr.mxu0 0.0
    %299 = vmatpush1.msra.mxu0 0.0
    %300 = vmatprep.subr.mxu0 0.0
    %301 = vmatpush1.msra.mxu0 0.0
    %302 = vmatprep.subr.mxu0 0.0
    %303 = vmatpush1.msra.mxu0 0.0
    %304 = vmatprep.subr.mxu0 0.0
    %305 = vmatpush1.msra.mxu0 0.0
    %306 = vmatprep.subr.mxu0 0.0
    %307 = vmatpush1.msra.mxu0 0.0
    %308 = vmatprep.subr.mxu0 0.0
    %309 = vmatpush1.msra.mxu0 0.0
    %310 = vmatprep.mubr.f32.mxu0 0.0
    %311 = vmatmul.mubr.f32.gmra.mrb[0].mxu0 %v245
    %v312 = vpop.f32.mrb[0].mxu0
    %v313 = vadd.f32 0.0, %v312
    %v314 = vpop.f32.mrb[0].mxu0
    %315 = vdwg.mxu0
    %316 = vmatprep.subr.mxu0 0.0
    %317 = vmatpush1.msra.mxu0 %v59
    %318 = vmatprep.subr.mxu0 0.0
    %319 = vmatpush1.msra.mxu0 %v60
    %320 = vmatprep.subr.mxu0 0.0
    %321 = vmatpush1.msra.mxu0 %v61
    %322 = vmatprep.subr.mxu0 0.0
    %323 = vmatpush1.msra.mxu0 %v62
    %324 = vmatprep.subr.mxu0 0.0
    %325 = vmatpush1.msra.mxu0 %v63
    %326 = vmatprep.subr.mxu0 0.0
    %327 = vmatpush1.msra.mxu0 %v64
    %328 = vmatprep.subr.mxu0 0.0
    %329 = vmatpush1.msra.mxu0 %v65
    %330 = vmatprep.subr.mxu0 0.0
    %331 = vmatpush1.msra.mxu0 %v66
    %332 = vmatprep.subr.mxu0 0.0
    %333 = vmatpush1.msra.mxu0 %v67
    %334 = vmatprep.subr.mxu0 0.0
    %335 = vmatpush1.msra.mxu0 %v68
    %336 = vmatprep.subr.mxu0 0.0
    %337 = vmatpush1.msra.mxu0 %v69
    %338 = vmatprep.subr.mxu0 0.0
    %339 = vmatpush1.msra.mxu0 %v70
    %340 = vmatprep.subr.mxu0 0.0
    %341 = vmatpush1.msra.mxu0 %v71
    %342 = vmatprep.subr.mxu0 0.0
    %343 = vmatpush1.msra.mxu0 %v72
    %344 = vmatprep.subr.mxu0 0.0
    %345 = vmatpush1.msra.mxu0 %v73
    %346 = vmatprep.subr.mxu0 0.0
    %347 = vmatpush1.msra.mxu0 %v74
    %348 = vmatprep.subr.mxu0 0.0
    %349 = vmatpush1.msra.mxu0 0.0
    %350 = vmatprep.subr.mxu0 0.0
    %351 = vmatpush1.msra.mxu0 0.0
    %352 = vmatprep.subr.mxu0 0.0
    %353 = vmatpush1.msra.mxu0 0.0
    %354 = vmatprep.subr.mxu0 0.0
    %355 = vmatpush1.msra.mxu0 0.0
    %356 = vmatprep.subr.mxu0 0.0
    %357 = vmatpush1.msra.mxu0 0.0
    %358 = vmatprep.subr.mxu0 0.0
    %359 = vmatpush1.msra.mxu0 0.0
    %360 = vmatprep.subr.mxu0 0.0
    %361 = vmatpush1.msra.mxu0 0.0
    %362 = vmatprep.subr.mxu0 0.0
    %363 = vmatpush1.msra.mxu0 0.0
    %364 = vmatprep.subr.mxu0 0.0
    %365 = vmatpush1.msra.mxu0 0.0
    %366 = vmatprep.subr.mxu0 0.0
    %367 = vmatpush1.msra.mxu0 0.0
    %368 = vmatprep.subr.mxu0 0.0
    %369 = vmatpush1.msra.mxu0 0.0
    %370 = vmatprep.subr.mxu0 0.0
    %371 = vmatpush1.msra.mxu0 0.0
    %372 = vmatprep.subr.mxu0 0.0
    %373 = vmatpush1.msra.mxu0 0.0
    %374 = vmatprep.subr.mxu0 0.0
    %375 = vmatpush1.msra.mxu0 0.0
    %376 = vmatprep.subr.mxu0 0.0
    %377 = vmatpush1.msra.mxu0 0.0
    %378 = vmatprep.subr.mxu0 0.0
    %379 = vmatpush1.msra.mxu0 0.0
    %380 = vmatprep.mubr.f32.mxu0 0.0
    %381 = vmatmul.mubr.f32.gmra.mrb[0].mxu0 %v243
    %v382 = vpop.f32.mrb[0].mxu0
    %v383 = vadd.f32 %v313, %v382
    %v384 = vpop.f32.mrb[0].mxu0
    %385 = vdwg.mxu0
    %v386 = vld [vmem:[%s5] sm:$0x1]
    %v388 = vlaneseq
    %v389 = vshrl.u32 %v388, 7
    %v390 = vsub.s32 0, %v389
    %v391 = vrot.slane %v386, %v390
    %v393 = vadd.f32 %v383, %v391
    %394 = vst [vmem:[#allocation4] sm:$0x3] %v393
    // Predicated region
    $region26: #{encoder_forward.5} parent=1 // pred_check
      _
    $region27: #{encoder_forward.5} parent=1 // pred_check_branch
      %396 = sbr.rel (0) target = $region29
    $region28: #{encoder_forward.5} parent=1 // pred_region
      %s398 = ssub.s32 32, 32
      %399 = vsyncadd [#allocation3], %s398
      %s401 = sshll.u32 [#allocation2], 4
      %s402 = int_to_ptr.vmem [resolvable:$true] %s401
      %404 = dma.vmem_to_hbm [thread:$0]  %s402, 32, %s6, [#allocation3]
    $region29: #{encoder_forward.5} parent=1 // pred_fallthru
      _
    // Predicated region
    $region30: #{encoder_forward.5} parent=1 // pred_check
      _
    $region31: #{encoder_forward.5} parent=1 // pred_check_branch
      %406 = sbr.rel (0) target = $region33
    $region32: #{encoder_forward.5} parent=1 // pred_region
      %s408 = ssub.s32 32, 32
      %409 = vsyncadd [#allocation5], %s408
      %s411 = sshll.u32 [#allocation4], 4
      %s412 = int_to_ptr.vmem [resolvable:$true] %s411
      %414 = dma.vmem_to_hbm [thread:$0]  %s412, 32, %s7, [#allocation5]
    $region33: #{encoder_forward.5} parent=1 // pred_fallthru
      _
    // Predicated region
    $region34: #{encoder_forward.5} parent=1 // pred_check
      _
    $region35: #{encoder_forward.5} parent=1 // pred_check_branch
      %416 = sbr.rel (0) target = $region37
    $region36: #{encoder_forward.5} parent=1 // pred_region
      %417 = dma.done [#allocation3], 32
    $region37: #{encoder_forward.5} parent=1 // pred_fallthru
      _
    // Predicated region
    $region38: #{encoder_forward.5} parent=1 // pred_check
      _
    $region39: #{encoder_forward.5} parent=1 // pred_check_branch
      %419 = sbr.rel (0) target = $region41
    $region40: #{encoder_forward.5} parent=1 // pred_region
      %420 = dma.done [#allocation5], 32
    $region41: #{encoder_forward.5} parent=1 // pred_fallthru
      _
    %421 = vsyncpa [#allocation3], 1
    %422 = vsyncpa [#allocation5], 1

// kernel: encoder_forward.4
$region0: #{encoder_forward.4}
  #allocation0 [shape = 'u32[]', space=smem, size = 0x4, offset = 0x4, fixed_abs, tag = 'smem constant byte address 0x4 - core index']
  #allocation1 [shape = 'u32[144,128]{1,0:T(1,128)}', space=vmem, size = 0x12000, scoped, tag = 'internal scratch']
  #allocation2 [shape = 'f32[2,128]{1,0:T(2,128)}', space=vmem, size = 0x400, scoped, tag = 'scratch operand']
  #allocation3 [shape = 'f32[2,128]{1,0:T(2,128)}', space=vmem, size = 0x400, scoped, tag = 'scratch operand']
  %s0 = inlined_call_operand.vmem [shape: f32[2,8,2,512], index: 0, kind: input, shape index: {}]
  %s1 = inlined_call_operand.vmem [shape: f32[2,128,512], index: 1, kind: input, shape index: {}]
  %s2 = inlined_call_operand.hbm [shape: f32[8,2,256], index: 2, kind: output, shape index: {0}]
  %s3 = inlined_call_operand.vmem [shape: f32[2,2,128], index: 3, kind: output, shape index: {1}]
  %s4 = inlined_call_operand.vmem [shape: f32[2,2,128], index: 4, kind: output, shape index: {2}]
  %5 = xla_tuple %s2, %s3, %s4
  %s6 = sld [smem:[#allocation0]]
  $region65: #{encoder_forward.4} parent=0
    _
  %s8 = ssub.s32 1, %s6
  %s9 = scalar_select 0, %s8, %s6
  $region1: #{encoder_forward.4} parent=0
    #allocation4 [shape = 'u8[16384]{0}', space=vmem, size = 0x4000, scoped, tag = 'output window, operand 0']
    #allocation5 [shape = 's32[2]{0}', space=sflag, size = 0x8, scoped, tag = 'scoped memory for encoder_forward.4']
    %10 = vsyncpa [#allocation5], 0
    %s11 = scalar_lea.sflag [#allocation5], 1
    %12 = vsyncpa %s11, 0
    loop: start=0, step=1, limit=4
    $region2: #{encoder_forward.4} parent=1 // loop_pre_header
      _
    $region3: #{encoder_forward.4} parent=1 // loop_header
      %s14 = sphi 0, %s18
      %p15 = scmp.ge.s32.totalorder %s14, 4
      %s21 = sphi 0, %s33
      %s22 = sphi 0, %s29
      %s23 = sphi 0, %s21
      %s24 = sphi 0, %s22
      %s25 = sphi 0, %s23
      %s26 = sphi 0, %s24
      %s48 = sphi 0, %s50
      %s51 = sphi 0, %s48
      %s52 = sphi 0, %s51
      %s68 = sphi 0, %s52
      %s74 = sphi 0, %s76
      %s77 = sphi 0, %s74
      %s78 = sphi 0, %s77
      %s94 = sphi 0, %s78
      %s112 = sphi 0, %s114
      %s115 = sphi 0, %s112
      %s116 = sphi 0, %s115
      %s132 = sphi 0, %s116
      %s138 = sphi 0, %s140
      %s141 = sphi 0, %s138
      %s142 = sphi 0, %s141
      %s158 = sphi 0, %s142
      %s164 = sphi 0, %s166
      %s167 = sphi 0, %s164
      %s168 = sphi 0, %s167
      %s184 = sphi 0, %s168
    $region4: #{encoder_forward.4} parent=1 // loop_header_branch
      %17 = sbr.rel (%p15) target = $region8
    $region5: #{encoder_forward.4} parent=1 // loop_body
      %s19 = ssub.s32 %s14, 1
      %s20 = ssub.s32 %s14, 2
      %s27 = sadd.s32 1, %s22
      %p28 = scmp.ge.s32.totalorder %s27, 1
      %s29 = scalar_select %p28, 0, %s27
      %s30 = sadd.s32 1, %s21
      %s31 = scalar_select %p28, %s30, %s21
      %p32 = scmp.ge.s32.totalorder %s31, 2
      %s33 = scalar_select %p32, 0, %s31
      %s34 = ssub.s32 1, %s21
      %s35 = smul.u32 %s34, %s22
      %s36 = ssub.s32 0, %s22
      %s37 = smul.u32 %s21, %s36
      %s38 = sadd.s32 %s35, %s37
      %s39 = ssub.s32 1, %s33
      %s40 = smul.u32 %s39, %s29
      %s41 = ssub.s32 0, %s29
      %s42 = smul.u32 %s33, %s41
      %s43 = sadd.s32 %s40, %s42
      %s44 = ssub.s32 %s21, %s33
      %s45 = ssub.s32 %s38, %s43
      %s46 = sor.u32 %s44, %s45
      %p47 = scmp.eq.s32.totalorder %s46, 0
      %s49 = sadd.s32 %s48, 1
      %s50 = scalar_select %p47, %s48, %s49
      %p53 = pneg %p47
      %p54 = scmp.eq.s32.totalorder %s14, 1
      %p55 = por %p53, %p54
      %p56 = scmp.ne.s32.totalorder %s48, %s51
      %p57 = scmp.eq.s32.totalorder %s14, 0
      %p58 = por %p56, %p57
      %p59 = scmp.ne.s32.totalorder %s48, %s51
      %p60 = scmp.eq.s32.totalorder %s19, 1
      %p61 = por %p59, %p60
      %p62 = scmp.ne.s32.totalorder %s51, %s52
      %p63 = scmp.eq.s32.totalorder %s19, 0
      %p64 = por %p62, %p63
      %p65 = scmp.ne.s32.totalorder %s51, %s52
      %p66 = scmp.eq.s32.totalorder %s20, 1
      %p67 = por %p65, %p66
      %p69 = scmp.ne.s32.totalorder %s52, %s68
      %p70 = scmp.eq.s32.totalorder %s20, 0
      %p71 = por %p69, %p70
      %s72 = ssub.s32 %s21, %s33
      %p73 = scmp.eq.s32.totalorder %s72, 0
      %s75 = sadd.s32 %s74, 1
      %s76 = scalar_select %p73, %s74, %s75
      %p79 = pneg %p73
      %p80 = scmp.eq.s32.totalorder %s14, 1
      %p81 = por %p79, %p80
      %p82 = scmp.ne.s32.totalorder %s74, %s77
      %p83 = scmp.eq.s32.totalorder %s14, 0
      %p84 = por %p82, %p83
      %p85 = scmp.ne.s32.totalorder %s74, %s77
      %p86 = scmp.eq.s32.totalorder %s19, 1
      %p87 = por %p85, %p86
      %p88 = scmp.ne.s32.totalorder %s77, %s78
      %p89 = scmp.eq.s32.totalorder %s19, 0
      %p90 = por %p88, %p89
      %p91 = scmp.ne.s32.totalorder %s77, %s78
      %p92 = scmp.eq.s32.totalorder %s20, 1
      %p93 = por %p91, %p92
      %p95 = scmp.ne.s32.totalorder %s78, %s94
      %p96 = scmp.eq.s32.totalorder %s20, 0
      %p97 = por %p95, %p96
      %s98 = ssub.s32 1, %s21
      %s99 = smul.u32 %s98, %s22
      %s100 = ssub.s32 0, %s22
      %s101 = smul.u32 %s21, %s100
      %s102 = sadd.s32 %s99, %s101
      %s103 = ssub.s32 1, %s33
      %s104 = smul.u32 %s103, %s29
      %s105 = ssub.s32 0, %s29
      %s106 = smul.u32 %s33, %s105
      %s107 = sadd.s32 %s104, %s106
      %s108 = ssub.s32 %s102, %s107
      %s109 = ssub.s32 %s21, %s33
      %s110 = sor.u32 %s108, %s109
      %p111 = scmp.eq.s32.totalorder %s110, 0
      %s113 = sadd.s32 %s112, 1
      %s114 = scalar_select %p111, %s112, %s113
      %p117 = pneg %p111
      %p118 = scmp.eq.s32.totalorder %s14, 1
      %p119 = por %p117, %p118
      %p120 = scmp.ne.s32.totalorder %s112, %s115
      %p121 = scmp.eq.s32.totalorder %s14, 0
      %p122 = por %p120, %p121
      %p123 = scmp.ne.s32.totalorder %s112, %s115
      %p124 = scmp.eq.s32.totalorder %s19, 1
      %p125 = por %p123, %p124
      %p126 = scmp.ne.s32.totalorder %s115, %s116
      %p127 = scmp.eq.s32.totalorder %s19, 0
      %p128 = por %p126, %p127
      %p129 = scmp.ne.s32.totalorder %s115, %s116
      %p130 = scmp.eq.s32.totalorder %s20, 1
      %p131 = por %p129, %p130
      %p133 = scmp.ne.s32.totalorder %s116, %s132
      %p134 = scmp.eq.s32.totalorder %s20, 0
      %p135 = por %p133, %p134
      %s136 = ssub.s32 %s21, %s33
      %p137 = scmp.eq.s32.totalorder %s136, 0
      %s139 = sadd.s32 %s138, 1
      %s140 = scalar_select %p137, %s138, %s139
      %p143 = pneg %p137
      %p144 = scmp.eq.s32.totalorder %s14, 1
      %p145 = por %p143, %p144
      %p146 = scmp.ne.s32.totalorder %s138, %s141
      %p147 = scmp.eq.s32.totalorder %s14, 0
      %p148 = por %p146, %p147
      %p149 = scmp.ne.s32.totalorder %s138, %s141
      %p150 = scmp.eq.s32.totalorder %s19, 1
      %p151 = por %p149, %p150
      %p152 = scmp.ne.s32.totalorder %s141, %s142
      %p153 = scmp.eq.s32.totalorder %s19, 0
      %p154 = por %p152, %p153
      %p155 = scmp.ne.s32.totalorder %s141, %s142
      %p156 = scmp.eq.s32.totalorder %s20, 1
      %p157 = por %p155, %p156
      %p159 = scmp.ne.s32.totalorder %s142, %s158
      %p160 = scmp.eq.s32.totalorder %s20, 0
      %p161 = por %p159, %p160
      %s162 = ssub.s32 %s21, %s33
      %p163 = scmp.eq.s32.totalorder %s162, 0
      %s165 = sadd.s32 %s164, 1
      %s166 = scalar_select %p163, %s164, %s165
      %p169 = pneg %p163
      %p170 = scmp.eq.s32.totalorder %s14, 1
      %p171 = por %p169, %p170
      %p172 = scmp.ne.s32.totalorder %s164, %s167
      %p173 = scmp.eq.s32.totalorder %s14, 0
      %p174 = por %p172, %p173
      %p175 = scmp.ne.s32.totalorder %s164, %s167
      %p176 = scmp.eq.s32.totalorder %s19, 1
      %p177 = por %p175, %p176
      %p178 = scmp.ne.s32.totalorder %s167, %s168
      %p179 = scmp.eq.s32.totalorder %s19, 0
      %p180 = por %p178, %p179
      %p181 = scmp.ne.s32.totalorder %s167, %s168
      %p182 = scmp.eq.s32.totalorder %s20, 1
      %p183 = por %p181, %p182
      %p185 = scmp.ne.s32.totalorder %s168, %s184
      %p186 = scmp.eq.s32.totalorder %s20, 0
      %p187 = por %p185, %p186
      %p188 = scmp.le.s32.totalorder 1, %s14
      %p189 = scmp.lt.s32.totalorder %s14, 3
      %p190 = pnand %p188, %p189
      %p191 = pneg %p190
      // Predicated region
      $region9: #{encoder_forward.4} parent=5 // pred_check
        _
      $region10: #{encoder_forward.4} parent=5 // pred_check_branch
        %193 = sbr.rel (%p190) target = $region12
      $region11: #{encoder_forward.4} parent=5 // pred_region
        %s194 = ssub.s32 %s14, 1
      $region12: #{encoder_forward.4} parent=5 // pred_fallthru
        _
      %p195 = scmp.lt.s32.totalorder %s14, 2
      // Predicated region
      $region13: #{encoder_forward.4} parent=5 // pred_check
        %p196 = pneg %p195
      $region14: #{encoder_forward.4} parent=5 // pred_check_branch
        %198 = sbr.rel (%p196) target = $region16
      $region15: #{encoder_forward.4} parent=5 // pred_region
        // Predicated region
        $region17: #{encoder_forward.4} parent=15 // pred_check
          %p199 = pneg %p58
        $region18: #{encoder_forward.4} parent=15 // pred_check_branch
          %201 = sbr.rel (%p199) target = $region20
        $region19: #{encoder_forward.4} parent=15 // pred_region
          %s202 = ssub.s32 1, %s21
          %s203 = smul.u32 %s202, %s22
          %s204 = ssub.s32 0, %s22
          %s205 = smul.u32 %s21, %s204
          %s206 = sadd.s32 %s203, %s205
          %s207 = smul.u32 8, %s206
          %p208 = scmp.lt.s32.totalorder %s21, 1
          %s209 = scalar_select %p208, %s21, 1
          %p210 = scmp.lt.s32.totalorder %s207, 7
          %s211 = scalar_select %p210, %s207, 7
          %s212 = smul.addr %s211, 4
          %s213 = smul.addr %s209, 32
          %s214 = sadd.s32 %s212, %s213
          %s215 = smul.addr %s214, 2
          %s216 = scalar_lea.vmem %s0, %s215
          %s217 = ssub.s32 1, %s21
          %s218 = smul.u32 %s217, %s22
          %s219 = ssub.s32 0, %s22
          %s220 = smul.u32 %s21, %s219
          %s221 = sadd.s32 %s218, %s220
          %s222 = smul.u32 8, %s221
        $region20: #{encoder_forward.4} parent=15 // pred_fallthru
          _
        // Predicated region
        $region21: #{encoder_forward.4} parent=15 // pred_check
          %p223 = pneg %p84
        $region22: #{encoder_forward.4} parent=15 // pred_check_branch
          %225 = sbr.rel (%p223) target = $region24
        $region23: #{encoder_forward.4} parent=15 // pred_region
          %p226 = scmp.lt.s32.totalorder %s21, 1
          %s227 = scalar_select %p226, %s21, 1
          %s228 = smul.addr %s227, 64
          %s229 = smul.addr %s228, 8
          %s230 = scalar_lea.vmem %s1, %s229
        $region24: #{encoder_forward.4} parent=15 // pred_fallthru
          _
      $region16: #{encoder_forward.4} parent=5 // pred_fallthru
        _
      %p231 = scmp.le.s32.totalorder 1, %s14
      %p232 = scmp.lt.s32.totalorder %s14, 3
      %p233 = pnand %p231, %p232
      %p234 = pneg %p233
      // Predicated region
      $region25: #{encoder_forward.4} parent=5 // pred_check
        _
      $region26: #{encoder_forward.4} parent=5 // pred_check_branch
        %236 = sbr.rel (%p233) target = $region28
      $region27: #{encoder_forward.4} parent=5 // pred_region
        %s237 = ssub.s32 %s14, 1
        %s238 = ssub.s32 1, %s23
        %s239 = smul.u32 %s238, %s24
        %s240 = ssub.s32 0, %s24
        %s241 = smul.u32 %s23, %s240
        %s242 = sadd.s32 %s239, %s241
        %s243 = smul.u32 8, %s242
        %p244 = scmp.lt.s32.totalorder %s23, 1
        %s245 = scalar_select %p244, %s23, 1
        %p246 = scmp.lt.s32.totalorder %s243, 7
        %s247 = scalar_select %p246, %s243, 7
        %s248 = smul.addr %s247, 4
        %s249 = smul.addr %s245, 32
        %s250 = sadd.s32 %s248, %s249
        %s251 = smul.addr %s250, 2
        %s252 = scalar_lea.vmem %s0, %s251
        %p253 = pneg %p64
        %p254 = pneg %p61
        %p255 = scmp.lt.s32.totalorder %s23, 1
        %s256 = scalar_select %p255, %s23, 1
        %s257 = smul.addr %s256, 64
        %s258 = smul.addr %s257, 8
        %s259 = scalar_lea.vmem %s1, %s258
        %p260 = pneg %p90
        %p261 = pneg %p87
        %p262 = pneg %p128
        %p263 = pneg %p125
        %s264 = sand.u32 %s115, 1
        %s265 = scalar_lea.sflag [#allocation5], %s264
        %s266 = sand.u32 %s115, 1
        %s267 = smul.addr %s266, 16
        %s268 = scalar_lea.vmem [#allocation4], %s267
        %p269 = pneg %p154
        %p270 = pneg %p151
        %p271 = scmp.lt.s32.totalorder %s23, 1
        %s272 = scalar_select %p271, %s23, 1
        %s273 = smul.addr %s272, 2
        %s274 = scalar_lea.vmem %s3, %s273
        %p275 = pneg %p180
        %p276 = pneg %p177
        %p277 = scmp.lt.s32.totalorder %s23, 1
        %s278 = scalar_select %p277, %s23, 1
        %s279 = smul.addr %s278, 2
        %s280 = scalar_lea.vmem %s4, %s279
        %s281 = ssub.s32 1, %s23
        %s282 = smul.u32 %s281, %s24
        %s283 = ssub.s32 0, %s24
        %s284 = smul.u32 %s23, %s283
        %s285 = sadd.s32 %s282, %s284
        %s286 = smul.u32 8, %s285
        %p287 = scmp.lt.s32.totalorder %s23, 1
        %s288 = scalar_select %p287, %s23, 1
        %p289 = scmp.lt.s32.totalorder %s286, 7
        %s290 = scalar_select %p289, %s286, 7
        %s291 = smul.addr %s290, 4
        %s292 = smul.addr %s288, 32
        %s293 = sadd.s32 %s291, %s292
        %s294 = smul.addr %s293, 2
        %s295 = scalar_lea.vmem %s0, %s294
        %s296 = ssub.s32 1, %s23
        %s297 = smul.u32 %s296, %s24
        %s298 = ssub.s32 0, %s24
        %s299 = smul.u32 %s23, %s298
        %s300 = sadd.s32 %s297, %s299
        %s301 = smul.u32 8, %s300
        %p302 = scmp.lt.s32.totalorder %s23, 1
        %s303 = scalar_select %p302, %s23, 1
        %s304 = smul.addr %s303, 64
        %s305 = smul.addr %s304, 8
        %s306 = scalar_lea.vmem %s1, %s305
        %s307 = ssub.s32 1, %s23
        %s308 = smul.u32 %s307, %s24
        %s309 = ssub.s32 0, %s24
        %s310 = smul.u32 %s23, %s309
        %s311 = sadd.s32 %s308, %s310
        %s312 = smul.u32 8, %s311
        %p313 = scmp.lt.s32.totalorder %s23, 1
        %s314 = scalar_select %p313, %s23, 1
        %s315 = smul.addr %s314, 2
        %s316 = scalar_lea.vmem %s3, %s315
        %p317 = scmp.lt.s32.totalorder %s23, 1
        %s318 = scalar_select %p317, %s23, 1
        %s319 = smul.addr %s318, 2
        %s320 = scalar_lea.vmem %s4, %s319
        %p321 = scmp.eq.s32.totalorder %s24, 0
        // Predicated region
        $region29: #{encoder_forward.4} parent=27 // pred_check
          %p322 = pneg %p321
        $region30: #{encoder_forward.4} parent=27 // pred_check_branch
          %324 = sbr.rel (%p322) target = $region32
        $region31: #{encoder_forward.4} parent=27 // pred_region
          %325 = vst [vmem:[#allocation2] sm:$0x3] 0.0
          %326 = vst [vmem:[#allocation3] sm:$0x3] 0.0
        $region32: #{encoder_forward.4} parent=27 // pred_fallthru
          _
        %v327 = vld [vmem:[%s306] sm:$0xff]
        %v328 = vld [vmem:[%s306 + $0x8] sm:$0xff]
        %v329 = vld [vmem:[%s306 + $0x10] sm:$0xff]
        %v330 = vld [vmem:[%s306 + $0x18] sm:$0xff]
        %v331 = vld [vmem:[%s306 + $0x20] sm:$0xff]
        %v332 = vld [vmem:[%s306 + $0x28] sm:$0xff]
        %v333 = vld [vmem:[%s306 + $0x30] sm:$0xff]
        %v334 = vld [vmem:[%s306 + $0x38] sm:$0xff]
        %v335 = vld [vmem:[%s306 + $0x40] sm:$0xff]
        %v336 = vld [vmem:[%s306 + $0x48] sm:$0xff]
        %v337 = vld [vmem:[%s306 + $0x50] sm:$0xff]
        %v338 = vld [vmem:[%s306 + $0x58] sm:$0xff]
        %v339 = vld [vmem:[%s306 + $0x60] sm:$0xff]
        %v340 = vld [vmem:[%s306 + $0x68] sm:$0xff]
        %v341 = vld [vmem:[%s306 + $0x70] sm:$0xff]
        %v342 = vld [vmem:[%s306 + $0x78] sm:$0xff]
        %v343 = vld [vmem:[%s306 + $0x80] sm:$0xff]
        %v344 = vld [vmem:[%s306 + $0x88] sm:$0xff]
        %v345 = vld [vmem:[%s306 + $0x90] sm:$0xff]
        %v346 = vld [vmem:[%s306 + $0x98] sm:$0xff]
        %v347 = vld [vmem:[%s306 + $0xa0] sm:$0xff]
        %v348 = vld [vmem:[%s306 + $0xa8] sm:$0xff]
        %v349 = vld [vmem:[%s306 + $0xb0] sm:$0xff]
        %v350 = vld [vmem:[%s306 + $0xb8] sm:$0xff]
        %v351 = vld [vmem:[%s306 + $0xc0] sm:$0xff]
        %v352 = vld [vmem:[%s306 + $0xc8] sm:$0xff]
        %v353 = vld [vmem:[%s306 + $0xd0] sm:$0xff]
        %v354 = vld [vmem:[%s306 + $0xd8] sm:$0xff]
        %v355 = vld [vmem:[%s306 + $0xe0] sm:$0xff]
        %v356 = vld [vmem:[%s306 + $0xe8] sm:$0xff]
        %v357 = vld [vmem:[%s306 + $0xf0] sm:$0xff]
        %v358 = vld [vmem:[%s306 + $0xf8] sm:$0xff]
        %v359 = vld [vmem:[%s306 + $0x100] sm:$0xff]
        %v360 = vld [vmem:[%s306 + $0x108] sm:$0xff]
        %v361 = vld [vmem:[%s306 + $0x110] sm:$0xff]
        %v362 = vld [vmem:[%s306 + $0x118] sm:$0xff]
        %v363 = vld [vmem:[%s306 + $0x120] sm:$0xff]
        %v364 = vld [vmem:[%s306 + $0x128] sm:$0xff]
        %v365 = vld [vmem:[%s306 + $0x130] sm:$0xff]
        %v366 = vld [vmem:[%s306 + $0x138] sm:$0xff]
        %v367 = vld [vmem:[%s306 + $0x140] sm:$0xff]
        %v368 = vld [vmem:[%s306 + $0x148] sm:$0xff]
        %v369 = vld [vmem:[%s306 + $0x150] sm:$0xff]
        %v370 = vld [vmem:[%s306 + $0x158] sm:$0xff]
        %v371 = vld [vmem:[%s306 + $0x160] sm:$0xff]
        %v372 = vld [vmem:[%s306 + $0x168] sm:$0xff]
        %v373 = vld [vmem:[%s306 + $0x170] sm:$0xff]
        %v374 = vld [vmem:[%s306 + $0x178] sm:$0xff]
        %v375 = vld [vmem:[%s306 + $0x180] sm:$0xff]
        %v376 = vld [vmem:[%s306 + $0x188] sm:$0xff]
        %v377 = vld [vmem:[%s306 + $0x190] sm:$0xff]
        %v378 = vld [vmem:[%s306 + $0x198] sm:$0xff]
        %v379 = vld [vmem:[%s306 + $0x1a0] sm:$0xff]
        %v380 = vld [vmem:[%s306 + $0x1a8] sm:$0xff]
        %v381 = vld [vmem:[%s306 + $0x1b0] sm:$0xff]
        %v382 = vld [vmem:[%s306 + $0x1b8] sm:$0xff]
        %v383 = vld [vmem:[%s306 + $0x1c0] sm:$0xff]
        %v384 = vld [vmem:[%s306 + $0x1c8] sm:$0xff]
        %v385 = vld [vmem:[%s306 + $0x1d0] sm:$0xff]
        %v386 = vld [vmem:[%s306 + $0x1d8] sm:$0xff]
        %v387 = vld [vmem:[%s306 + $0x1e0] sm:$0xff]
        %v388 = vld [vmem:[%s306 + $0x1e8] sm:$0xff]
        %v389 = vld [vmem:[%s306 + $0x1f0] sm:$0xff]
        %v390 = vld [vmem:[%s306 + $0x1f8] sm:$0xff]
        %v391 = vld [vmem:[%s295] sm:$0xff]
        %v392 = vld [vmem:[%s295 + $0x8] sm:$0xff]
        %v393 = vld [vmem:[%s295 + $0x10] sm:$0xff]
        %v394 = vld [vmem:[%s295 + $0x18] sm:$0xff]
        %v395 = vld [vmem:[%s295 + $0x20] sm:$0xff]
        %v396 = vld [vmem:[%s295 + $0x28] sm:$0xff]
        %v397 = vld [vmem:[%s295 + $0x30] sm:$0xff]
        %v398 = vld [vmem:[%s295 + $0x38] sm:$0xff]
        %v399 = vld [vmem:[#allocation2] sm:$0x3]
        %v400 = vld [vmem:[#allocation3] sm:$0x3]
        %p401 = scmp.eq.s32.totalorder %s23, 0
        %s402 = scalar_select %p401, 1, 0
        %v403 = vstv %s402
        %vm404 = vcmp.eq.s32.totalorder %v403, 1
        %v405 = vsel %vm404, %v391, %v398
        %406 = vmatprep.subr.mxu0 %v328
        %407 = vmatpush1.msra.mxu0 %v327
        %408 = vmatprep.subr.mxu0 %v332
        %409 = vmatpush1.msra.mxu0 %v331
        %410 = vmatprep.subr.mxu0 %v336
        %411 = vmatpush1.msra.mxu0 %v335
        %412 = vmatprep.subr.mxu0 %v340
        %413 = vmatpush1.msra.mxu0 %v339
        %414 = vmatprep.subr.mxu0 %v344
        %415 = vmatpush1.msra.mxu0 %v343
        %416 = vmatprep.subr.mxu0 %v348
        %417 = vmatpush1.msra.mxu0 %v347
        %418 = vmatprep.subr.mxu0 %v352
        %419 = vmatpush1.msra.mxu0 %v351
        %420 = vmatprep.subr.mxu0 %v356
        %421 = vmatpush1.msra.mxu0 %v355
        %422 = vmatprep.subr.mxu0 %v360
        %423 = vmatpush1.msra.mxu0 %v359
        %424 = vmatprep.subr.mxu0 %v364
        %425 = vmatpush1.msra.mxu0 %v363
        %426 = vmatprep.subr.mxu0 %v368
        %427 = vmatpush1.msra.mxu0 %v367
        %428 = vmatprep.subr.mxu0 %v372
        %429 = vmatpush1.msra.mxu0 %v371
        %430 = vmatprep.subr.mxu0 %v376
        %431 = vmatpush1.msra.mxu0 %v375
        %432 = vmatprep.subr.mxu0 %v380
        %433 = vmatpush1.msra.mxu0 %v379
        %434 = vmatprep.subr.mxu0 %v384
        %435 = vmatpush1.msra.mxu0 %v383
        %436 = vmatprep.subr.mxu0 %v388
        %437 = vmatpush1.msra.mxu0 %v387
        %438 = vmatprep.subr.mxu0 0.0
        %439 = vmatpush1.msra.mxu0 0.0
        %440 = vmatprep.subr.mxu0 0.0
        %441 = vmatpush1.msra.mxu0 0.0
        %442 = vmatprep.subr.mxu0 0.0
        %443 = vmatpush1.msra.mxu0 0.0
        %444 = vmatprep.subr.mxu0 0.0
        %445 = vmatpush1.msra.mxu0 0.0
        %446 = vmatprep.subr.mxu0 0.0
        %447 = vmatpush1.msra.mxu0 0.0
        %448 = vmatprep.subr.mxu0 0.0
        %449 = vmatpush1.msra.mxu0 0.0
        %450 = vmatprep.subr.mxu0 0.0
        %451 = vmatpush1.msra.mxu0 0.0
        %452 = vmatprep.subr.mxu0 0.0
        %453 = vmatpush1.msra.mxu0 0.0
        %454 = vmatprep.subr.mxu0 0.0
        %455 = vmatpush1.msra.mxu0 0.0
        %456 = vmatprep.subr.mxu0 0.0
        %457 = vmatpush1.msra.mxu0 0.0
        %458 = vmatprep.subr.mxu0 0.0
        %459 = vmatpush1.msra.mxu0 0.0
        %460 = vmatprep.subr.mxu0 0.0
        %461 = vmatpush1.msra.mxu0 0.0
        %462 = vmatprep.subr.mxu0 0.0
        %463 = vmatpush1.msra.mxu0 0.0
        %464 = vmatprep.subr.mxu0 0.0
        %465 = vmatpush1.msra.mxu0 0.0
        %466 = vmatprep.subr.mxu0 0.0
        %467 = vmatpush1.msra.mxu0 0.0
        %468 = vmatprep.subr.mxu0 0.0
        %469 = vmatpush1.msra.mxu0 0.0
        %470 = vmatprep.mubr.f32.mxu0 0.0
        %471 = vmatmul.mubr.f32.gmra.mrb[0].mxu0 %v399
        %v472 = vpop.f32.mrb[0].mxu0
        %v473 = vadd.f32 0.0, %v472
        %v474 = vpop.f32.mrb[0].mxu0
        %v475 = vadd.f32 0.0, %v474
        %476 = vdwg.mxu0
        %477 = vmatprep.subr.mxu0 %v330
        %478 = vmatpush1.msra.mxu0 %v329
        %479 = vmatprep.subr.mxu0 %v334
        %480 = vmatpush1.msra.mxu0 %v333
        %481 = vmatprep.subr.mxu0 %v338
        %482 = vmatpush1.msra.mxu0 %v337
        %483 = vmatprep.subr.mxu0 %v342
        %484 = vmatpush1.msra.mxu0 %v341
        %485 = vmatprep.subr.mxu0 %v346
        %486 = vmatpush1.msra.mxu0 %v345
        %487 = vmatprep.subr.mxu0 %v350
        %488 = vmatpush1.msra.mxu0 %v349
        %489 = vmatprep.subr.mxu0 %v354
        %490 = vmatpush1.msra.mxu0 %v353
        %491 = vmatprep.subr.mxu0 %v358
        %492 = vmatpush1.msra.mxu0 %v357
        %493 = vmatprep.subr.mxu0 %v362
        %494 = vmatpush1.msra.mxu0 %v361
        %495 = vmatprep.subr.mxu0 %v366
        %496 = vmatpush1.msra.mxu0 %v365
        %497 = vmatprep.subr.mxu0 %v370
        %498 = vmatpush1.msra.mxu0 %v369
        %499 = vmatprep.subr.mxu0 %v374
        %500 = vmatpush1.msra.mxu0 %v373
        %501 = vmatprep.subr.mxu0 %v378
        %502 = vmatpush1.msra.mxu0 %v377
        %503 = vmatprep.subr.mxu0 %v382
        %504 = vmatpush1.msra.mxu0 %v381
        %505 = vmatprep.subr.mxu0 %v386
        %506 = vmatpush1.msra.mxu0 %v385
        %507 = vmatprep.subr.mxu0 %v390
        %508 = vmatpush1.msra.mxu0 %v389
        %509 = vmatprep.subr.mxu0 0.0
        %510 = vmatpush1.msra.mxu0 0.0
        %511 = vmatprep.subr.mxu0 0.0
        %512 = vmatpush1.msra.mxu0 0.0
        %513 = vmatprep.subr.mxu0 0.0
        %514 = vmatpush1.msra.mxu0 0.0
        %515 = vmatprep.subr.mxu0 0.0
        %516 = vmatpush1.msra.mxu0 0.0
        %517 = vmatprep.subr.mxu0 0.0
        %518 = vmatpush1.msra.mxu0 0.0
        %519 = vmatprep.subr.mxu0 0.0
        %520 = vmatpush1.msra.mxu0 0.0
        %521 = vmatprep.subr.mxu0 0.0
        %522 = vmatpush1.msra.mxu0 0.0
        %523 = vmatprep.subr.mxu0 0.0
        %524 = vmatpush1.msra.mxu0 0.0
        %525 = vmatprep.subr.mxu0 0.0
        %526 = vmatpush1.msra.mxu0 0.0
        %527 = vmatprep.subr.mxu0 0.0
        %528 = vmatpush1.msra.mxu0 0.0
        %529 = vmatprep.subr.mxu0 0.0
        %530 = vmatpush1.msra.mxu0 0.0
        %531 = vmatprep.subr.mxu0 0.0
        %532 = vmatpush1.msra.mxu0 0.0
        %533 = vmatprep.subr.mxu0 0.0
        %534 = vmatpush1.msra.mxu0 0.0
        %535 = vmatprep.subr.mxu0 0.0
        %536 = vmatpush1.msra.mxu0 0.0
        %537 = vmatprep.subr.mxu0 0.0
        %538 = vmatpush1.msra.mxu0 0.0
        %539 = vmatprep.subr.mxu0 0.0
        %540 = vmatpush1.msra.mxu0 0.0
        %541 = vmatprep.mubr.f32.mxu0 0.0
        %542 = vmatmul.mubr.f32.gmra.mrb[0].mxu0 %v399
        %v543 = vpop.f32.mrb[0].mxu0
        %v544 = vadd.f32 0.0, %v543
        %v545 = vpop.f32.mrb[0].mxu0
        %v546 = vadd.f32 0.0, %v545
        %547 = vdwg.mxu0
        %v552 = vcombine.low %v473, %v475
        %v553 = vcombine.low %v544, %v546
        %v555 = vunpack.c.l.s4 1983009808
        %v556 = vunpack.c.0.s8 %v555
        %v557 = vlaneseq
        %v558 = vshrl.u32 %v557, 7
        %v559 = vsub.s32 %v556, %v558
        %v560 = vrot.slane %v552, %v559
        %v562 = vunpack.c.l.s4 1983009808
        %v563 = vunpack.c.0.s8 %v562
        %v564 = vlaneseq
        %v565 = vshrl.u32 %v564, 7
        %v566 = vsub.s32 %v563, %v565
        %v567 = vrot.slane %v553, %v566
        %v568 = vcombine.low %v560, %v567
        %v570 = vadd.f32 %v405, %v568
        %v571 = vxor.u32 %v570, 2147483648
        %v572 = vmul.f32 %v571, 1.442695
        %v573 = vpow.pop %v572
        %v574 = vadd.f32 %v573, 1.0
        %v575 = vrcp.pop %v574
        %v576 = vmul.f32 1.0, %v575
        %v578 = vrot.slane %v570, 2
        %v580 = vxor.u32 %v578, 2147483648
        %v581 = vmul.f32 %v580, 1.442695
        %v582 = vpow.pop %v581
        %v583 = vadd.f32 %v582, 1.0
        %v584 = vrcp.pop %v583
        %v585 = vmul.f32 1.0, %v584
        %v586 = vrot.slane %v570, 4
        %v588 = vtanh.pop %v586
        %v589 = vrot.slane %v570, 6
        %v591 = vxor.u32 %v589, 2147483648
        %v592 = vmul.f32 %v591, 1.442695
        %v593 = vpow.pop %v592
        %v594 = vadd.f32 %v593, 1.0
        %v595 = vrcp.pop %v594
        %v596 = vmul.f32 1.0, %v595
        %v597 = vmul.f32 %v585, %v400
        %v598 = vmul.f32 %v576, %v588
        %v599 = vadd.f32 %v597, %v598
        %v600 = vtanh.pop %v599
        %v601 = vmul.f32 %v596, %v600
        %v602 = vsel %vm404, %v392, %v397
        %603 = vmatprep.subr.mxu0 %v328
        %604 = vmatpush1.msra.mxu0 %v327
        %605 = vmatprep.subr.mxu0 %v332
        %606 = vmatpush1.msra.mxu0 %v331
        %607 = vmatprep.subr.mxu0 %v336
        %608 = vmatpush1.msra.mxu0 %v335
        %609 = vmatprep.subr.mxu0 %v340
        %610 = vmatpush1.msra.mxu0 %v339
        %611 = vmatprep.subr.mxu0 %v344
        %612 = vmatpush1.msra.mxu0 %v343
        %613 = vmatprep.subr.mxu0 %v348
        %614 = vmatpush1.msra.mxu0 %v347
        %615 = vmatprep.subr.mxu0 %v352
        %616 = vmatpush1.msra.mxu0 %v351
        %617 = vmatprep.subr.mxu0 %v356
        %618 = vmatpush1.msra.mxu0 %v355
        %619 = vmatprep.subr.mxu0 %v360
        %620 = vmatpush1.msra.mxu0 %v359
        %621 = vmatprep.subr.mxu0 %v364
        %622 = vmatpush1.msra.mxu0 %v363
        %623 = vmatprep.subr.mxu0 %v368
        %624 = vmatpush1.msra.mxu0 %v367
        %625 = vmatprep.subr.mxu0 %v372
        %626 = vmatpush1.msra.mxu0 %v371
        %627 = vmatprep.subr.mxu0 %v376
        %628 = vmatpush1.msra.mxu0 %v375
        %629 = vmatprep.subr.mxu0 %v380
        %630 = vmatpush1.msra.mxu0 %v379
        %631 = vmatprep.subr.mxu0 %v384
        %632 = vmatpush1.msra.mxu0 %v383
        %633 = vmatprep.subr.mxu0 %v388
        %634 = vmatpush1.msra.mxu0 %v387
        %635 = vmatprep.subr.mxu0 0.0
        %636 = vmatpush1.msra.mxu0 0.0
        %637 = vmatprep.subr.mxu0 0.0
        %638 = vmatpush1.msra.mxu0 0.0
        %639 = vmatprep.subr.mxu0 0.0
        %640 = vmatpush1.msra.mxu0 0.0
        %641 = vmatprep.subr.mxu0 0.0
        %642 = vmatpush1.msra.mxu0 0.0
        %643 = vmatprep.subr.mxu0 0.0
        %644 = vmatpush1.msra.mxu0 0.0
        %645 = vmatprep.subr.mxu0 0.0
        %646 = vmatpush1.msra.mxu0 0.0
        %647 = vmatprep.subr.mxu0 0.0
        %648 = vmatpush1.msra.mxu0 0.0
        %649 = vmatprep.subr.mxu0 0.0
        %650 = vmatpush1.msra.mxu0 0.0
        %651 = vmatprep.subr.mxu0 0.0
        %652 = vmatpush1.msra.mxu0 0.0
        %653 = vmatprep.subr.mxu0 0.0
        %654 = vmatpush1.msra.mxu0 0.0
        %655 = vmatprep.subr.mxu0 0.0
        %656 = vmatpush1.msra.mxu0 0.0
        %657 = vmatprep.subr.mxu0 0.0
        %658 = vmatpush1.msra.mxu0 0.0
        %659 = vmatprep.subr.mxu0 0.0
        %660 = vmatpush1.msra.mxu0 0.0
        %661 = vmatprep.subr.mxu0 0.0
        %662 = vmatpush1.msra.mxu0 0.0
        %663 = vmatprep.subr.mxu0 0.0
        %664 = vmatpush1.msra.mxu0 0.0
        %665 = vmatprep.subr.mxu0 0.0
        %666 = vmatpush1.msra.mxu0 0.0
        %667 = vmatprep.mubr.f32.mxu0 0.0
        %668 = vmatmul.mubr.f32.gmra.mrb[0].mxu0 %v601
        %v669 = vpop.f32.mrb[0].mxu0
        %v670 = vadd.f32 0.0, %v669
        %v671 = vpop.f32.mrb[0].mxu0
        %v672 = vadd.f32 0.0, %v671
        %673 = vdwg.mxu0
        %674 = vmatprep.subr.mxu0 %v330
        %675 = vmatpush1.msra.mxu0 %v329
        %676 = vmatprep.subr.mxu0 %v334
        %677 = vmatpush1.msra.mxu0 %v333
        %678 = vmatprep.subr.mxu0 %v338
        %679 = vmatpush1.msra.mxu0 %v337
        %680 = vmatprep.subr.mxu0 %v342
        %681 = vmatpush1.msra.mxu0 %v341
        %682 = vmatprep.subr.mxu0 %v346
        %683 = vmatpush1.msra.mxu0 %v345
        %684 = vmatprep.subr.mxu0 %v350
        %685 = vmatpush1.msra.mxu0 %v349
        %686 = vmatprep.subr.mxu0 %v354
        %687 = vmatpush1.msra.mxu0 %v353
        %688 = vmatprep.subr.mxu0 %v358
        %689 = vmatpush1.msra.mxu0 %v357
        %690 = vmatprep.subr.mxu0 %v362
        %691 = vmatpush1.msra.mxu0 %v361
        %692 = vmatprep.subr.mxu0 %v366
        %693 = vmatpush1.msra.mxu0 %v365
        %694 = vmatprep.subr.mxu0 %v370
        %695 = vmatpush1.msra.mxu0 %v369
        %696 = vmatprep.subr.mxu0 %v374
        %697 = vmatpush1.msra.mxu0 %v373
        %698 = vmatprep.subr.mxu0 %v378
        %699 = vmatpush1.msra.mxu0 %v377
        %700 = vmatprep.subr.mxu0 %v382
        %701 = vmatpush1.msra.mxu0 %v381
        %702 = vmatprep.subr.mxu0 %v386
        %703 = vmatpush1.msra.mxu0 %v385
        %704 = vmatprep.subr.mxu0 %v390
        %705 = vmatpush1.msra.mxu0 %v389
        %706 = vmatprep.subr.mxu0 0.0
        %707 = vmatpush1.msra.mxu0 0.0
        %708 = vmatprep.subr.mxu0 0.0
        %709 = vmatpush1.msra.mxu0 0.0
        %710 = vmatprep.subr.mxu0 0.0
        %711 = vmatpush1.msra.mxu0 0.0
        %712 = vmatprep.subr.mxu0 0.0
        %713 = vmatpush1.msra.mxu0 0.0
        %714 = vmatprep.subr.mxu0 0.0
        %715 = vmatpush1.msra.mxu0 0.0
        %716 = vmatprep.subr.mxu0 0.0
        %717 = vmatpush1.msra.mxu0 0.0
        %718 = vmatprep.subr.mxu0 0.0
        %719 = vmatpush1.msra.mxu0 0.0
        %720 = vmatprep.subr.mxu0 0.0
        %721 = vmatpush1.msra.mxu0 0.0
        %722 = vmatprep.subr.mxu0 0.0
        %723 = vmatpush1.msra.mxu0 0.0
        %724 = vmatprep.subr.mxu0 0.0
        %725 = vmatpush1.msra.mxu0 0.0
        %726 = vmatprep.subr.mxu0 0.0
        %727 = vmatpush1.msra.mxu0 0.0
        %728 = vmatprep.subr.mxu0 0.0
        %729 = vmatpush1.msra.mxu0 0.0
        %730 = vmatprep.subr.mxu0 0.0
        %731 = vmatpush1.msra.mxu0 0.0
        %732 = vmatprep.subr.mxu0 0.0
        %733 = vmatpush1.msra.mxu0 0.0
        %734 = vmatprep.subr.mxu0 0.0
        %735 = vmatpush1.msra.mxu0 0.0
        %736 = vmatprep.subr.mxu0 0.0
        %737 = vmatpush1.msra.mxu0 0.0
        %738 = vmatprep.mubr.f32.mxu0 0.0
        %739 = vmatmul.mubr.f32.gmra.mrb[0].mxu0 %v601
        %v740 = vpop.f32.mrb[0].mxu0
        %v741 = vadd.f32 0.0, %v740
        %v742 = vpop.f32.mrb[0].mxu0
        %v743 = vadd.f32 0.0, %v742
        %744 = vdwg.mxu0
        %v749 = vcombine.low %v670, %v672
        %v750 = vcombine.low %v741, %v743
        %v752 = vunpack.c.l.s4 1983009808
        %v753 = vunpack.c.0.s8 %v752
        %v754 = vlaneseq
        %v755 = vshrl.u32 %v754, 7
        %v756 = vsub.s32 %v753, %v755
        %v757 = vrot.slane %v749, %v756
        %v759 = vunpack.c.l.s4 1983009808
        %v760 = vunpack.c.0.s8 %v759
        %v761 = vlaneseq
        %v762 = vshrl.u32 %v761, 7
        %v763 = vsub.s32 %v760, %v762
        %v764 = vrot.slane %v750, %v763
        %v765 = vcombine.low %v757, %v764
        %v767 = vadd.f32 %v602, %v765
        %v768 = vxor.u32 %v767, 2147483648
        %v769 = vmul.f32 %v768, 1.442695
        %v770 = vpow.pop %v769
        %v771 = vadd.f32 %v770, 1.0
        %v772 = vrcp.pop %v771
        %v773 = vmul.f32 1.0, %v772
        %v775 = vrot.slane %v767, 2
        %v777 = vxor.u32 %v775, 2147483648
        %v778 = vmul.f32 %v777, 1.442695
        %v779 = vpow.pop %v778
        %v780 = vadd.f32 %v779, 1.0
        %v781 = vrcp.pop %v780
        %v782 = vmul.f32 1.0, %v781
        %v783 = vrot.slane %v767, 4
        %v785 = vtanh.pop %v783
        %v786 = vrot.slane %v767, 6
        %v788 = vxor.u32 %v786, 2147483648
        %v789 = vmul.f32 %v788, 1.442695
        %v790 = vpow.pop %v789
        %v791 = vadd.f32 %v790, 1.0
        %v792 = vrcp.pop %v791
        %v793 = vmul.f32 1.0, %v792
        %v794 = vmul.f32 %v782, %v599
        %v795 = vmul.f32 %v773, %v785
        %v796 = vadd.f32 %v794, %v795
        %v797 = vtanh.pop %v796
        %v798 = vmul.f32 %v793, %v797
        %v799 = vsel %vm404, %v393, %v396
        %800 = vmatprep.subr.mxu0 %v328
        %801 = vmatpush1.msra.mxu0 %v327
        %802 = vmatprep.subr.mxu0 %v332
        %803 = vmatpush1.msra.mxu0 %v331
        %804 = vmatprep.subr.mxu0 %v336
        %805 = vmatpush1.msra.mxu0 %v335
        %806 = vmatprep.subr.mxu0 %v340
        %807 = vmatpush1.msra.mxu0 %v339
        %808 = vmatprep.subr.mxu0 %v344
        %809 = vmatpush1.msra.mxu0 %v343
        %810 = vmatprep.subr.mxu0 %v348
        %811 = vmatpush1.msra.mxu0 %v347
        %812 = vmatprep.subr.mxu0 %v352
        %813 = vmatpush1.msra.mxu0 %v351
        %814 = vmatprep.subr.mxu0 %v356
        %815 = vmatpush1.msra.mxu0 %v355
        %816 = vmatprep.subr.mxu0 %v360
        %817 = vmatpush1.msra.mxu0 %v359
        %818 = vmatprep.subr.mxu0 %v364
        %819 = vmatpush1.msra.mxu0 %v363
        %820 = vmatprep.subr.mxu0 %v368
        %821 = vmatpush1.msra.mxu0 %v367
        %822 = vmatprep.subr.mxu0 %v372
        %823 = vmatpush1.msra.mxu0 %v371
        %824 = vmatprep.subr.mxu0 %v376
        %825 = vmatpush1.msra.mxu0 %v375
        %826 = vmatprep.subr.mxu0 %v380
        %827 = vmatpush1.msra.mxu0 %v379
        %828 = vmatprep.subr.mxu0 %v384
        %829 = vmatpush1.msra.mxu0 %v383
        %830 = vmatprep.subr.mxu0 %v388
        %831 = vmatpush1.msra.mxu0 %v387
        %832 = vmatprep.subr.mxu0 0.0
        %833 = vmatpush1.msra.mxu0 0.0
        %834 = vmatprep.subr.mxu0 0.0
        %835 = vmatpush1.msra.mxu0 0.0
        %836 = vmatprep.subr.mxu0 0.0
        %837 = vmatpush1.msra.mxu0 0.0
        %838 = vmatprep.subr.mxu0 0.0
        %839 = vmatpush1.msra.mxu0 0.0
        %840 = vmatprep.subr.mxu0 0.0
        %841 = vmatpush1.msra.mxu0 0.0
        %842 = vmatprep.subr.mxu0 0.0
        %843 = vmatpush1.msra.mxu0 0.0
        %844 = vmatprep.subr.mxu0 0.0
        %845 = vmatpush1.msra.mxu0 0.0
        %846 = vmatprep.subr.mxu0 0.0
        %847 = vmatpush1.msra.mxu0 0.0
        %848 = vmatprep.subr.mxu0 0.0
        %849 = vmatpush1.msra.mxu0 0.0
        %850 = vmatprep.subr.mxu0 0.0
        %851 = vmatpush1.msra.mxu0 0.0
        %852 = vmatprep.subr.mxu0 0.0
        %853 = vmatpush1.msra.mxu0 0.0
        %854 = vmatprep.subr.mxu0 0.0
        %855 = vmatpush1.msra.mxu0 0.0
        %856 = vmatprep.subr.mxu0 0.0
        %857 = vmatpush1.msra.mxu0 0.0
        %858 = vmatprep.subr.mxu0 0.0
        %859 = vmatpush1.msra.mxu0 0.0
        %860 = vmatprep.subr.mxu0 0.0
        %861 = vmatpush1.msra.mxu0 0.0
        %862 = vmatprep.subr.mxu0 0.0
        %863 = vmatpush1.msra.mxu0 0.0
        %864 = vmatprep.mubr.f32.mxu0 0.0
        %865 = vmatmul.mubr.f32.gmra.mrb[0].mxu0 %v798
        %v866 = vpop.f32.mrb[0].mxu0
        %v867 = vadd.f32 0.0, %v866
        %v868 = vpop.f32.mrb[0].mxu0
        %v869 = vadd.f32 0.0, %v868
        %870 = vdwg.mxu0
        %871 = vmatprep.subr.mxu0 %v330
        %872 = vmatpush1.msra.mxu0 %v329
        %873 = vmatprep.subr.mxu0 %v334
        %874 = vmatpush1.msra.mxu0 %v333
        %875 = vmatprep.subr.mxu0 %v338
        %876 = vmatpush1.msra.mxu0 %v337
        %877 = vmatprep.subr.mxu0 %v342
        %878 = vmatpush1.msra.mxu0 %v341
        %879 = vmatprep.subr.mxu0 %v346
        %880 = vmatpush1.msra.mxu0 %v345
        %881 = vmatprep.subr.mxu0 %v350
        %882 = vmatpush1.msra.mxu0 %v349
        %883 = vmatprep.subr.mxu0 %v354
        %884 = vmatpush1.msra.mxu0 %v353
        %885 = vmatprep.subr.mxu0 %v358
        %886 = vmatpush1.msra.mxu0 %v357
        %887 = vmatprep.subr.mxu0 %v362
        %888 = vmatpush1.msra.mxu0 %v361
        %889 = vmatprep.subr.mxu0 %v366
        %890 = vmatpush1.msra.mxu0 %v365
        %891 = vmatprep.subr.mxu0 %v370
        %892 = vmatpush1.msra.mxu0 %v369
        %893 = vmatprep.subr.mxu0 %v374
        %894 = vmatpush1.msra.mxu0 %v373
        %895 = vmatprep.subr.mxu0 %v378
        %896 = vmatpush1.msra.mxu0 %v377
        %897 = vmatprep.subr.mxu0 %v382
        %898 = vmatpush1.msra.mxu0 %v381
        %899 = vmatprep.subr.mxu0 %v386
        %900 = vmatpush1.msra.mxu0 %v385
        %901 = vmatprep.subr.mxu0 %v390
        %902 = vmatpush1.msra.mxu0 %v389
        %903 = vmatprep.subr.mxu0 0.0
        %904 = vmatpush1.msra.mxu0 0.0
        %905 = vmatprep.subr.mxu0 0.0
        %906 = vmatpush1.msra.mxu0 0.0
        %907 = vmatprep.subr.mxu0 0.0
        %908 = vmatpush1.msra.mxu0 0.0
        %909 = vmatprep.subr.mxu0 0.0
        %910 = vmatpush1.msra.mxu0 0.0
        %911 = vmatprep.subr.mxu0 0.0
        %912 = vmatpush1.msra.mxu0 0.0
        %913 = vmatprep.subr.mxu0 0.0
        %914 = vmatpush1.msra.mxu0 0.0
        %915 = vmatprep.subr.mxu0 0.0
        %916 = vmatpush1.msra.mxu0 0.0
        %917 = vmatprep.subr.mxu0 0.0
        %918 = vmatpush1.msra.mxu0 0.0
        %919 = vmatprep.subr.mxu0 0.0
        %920 = vmatpush1.msra.mxu0 0.0
        %921 = vmatprep.subr.mxu0 0.0
        %922 = vmatpush1.msra.mxu0 0.0
        %923 = vmatprep.subr.mxu0 0.0
        %924 = vmatpush1.msra.mxu0 0.0
        %925 = vmatprep.subr.mxu0 0.0
        %926 = vmatpush1.msra.mxu0 0.0
        %927 = vmatprep.subr.mxu0 0.0
        %928 = vmatpush1.msra.mxu0 0.0
        %929 = vmatprep.subr.mxu0 0.0
        %930 = vmatpush1.msra.mxu0 0.0
        %931 = vmatprep.subr.mxu0 0.0
        %932 = vmatpush1.msra.mxu0 0.0
        %933 = vmatprep.subr.mxu0 0.0
        %934 = vmatpush1.msra.mxu0 0.0
        %935 = vmatprep.mubr.f32.mxu0 0.0
        %936 = vmatmul.mubr.f32.gmra.mrb[0].mxu0 %v798
        %v937 = vpop.f32.mrb[0].mxu0
        %v938 = vadd.f32 0.0, %v937
        %v939 = vpop.f32.mrb[0].mxu0
        %v940 = vadd.f32 0.0, %v939
        %941 = vdwg.mxu0
        %v946 = vcombine.low %v867, %v869
        %v947 = vcombine.low %v938, %v940
        %v949 = vunpack.c.l.s4 1983009808
        %v950 = vunpack.c.0.s8 %v949
        %v951 = vlaneseq
        %v952 = vshrl.u32 %v951, 7
        %v953 = vsub.s32 %v950, %v952
        %v954 = vrot.slane %v946, %v953
        %v956 = vunpack.c.l.s4 1983009808
        %v957 = vunpack.c.0.s8 %v956
        %v958 = vlaneseq
        %v959 = vshrl.u32 %v958, 7
        %v960 = vsub.s32 %v957, %v959
        %v961 = vrot.slane %v947, %v960
        %v962 = vcombine.low %v954, %v961
        %v964 = vadd.f32 %v799, %v962
        %v965 = vxor.u32 %v964, 2147483648
        %v966 = vmul.f32 %v965, 1.442695
        %v967 = vpow.pop %v966
        %v968 = vadd.f32 %v967, 1.0
        %v969 = vrcp.pop %v968
        %v970 = vmul.f32 1.0, %v969
        %v972 = vrot.slane %v964, 2
        %v974 = vxor.u32 %v972, 2147483648
        %v975 = vmul.f32 %v974, 1.442695
        %v976 = vpow.pop %v975
        %v977 = vadd.f32 %v976, 1.0
        %v978 = vrcp.pop %v977
        %v979 = vmul.f32 1.0, %v978
        %v980 = vrot.slane %v964, 4
        %v982 = vtanh.pop %v980
        %v983 = vrot.slane %v964, 6
        %v985 = vxor.u32 %v983, 2147483648
        %v986 = vmul.f32 %v985, 1.442695
        %v987 = vpow.pop %v986
        %v988 = vadd.f32 %v987, 1.0
        %v989 = vrcp.pop %v988
        %v990 = vmul.f32 1.0, %v989
        %v991 = vmul.f32 %v979, %v796
        %v992 = vmul.f32 %v970, %v982
        %v993 = vadd.f32 %v991, %v992
        %v994 = vtanh.pop %v993
        %v995 = vmul.f32 %v990, %v994
        %v996 = vsel %vm404, %v394, %v395
        %997 = vmatprep.subr.mxu0 %v328
        %998 = vmatpush1.msra.mxu0 %v327
        %999 = vmatprep.subr.mxu0 %v332
        %1000 = vmatpush1.msra.mxu0 %v331
        %1001 = vmatprep.subr.mxu0 %v336
        %1002 = vmatpush1.msra.mxu0 %v335
        %1003 = vmatprep.subr.mxu0 %v340
        %1004 = vmatpush1.msra.mxu0 %v339
        %1005 = vmatprep.subr.mxu0 %v344
        %1006 = vmatpush1.msra.mxu0 %v343
        %1007 = vmatprep.subr.mxu0 %v348
        %1008 = vmatpush1.msra.mxu0 %v347
        %1009 = vmatprep.subr.mxu0 %v352
        %1010 = vmatpush1.msra.mxu0 %v351
        %1011 = vmatprep.subr.mxu0 %v356
        %1012 = vmatpush1.msra.mxu0 %v355
        %1013 = vmatprep.subr.mxu0 %v360
        %1014 = vmatpush1.msra.mxu0 %v359
        %1015 = vmatprep.subr.mxu0 %v364
        %1016 = vmatpush1.msra.mxu0 %v363
        %1017 = vmatprep.subr.mxu0 %v368
        %1018 = vmatpush1.msra.mxu0 %v367
        %1019 = vmatprep.subr.mxu0 %v372
        %1020 = vmatpush1.msra.mxu0 %v371
        %1021 = vmatprep.subr.mxu0 %v376
        %1022 = vmatpush1.msra.mxu0 %v375
        %1023 = vmatprep.subr.mxu0 %v380
        %1024 = vmatpush1.msra.mxu0 %v379
        %1025 = vmatprep.subr.mxu0 %v384
        %1026 = vmatpush1.msra.mxu0 %v383
        %1027 = vmatprep.subr.mxu0 %v388
        %1028 = vmatpush1.msra.mxu0 %v387
        %1029 = vmatprep.subr.mxu0 0.0
        %1030 = vmatpush1.msra.mxu0 0.0
        %1031 = vmatprep.subr.mxu0 0.0
        %1032 = vmatpush1.msra.mxu0 0.0
        %1033 = vmatprep.subr.mxu0 0.0
        %1034 = vmatpush1.msra.mxu0 0.0
        %1035 = vmatprep.subr.mxu0 0.0
        %1036 = vmatpush1.msra.mxu0 0.0
        %1037 = vmatprep.subr.mxu0 0.0
        %1038 = vmatpush1.msra.mxu0 0.0
        %1039 = vmatprep.subr.mxu0 0.0
        %1040 = vmatpush1.msra.mxu0 0.0
        %1041 = vmatprep.subr.mxu0 0.0
        %1042 = vmatpush1.msra.mxu0 0.0
        %1043 = vmatprep.subr.mxu0 0.0
        %1044 = vmatpush1.msra.mxu0 0.0
        %1045 = vmatprep.subr.mxu0 0.0
        %1046 = vmatpush1.msra.mxu0 0.0
        %1047 = vmatprep.subr.mxu0 0.0
        %1048 = vmatpush1.msra.mxu0 0.0
        %1049 = vmatprep.subr.mxu0 0.0
        %1050 = vmatpush1.msra.mxu0 0.0
        %1051 = vmatprep.subr.mxu0 0.0
        %1052 = vmatpush1.msra.mxu0 0.0
        %1053 = vmatprep.subr.mxu0 0.0
        %1054 = vmatpush1.msra.mxu0 0.0
        %1055 = vmatprep.subr.mxu0 0.0
        %1056 = vmatpush1.msra.mxu0 0.0
        %1057 = vmatprep.subr.mxu0 0.0
        %1058 = vmatpush1.msra.mxu0 0.0
        %1059 = vmatprep.subr.mxu0 0.0
        %1060 = vmatpush1.msra.mxu0 0.0
        %1061 = vmatprep.mubr.f32.mxu0 0.0
        %1062 = vmatmul.mubr.f32.gmra.mrb[0].mxu0 %v995
        %v1063 = vpop.f32.mrb[0].mxu0
        %v1064 = vadd.f32 0.0, %v1063
        %v1065 = vpop.f32.mrb[0].mxu0
        %v1066 = vadd.f32 0.0, %v1065
        %1067 = vdwg.mxu0
        %1068 = vmatprep.subr.mxu0 %v330
        %1069 = vmatpush1.msra.mxu0 %v329
        %1070 = vmatprep.subr.mxu0 %v334
        %1071 = vmatpush1.msra.mxu0 %v333
        %1072 = vmatprep.subr.mxu0 %v338
        %1073 = vmatpush1.msra.mxu0 %v337
        %1074 = vmatprep.subr.mxu0 %v342
        %1075 = vmatpush1.msra.mxu0 %v341
        %1076 = vmatprep.subr.mxu0 %v346
        %1077 = vmatpush1.msra.mxu0 %v345
        %1078 = vmatprep.subr.mxu0 %v350
        %1079 = vmatpush1.msra.mxu0 %v349
        %1080 = vmatprep.subr.mxu0 %v354
        %1081 = vmatpush1.msra.mxu0 %v353
        %1082 = vmatprep.subr.mxu0 %v358
        %1083 = vmatpush1.msra.mxu0 %v357
        %1084 = vmatprep.subr.mxu0 %v362
        %1085 = vmatpush1.msra.mxu0 %v361
        %1086 = vmatprep.subr.mxu0 %v366
        %1087 = vmatpush1.msra.mxu0 %v365
        %1088 = vmatprep.subr.mxu0 %v370
        %1089 = vmatpush1.msra.mxu0 %v369
        %1090 = vmatprep.subr.mxu0 %v374
        %1091 = vmatpush1.msra.mxu0 %v373
        %1092 = vmatprep.subr.mxu0 %v378
        %1093 = vmatpush1.msra.mxu0 %v377
        %1094 = vmatprep.subr.mxu0 %v382
        %1095 = vmatpush1.msra.mxu0 %v381
        %1096 = vmatprep.subr.mxu0 %v386
        %1097 = vmatpush1.msra.mxu0 %v385
        %1098 = vmatprep.subr.mxu0 %v390
        %1099 = vmatpush1.msra.mxu0 %v389
        %1100 = vmatprep.subr.mxu0 0.0
        %1101 = vmatpush1.msra.mxu0 0.0
        %1102 = vmatprep.subr.mxu0 0.0
        %1103 = vmatpush1.msra.mxu0 0.0
        %1104 = vmatprep.subr.mxu0 0.0
        %1105 = vmatpush1.msra.mxu0 0.0
        %1106 = vmatprep.subr.mxu0 0.0
        %1107 = vmatpush1.msra.mxu0 0.0
        %1108 = vmatprep.subr.mxu0 0.0
        %1109 = vmatpush1.msra.mxu0 0.0
        %1110 = vmatprep.subr.mxu0 0.0
        %1111 = vmatpush1.msra.mxu0 0.0
        %1112 = vmatprep.subr.mxu0 0.0
        %1113 = vmatpush1.msra.mxu0 0.0
        %1114 = vmatprep.subr.mxu0 0.0
        %1115 = vmatpush1.msra.mxu0 0.0
        %1116 = vmatprep.subr.mxu0 0.0
        %1117 = vmatpush1.msra.mxu0 0.0
        %1118 = vmatprep.subr.mxu0 0.0
        %1119 = vmatpush1.msra.mxu0 0.0
        %1120 = vmatprep.subr.mxu0 0.0
        %1121 = vmatpush1.msra.mxu0 0.0
        %1122 = vmatprep.subr.mxu0 0.0
        %1123 = vmatpush1.msra.mxu0 0.0
        %1124 = vmatprep.subr.mxu0 0.0
        %1125 = vmatpush1.msra.mxu0 0.0
        %1126 = vmatprep.subr.mxu0 0.0
        %1127 = vmatpush1.msra.mxu0 0.0
        %1128 = vmatprep.subr.mxu0 0.0
        %1129 = vmatpush1.msra.mxu0 0.0
        %1130 = vmatprep.subr.mxu0 0.0
        %1131 = vmatpush1.msra.mxu0 0.0
        %1132 = vmatprep.mubr.f32.mxu0 0.0
        %1133 = vmatmul.mubr.f32.gmra.mrb[0].mxu0 %v995
        %v1134 = vpop.f32.mrb[0].mxu0
        %v1135 = vadd.f32 0.0, %v1134
        %v1136 = vpop.f32.mrb[0].mxu0
        %v1137 = vadd.f32 0.0, %v1136
        %1138 = vdwg.mxu0
        %v1143 = vcombine.low %v1064, %v1066
        %v1144 = vcombine.low %v1135, %v1137
        %v1146 = vunpack.c.l.s4 1983009808
        %v1147 = vunpack.c.0.s8 %v1146
        %v1148 = vlaneseq
        %v1149 = vshrl.u32 %v1148, 7
        %v1150 = vsub.s32 %v1147, %v1149
        %v1151 = vrot.slane %v1143, %v1150
        %v1153 = vunpack.c.l.s4 1983009808
        %v1154 = vunpack.c.0.s8 %v1153
        %v1155 = vlaneseq
        %v1156 = vshrl.u32 %v1155, 7
        %v1157 = vsub.s32 %v1154, %v1156
        %v1158 = vrot.slane %v1144, %v1157
        %v1159 = vcombine.low %v1151, %v1158
        %v1161 = vadd.f32 %v996, %v1159
        %v1162 = vxor.u32 %v1161, 2147483648
        %v1163 = vmul.f32 %v1162, 1.442695
        %v1164 = vpow.pop %v1163
        %v1165 = vadd.f32 %v1164, 1.0
        %v1166 = vrcp.pop %v1165
        %v1167 = vmul.f32 1.0, %v1166
        %v1169 = vrot.slane %v1161, 2
        %v1171 = vxor.u32 %v1169, 2147483648
        %v1172 = vmul.f32 %v1171, 1.442695
        %v1173 = vpow.pop %v1172
        %v1174 = vadd.f32 %v1173, 1.0
        %v1175 = vrcp.pop %v1174
        %v1176 = vmul.f32 1.0, %v1175
        %v1177 = vrot.slane %v1161, 4
        %v1179 = vtanh.pop %v1177
        %v1180 = vrot.slane %v1161, 6
        %v1182 = vxor.u32 %v1180, 2147483648
        %v1183 = vmul.f32 %v1182, 1.442695
        %v1184 = vpow.pop %v1183
        %v1185 = vadd.f32 %v1184, 1.0
        %v1186 = vrcp.pop %v1185
        %v1187 = vmul.f32 1.0, %v1186
        %v1188 = vmul.f32 %v1176, %v993
        %v1189 = vmul.f32 %v1167, %v1179
        %v1190 = vadd.f32 %v1188, %v1189
        %v1191 = vtanh.pop %v1190
        %v1192 = vmul.f32 %v1187, %v1191
        %v1193 = vsel %vm404, %v395, %v394
        %1194 = vmatprep.subr.mxu0 %v328
        %1195 = vmatpush1.msra.mxu0 %v327
        %1196 = vmatprep.subr.mxu0 %v332
        %1197 = vmatpush1.msra.mxu0 %v331
        %1198 = vmatprep.subr.mxu0 %v336
        %1199 = vmatpush1.msra.mxu0 %v335
        %1200 = vmatprep.subr.mxu0 %v340
        %1201 = vmatpush1.msra.mxu0 %v339
        %1202 = vmatprep.subr.mxu0 %v344
        %1203 = vmatpush1.msra.mxu0 %v343
        %1204 = vmatprep.subr.mxu0 %v348
        %1205 = vmatpush1.msra.mxu0 %v347
        %1206 = vmatprep.subr.mxu0 %v352
        %1207 = vmatpush1.msra.mxu0 %v351
        %1208 = vmatprep.subr.mxu0 %v356
        %1209 = vmatpush1.msra.mxu0 %v355
        %1210 = vmatprep.subr.mxu0 %v360
        %1211 = vmatpush1.msra.mxu0 %v359
        %1212 = vmatprep.subr.mxu0 %v364
        %1213 = vmatpush1.msra.mxu0 %v363
        %1214 = vmatprep.subr.mxu0 %v368
        %1215 = vmatpush1.msra.mxu0 %v367
        %1216 = vmatprep.subr.mxu0 %v372
        %1217 = vmatpush1.msra.mxu0 %v371
        %1218 = vmatprep.subr.mxu0 %v376
        %1219 = vmatpush1.msra.mxu0 %v375
        %1220 = vmatprep.subr.mxu0 %v380
        %1221 = vmatpush1.msra.mxu0 %v379
        %1222 = vmatprep.subr.mxu0 %v384
        %1223 = vmatpush1.msra.mxu0 %v383
        %1224 = vmatprep.subr.mxu0 %v388
        %1225 = vmatpush1.msra.mxu0 %v387
        %1226 = vmatprep.subr.mxu0 0.0
        %1227 = vmatpush1.msra.mxu0 0.0
        %1228 = vmatprep.subr.mxu0 0.0
        %1229 = vmatpush1.msra.mxu0 0.0
        %1230 = vmatprep.subr.mxu0 0.0
        %1231 = vmatpush1.msra.mxu0 0.0
        %1232 = vmatprep.subr.mxu0 0.0
        %1233 = vmatpush1.msra.mxu0 0.0
        %1234 = vmatprep.subr.mxu0 0.0
        %1235 = vmatpush1.msra.mxu0 0.0
        %1236 = vmatprep.subr.mxu0 0.0
        %1237 = vmatpush1.msra.mxu0 0.0
        %1238 = vmatprep.subr.mxu0 0.0
        %1239 = vmatpush1.msra.mxu0 0.0
        %1240 = vmatprep.subr.mxu0 0.0
        %1241 = vmatpush1.msra.mxu0 0.0
        %1242 = vmatprep.subr.mxu0 0.0
        %1243 = vmatpush1.msra.mxu0 0.0
        %1244 = vmatprep.subr.mxu0 0.0
        %1245 = vmatpush1.msra.mxu0 0.0
        %1246 = vmatprep.subr.mxu0 0.0
        %1247 = vmatpush1.msra.mxu0 0.0
        %1248 = vmatprep.subr.mxu0 0.0
        %1249 = vmatpush1.msra.mxu0 0.0
        %1250 = vmatprep.subr.mxu0 0.0
        %1251 = vmatpush1.msra.mxu0 0.0
        %1252 = vmatprep.subr.mxu0 0.0
        %1253 = vmatpush1.msra.mxu0 0.0
        %1254 = vmatprep.subr.mxu0 0.0
        %1255 = vmatpush1.msra.mxu0 0.0
        %1256 = vmatprep.subr.mxu0 0.0
        %1257 = vmatpush1.msra.mxu0 0.0
        %1258 = vmatprep.mubr.f32.mxu0 0.0
        %1259 = vmatmul.mubr.f32.gmra.mrb[0].mxu0 %v1192
        %v1260 = vpop.f32.mrb[0].mxu0
        %v1261 = vadd.f32 0.0, %v1260
        %v1262 = vpop.f32.mrb[0].mxu0
        %v1263 = vadd.f32 0.0, %v1262
        %1264 = vdwg.mxu0
        %1265 = vmatprep.subr.mxu0 %v330
        %1266 = vmatpush1.msra.mxu0 %v329
        %1267 = vmatprep.subr.mxu0 %v334
        %1268 = vmatpush1.msra.mxu0 %v333
        %1269 = vmatprep.subr.mxu0 %v338
        %1270 = vmatpush1.msra.mxu0 %v337
        %1271 = vmatprep.subr.mxu0 %v342
        %1272 = vmatpush1.msra.mxu0 %v341
        %1273 = vmatprep.subr.mxu0 %v346
        %1274 = vmatpush1.msra.mxu0 %v345
        %1275 = vmatprep.subr.mxu0 %v350
        %1276 = vmatpush1.msra.mxu0 %v349
        %1277 = vmatprep.subr.mxu0 %v354
        %1278 = vmatpush1.msra.mxu0 %v353
        %1279 = vmatprep.subr.mxu0 %v358
        %1280 = vmatpush1.msra.mxu0 %v357
        %1281 = vmatprep.subr.mxu0 %v362
        %1282 = vmatpush1.msra.mxu0 %v361
        %1283 = vmatprep.subr.mxu0 %v366
        %1284 = vmatpush1.msra.mxu0 %v365
        %1285 = vmatprep.subr.mxu0 %v370
        %1286 = vmatpush1.msra.mxu0 %v369
        %1287 = vmatprep.subr.mxu0 %v374
        %1288 = vmatpush1.msra.mxu0 %v373
        %1289 = vmatprep.subr.mxu0 %v378
        %1290 = vmatpush1.msra.mxu0 %v377
        %1291 = vmatprep.subr.mxu0 %v382
        %1292 = vmatpush1.msra.mxu0 %v381
        %1293 = vmatprep.subr.mxu0 %v386
        %1294 = vmatpush1.msra.mxu0 %v385
        %1295 = vmatprep.subr.mxu0 %v390
        %1296 = vmatpush1.msra.mxu0 %v389
        %1297 = vmatprep.subr.mxu0 0.0
        %1298 = vmatpush1.msra.mxu0 0.0
        %1299 = vmatprep.subr.mxu0 0.0
        %1300 = vmatpush1.msra.mxu0 0.0
        %1301 = vmatprep.subr.mxu0 0.0
        %1302 = vmatpush1.msra.mxu0 0.0
        %1303 = vmatprep.subr.mxu0 0.0
        %1304 = vmatpush1.msra.mxu0 0.0
        %1305 = vmatprep.subr.mxu0 0.0
        %1306 = vmatpush1.msra.mxu0 0.0
        %1307 = vmatprep.subr.mxu0 0.0
        %1308 = vmatpush1.msra.mxu0 0.0
        %1309 = vmatprep.subr.mxu0 0.0
        %1310 = vmatpush1.msra.mxu0 0.0
        %1311 = vmatprep.subr.mxu0 0.0
        %1312 = vmatpush1.msra.mxu0 0.0
        %1313 = vmatprep.subr.mxu0 0.0
        %1314 = vmatpush1.msra.mxu0 0.0
        %1315 = vmatprep.subr.mxu0 0.0
        %1316 = vmatpush1.msra.mxu0 0.0
        %1317 = vmatprep.subr.mxu0 0.0
        %1318 = vmatpush1.msra.mxu0 0.0
        %1319 = vmatprep.subr.mxu0 0.0
        %1320 = vmatpush1.msra.mxu0 0.0
        %1321 = vmatprep.subr.mxu0 0.0
        %1322 = vmatpush1.msra.mxu0 0.0
        %1323 = vmatprep.subr.mxu0 0.0
        %1324 = vmatpush1.msra.mxu0 0.0
        %1325 = vmatprep.subr.mxu0 0.0
        %1326 = vmatpush1.msra.mxu0 0.0
        %1327 = vmatprep.subr.mxu0 0.0
        %1328 = vmatpush1.msra.mxu0 0.0
        %1329 = vmatprep.mubr.f32.mxu0 0.0
        %1330 = vmatmul.mubr.f32.gmra.mrb[0].mxu0 %v1192
        %v1331 = vpop.f32.mrb[0].mxu0
        %v1332 = vadd.f32 0.0, %v1331
        %v1333 = vpop.f32.mrb[0].mxu0
        %v1334 = vadd.f32 0.0, %v1333
        %1335 = vdwg.mxu0
        %v1340 = vcombine.low %v1261, %v1263
        %v1341 = vcombine.low %v1332, %v1334
        %v1343 = vunpack.c.l.s4 1983009808
        %v1344 = vunpack.c.0.s8 %v1343
        %v1345 = vlaneseq
        %v1346 = vshrl.u32 %v1345, 7
        %v1347 = vsub.s32 %v1344, %v1346
        %v1348 = vrot.slane %v1340, %v1347
        %v1350 = vunpack.c.l.s4 1983009808
        %v1351 = vunpack.c.0.s8 %v1350
        %v1352 = vlaneseq
        %v1353 = vshrl.u32 %v1352, 7
        %v1354 = vsub.s32 %v1351, %v1353
        %v1355 = vrot.slane %v1341, %v1354
        %v1356 = vcombine.low %v1348, %v1355
        %v1358 = vadd.f32 %v1193, %v1356
        %v1359 = vxor.u32 %v1358, 2147483648
        %v1360 = vmul.f32 %v1359, 1.442695
        %v1361 = vpow.pop %v1360
        %v1362 = vadd.f32 %v1361, 1.0
        %v1363 = vrcp.pop %v1362
        %v1364 = vmul.f32 1.0, %v1363
        %v1366 = vrot.slane %v1358, 2
        %v1368 = vxor.u32 %v1366, 2147483648
        %v1369 = vmul.f32 %v1368, 1.442695
        %v1370 = vpow.pop %v1369
        %v1371 = vadd.f32 %v1370, 1.0
        %v1372 = vrcp.pop %v1371
        %v1373 = vmul.f32 1.0, %v1372
        %v1374 = vrot.slane %v1358, 4
        %v1376 = vtanh.pop %v1374
        %v1377 = vrot.slane %v1358, 6
        %v1379 = vxor.u32 %v1377, 2147483648
        %v1380 = vmul.f32 %v1379, 1.442695
        %v1381 = vpow.pop %v1380
        %v1382 = vadd.f32 %v1381, 1.0
        %v1383 = vrcp.pop %v1382
        %v1384 = vmul.f32 1.0, %v1383
        %v1385 = vmul.f32 %v1373, %v1190
        %v1386 = vmul.f32 %v1364, %v1376
        %v1387 = vadd.f32 %v1385, %v1386
        %v1388 = vtanh.pop %v1387
        %v1389 = vmul.f32 %v1384, %v1388
        %v1390 = vsel %vm404, %v396, %v393
        %1391 = vmatprep.subr.mxu0 %v328
        %1392 = vmatpush1.msra.mxu0 %v327
        %1393 = vmatprep.subr.mxu0 %v332
        %1394 = vmatpush1.msra.mxu0 %v331
        %1395 = vmatprep.subr.mxu0 %v336
        %1396 = vmatpush1.msra.mxu0 %v335
        %1397 = vmatprep.subr.mxu0 %v340
        %1398 = vmatpush1.msra.mxu0 %v339
        %1399 = vmatprep.subr.mxu0 %v344
        %1400 = vmatpush1.msra.mxu0 %v343
        %1401 = vmatprep.subr.mxu0 %v348
        %1402 = vmatpush1.msra.mxu0 %v347
        %1403 = vmatprep.subr.mxu0 %v352
        %1404 = vmatpush1.msra.mxu0 %v351
        %1405 = vmatprep.subr.mxu0 %v356
        %1406 = vmatpush1.msra.mxu0 %v355
        %1407 = vmatprep.subr.mxu0 %v360
        %1408 = vmatpush1.msra.mxu0 %v359
        %1409 = vmatprep.subr.mxu0 %v364
        %1410 = vmatpush1.msra.mxu0 %v363
        %1411 = vmatprep.subr.mxu0 %v368
        %1412 = vmatpush1.msra.mxu0 %v367
        %1413 = vmatprep.subr.mxu0 %v372
        %1414 = vmatpush1.msra.mxu0 %v371
        %1415 = vmatprep.subr.mxu0 %v376
        %1416 = vmatpush1.msra.mxu0 %v375
        %1417 = vmatprep.subr.mxu0 %v380
        %1418 = vmatpush1.msra.mxu0 %v379
        %1419 = vmatprep.subr.mxu0 %v384
        %1420 = vmatpush1.msra.mxu0 %v383
        %1421 = vmatprep.subr.mxu0 %v388
        %1422 = vmatpush1.msra.mxu0 %v387
        %1423 = vmatprep.subr.mxu0 0.0
        %1424 = vmatpush1.msra.mxu0 0.0
        %1425 = vmatprep.subr.mxu0 0.0
        %1426 = vmatpush1.msra.mxu0 0.0
        %1427 = vmatprep.subr.mxu0 0.0
        %1428 = vmatpush1.msra.mxu0 0.0
        %1429 = vmatprep.subr.mxu0 0.0
        %1430 = vmatpush1.msra.mxu0 0.0
        %1431 = vmatprep.subr.mxu0 0.0
        %1432 = vmatpush1.msra.mxu0 0.0
        %1433 = vmatprep.subr.mxu0 0.0
        %1434 = vmatpush1.msra.mxu0 0.0
        %1435 = vmatprep.subr.mxu0 0.0
        %1436 = vmatpush1.msra.mxu0 0.0
        %1437 = vmatprep.subr.mxu0 0.0
        %1438 = vmatpush1.msra.mxu0 0.0
        %1439 = vmatprep.subr.mxu0 0.0
        %1440 = vmatpush1.msra.mxu0 0.0
        %1441 = vmatprep.subr.mxu0 0.0
        %1442 = vmatpush1.msra.mxu0 0.0
        %1443 = vmatprep.subr.mxu0 0.0
        %1444 = vmatpush1.msra.mxu0 0.0
        %1445 = vmatprep.subr.mxu0 0.0
        %1446 = vmatpush1.msra.mxu0 0.0
        %1447 = vmatprep.subr.mxu0 0.0
        %1448 = vmatpush1.msra.mxu0 0.0
        %1449 = vmatprep.subr.mxu0 0.0
        %1450 = vmatpush1.msra.mxu0 0.0
        %1451 = vmatprep.subr.mxu0 0.0
        %1452 = vmatpush1.msra.mxu0 0.0
        %1453 = vmatprep.subr.mxu0 0.0
        %1454 = vmatpush1.msra.mxu0 0.0
        %1455 = vmatprep.mubr.f32.mxu0 0.0
        %1456 = vmatmul.mubr.f32.gmra.mrb[0].mxu0 %v1389
        %v1457 = vpop.f32.mrb[0].mxu0
        %v1458 = vadd.f32 0.0, %v1457
        %v1459 = vpop.f32.mrb[0].mxu0
        %v1460 = vadd.f32 0.0, %v1459
        %1461 = vdwg.mxu0
        %1462 = vmatprep.subr.mxu0 %v330
        %1463 = vmatpush1.msra.mxu0 %v329
        %1464 = vmatprep.subr.mxu0 %v334
        %1465 = vmatpush1.msra.mxu0 %v333
        %1466 = vmatprep.subr.mxu0 %v338
        %1467 = vmatpush1.msra.mxu0 %v337
        %1468 = vmatprep.subr.mxu0 %v342
        %1469 = vmatpush1.msra.mxu0 %v341
        %1470 = vmatprep.subr.mxu0 %v346
        %1471 = vmatpush1.msra.mxu0 %v345
        %1472 = vmatprep.subr.mxu0 %v350
        %1473 = vmatpush1.msra.mxu0 %v349
        %1474 = vmatprep.subr.mxu0 %v354
        %1475 = vmatpush1.msra.mxu0 %v353
        %1476 = vmatprep.subr.mxu0 %v358
        %1477 = vmatpush1.msra.mxu0 %v357
        %1478 = vmatprep.subr.mxu0 %v362
        %1479 = vmatpush1.msra.mxu0 %v361
        %1480 = vmatprep.subr.mxu0 %v366
        %1481 = vmatpush1.msra.mxu0 %v365
        %1482 = vmatprep.subr.mxu0 %v370
        %1483 = vmatpush1.msra.mxu0 %v369
        %1484 = vmatprep.subr.mxu0 %v374
        %1485 = vmatpush1.msra.mxu0 %v373
        %1486 = vmatprep.subr.mxu0 %v378
        %1487 = vmatpush1.msra.mxu0 %v377
        %1488 = vmatprep.subr.mxu0 %v382
        %1489 = vmatpush1.msra.mxu0 %v381
        %1490 = vmatprep.subr.mxu0 %v386
        %1491 = vmatpush1.msra.mxu0 %v385
        %1492 = vmatprep.subr.mxu0 %v390
        %1493 = vmatpush1.msra.mxu0 %v389
        %1494 = vmatprep.subr.mxu0 0.0
        %1495 = vmatpush1.msra.mxu0 0.0
        %1496 = vmatprep.subr.mxu0 0.0
        %1497 = vmatpush1.msra.mxu0 0.0
        %1498 = vmatprep.subr.mxu0 0.0
        %1499 = vmatpush1.msra.mxu0 0.0
        %1500 = vmatprep.subr.mxu0 0.0
        %1501 = vmatpush1.msra.mxu0 0.0
        %1502 = vmatprep.subr.mxu0 0.0
        %1503 = vmatpush1.msra.mxu0 0.0
        %1504 = vmatprep.subr.mxu0 0.0
        %1505 = vmatpush1.msra.mxu0 0.0
        %1506 = vmatprep.subr.mxu0 0.0
        %1507 = vmatpush1.msra.mxu0 0.0
        %1508 = vmatprep.subr.mxu0 0.0
        %1509 = vmatpush1.msra.mxu0 0.0
        %1510 = vmatprep.subr.mxu0 0.0
        %1511 = vmatpush1.msra.mxu0 0.0
        %1512 = vmatprep.subr.mxu0 0.0
        %1513 = vmatpush1.msra.mxu0 0.0
        %1514 = vmatprep.subr.mxu0 0.0
        %1515 = vmatpush1.msra.mxu0 0.0
        %1516 = vmatprep.subr.mxu0 0.0
        %1517 = vmatpush1.msra.mxu0 0.0
        %1518 = vmatprep.subr.mxu0 0.0
        %1519 = vmatpush1.msra.mxu0 0.0
        %1520 = vmatprep.subr.mxu0 0.0
        %1521 = vmatpush1.msra.mxu0 0.0
        %1522 = vmatprep.subr.mxu0 0.0
        %1523 = vmatpush1.msra.mxu0 0.0
        %1524 = vmatprep.subr.mxu0 0.0
        %1525 = vmatpush1.msra.mxu0 0.0
        %1526 = vmatprep.mubr.f32.mxu0 0.0
        %1527 = vmatmul.mubr.f32.gmra.mrb[0].mxu0 %v1389
        %v1528 = vpop.f32.mrb[0].mxu0
        %v1529 = vadd.f32 0.0, %v1528
        %v1530 = vpop.f32.mrb[0].mxu0
        %v1531 = vadd.f32 0.0, %v1530
        %1532 = vdwg.mxu0
        %v1537 = vcombine.low %v1458, %v1460
        %v1538 = vcombine.low %v1529, %v1531
        %v1540 = vunpack.c.l.s4 1983009808
        %v1541 = vunpack.c.0.s8 %v1540
        %v1542 = vlaneseq
        %v1543 = vshrl.u32 %v1542, 7
        %v1544 = vsub.s32 %v1541, %v1543
        %v1545 = vrot.slane %v1537, %v1544
        %v1547 = vunpack.c.l.s4 1983009808
        %v1548 = vunpack.c.0.s8 %v1547
        %v1549 = vlaneseq
        %v1550 = vshrl.u32 %v1549, 7
        %v1551 = vsub.s32 %v1548, %v1550
        %v1552 = vrot.slane %v1538, %v1551
        %v1553 = vcombine.low %v1545, %v1552
        %v1555 = vadd.f32 %v1390, %v1553
        %v1556 = vxor.u32 %v1555, 2147483648
        %v1557 = vmul.f32 %v1556, 1.442695
        %v1558 = vpow.pop %v1557
        %v1559 = vadd.f32 %v1558, 1.0
        %v1560 = vrcp.pop %v1559
        %v1561 = vmul.f32 1.0, %v1560
        %v1563 = vrot.slane %v1555, 2
        %v1565 = vxor.u32 %v1563, 2147483648
        %v1566 = vmul.f32 %v1565, 1.442695
        %v1567 = vpow.pop %v1566
        %v1568 = vadd.f32 %v1567, 1.0
        %v1569 = vrcp.pop %v1568
        %v1570 = vmul.f32 1.0, %v1569
        %v1571 = vrot.slane %v1555, 4
        %v1573 = vtanh.pop %v1571
        %v1574 = vrot.slane %v1555, 6
        %v1576 = vxor.u32 %v1574, 2147483648
        %v1577 = vmul.f32 %v1576, 1.442695
        %v1578 = vpow.pop %v1577
        %v1579 = vadd.f32 %v1578, 1.0
        %v1580 = vrcp.pop %v1579
        %v1581 = vmul.f32 1.0, %v1580
        %v1582 = vmul.f32 %v1570, %v1387
        %v1583 = vmul.f32 %v1561, %v1573
        %v1584 = vadd.f32 %v1582, %v1583
        %v1585 = vtanh.pop %v1584
        %v1586 = vmul.f32 %v1581, %v1585
        %v1587 = vsel %vm404, %v397, %v392
        %1588 = vmatprep.subr.mxu0 %v328
        %1589 = vmatpush1.msra.mxu0 %v327
        %1590 = vmatprep.subr.mxu0 %v332
        %1591 = vmatpush1.msra.mxu0 %v331
        %1592 = vmatprep.subr.mxu0 %v336
        %1593 = vmatpush1.msra.mxu0 %v335
        %1594 = vmatprep.subr.mxu0 %v340
        %1595 = vmatpush1.msra.mxu0 %v339
        %1596 = vmatprep.subr.mxu0 %v344
        %1597 = vmatpush1.msra.mxu0 %v343
        %1598 = vmatprep.subr.mxu0 %v348
        %1599 = vmatpush1.msra.mxu0 %v347
        %1600 = vmatprep.subr.mxu0 %v352
        %1601 = vmatpush1.msra.mxu0 %v351
        %1602 = vmatprep.subr.mxu0 %v356
        %1603 = vmatpush1.msra.mxu0 %v355
        %1604 = vmatprep.subr.mxu0 %v360
        %1605 = vmatpush1.msra.mxu0 %v359
        %1606 = vmatprep.subr.mxu0 %v364
        %1607 = vmatpush1.msra.mxu0 %v363
        %1608 = vmatprep.subr.mxu0 %v368
        %1609 = vmatpush1.msra.mxu0 %v367
        %1610 = vmatprep.subr.mxu0 %v372
        %1611 = vmatpush1.msra.mxu0 %v371
        %1612 = vmatprep.subr.mxu0 %v376
        %1613 = vmatpush1.msra.mxu0 %v375
        %1614 = vmatprep.subr.mxu0 %v380
        %1615 = vmatpush1.msra.mxu0 %v379
        %1616 = vmatprep.subr.mxu0 %v384
        %1617 = vmatpush1.msra.mxu0 %v383
        %1618 = vmatprep.subr.mxu0 %v388
        %1619 = vmatpush1.msra.mxu0 %v387
        %1620 = vmatprep.subr.mxu0 0.0
        %1621 = vmatpush1.msra.mxu0 0.0
        %1622 = vmatprep.subr.mxu0 0.0
        %1623 = vmatpush1.msra.mxu0 0.0
        %1624 = vmatprep.subr.mxu0 0.0
        %1625 = vmatpush1.msra.mxu0 0.0
        %1626 = vmatprep.subr.mxu0 0.0
        %1627 = vmatpush1.msra.mxu0 0.0
        %1628 = vmatprep.subr.mxu0 0.0
        %1629 = vmatpush1.msra.mxu0 0.0
        %1630 = vmatprep.subr.mxu0 0.0
        %1631 = vmatpush1.msra.mxu0 0.0
        %1632 = vmatprep.subr.mxu0 0.0
        %1633 = vmatpush1.msra.mxu0 0.0
        %1634 = vmatprep.subr.mxu0 0.0
        %1635 = vmatpush1.msra.mxu0 0.0
        %1636 = vmatprep.subr.mxu0 0.0
        %1637 = vmatpush1.msra.mxu0 0.0
        %1638 = vmatprep.subr.mxu0 0.0
        %1639 = vmatpush1.msra.mxu0 0.0
        %1640 = vmatprep.subr.mxu0 0.0
        %1641 = vmatpush1.msra.mxu0 0.0
        %1642 = vmatprep.subr.mxu0 0.0
        %1643 = vmatpush1.msra.mxu0 0.0
        %1644 = vmatprep.subr.mxu0 0.0
        %1645 = vmatpush1.msra.mxu0 0.0
        %1646 = vmatprep.subr.mxu0 0.0
        %1647 = vmatpush1.msra.mxu0 0.0
        %1648 = vmatprep.subr.mxu0 0.0
        %1649 = vmatpush1.msra.mxu0 0.0
        %1650 = vmatprep.subr.mxu0 0.0
        %1651 = vmatpush1.msra.mxu0 0.0
        %1652 = vmatprep.mubr.f32.mxu0 0.0
        %1653 = vmatmul.mubr.f32.gmra.mrb[0].mxu0 %v1586
        %v1654 = vpop.f32.mrb[0].mxu0
        %v1655 = vadd.f32 0.0, %v1654
        %v1656 = vpop.f32.mrb[0].mxu0
        %v1657 = vadd.f32 0.0, %v1656
        %1658 = vdwg.mxu0
        %1659 = vmatprep.subr.mxu0 %v330
        %1660 = vmatpush1.msra.mxu0 %v329
        %1661 = vmatprep.subr.mxu0 %v334
        %1662 = vmatpush1.msra.mxu0 %v333
        %1663 = vmatprep.subr.mxu0 %v338
        %1664 = vmatpush1.msra.mxu0 %v337
        %1665 = vmatprep.subr.mxu0 %v342
        %1666 = vmatpush1.msra.mxu0 %v341
        %1667 = vmatprep.subr.mxu0 %v346
        %1668 = vmatpush1.msra.mxu0 %v345
        %1669 = vmatprep.subr.mxu0 %v350
        %1670 = vmatpush1.msra.mxu0 %v349
        %1671 = vmatprep.subr.mxu0 %v354
        %1672 = vmatpush1.msra.mxu0 %v353
        %1673 = vmatprep.subr.mxu0 %v358
        %1674 = vmatpush1.msra.mxu0 %v357
        %1675 = vmatprep.subr.mxu0 %v362
        %1676 = vmatpush1.msra.mxu0 %v361
        %1677 = vmatprep.subr.mxu0 %v366
        %1678 = vmatpush1.msra.mxu0 %v365
        %1679 = vmatprep.subr.mxu0 %v370
        %1680 = vmatpush1.msra.mxu0 %v369
        %1681 = vmatprep.subr.mxu0 %v374
        %1682 = vmatpush1.msra.mxu0 %v373
        %1683 = vmatprep.subr.mxu0 %v378
        %1684 = vmatpush1.msra.mxu0 %v377
        %1685 = vmatprep.subr.mxu0 %v382
        %1686 = vmatpush1.msra.mxu0 %v381
        %1687 = vmatprep.subr.mxu0 %v386
        %1688 = vmatpush1.msra.mxu0 %v385
        %1689 = vmatprep.subr.mxu0 %v390
        %1690 = vmatpush1.msra.mxu0 %v389
        %1691 = vmatprep.subr.mxu0 0.0
        %1692 = vmatpush1.msra.mxu0 0.0
        %1693 = vmatprep.subr.mxu0 0.0
        %1694 = vmatpush1.msra.mxu0 0.0
        %1695 = vmatprep.subr.mxu0 0.0
        %1696 = vmatpush1.msra.mxu0 0.0
        %1697 = vmatprep.subr.mxu0 0.0
        %1698 = vmatpush1.msra.mxu0 0.0
        %1699 = vmatprep.subr.mxu0 0.0
        %1700 = vmatpush1.msra.mxu0 0.0
        %1701 = vmatprep.subr.mxu0 0.0
        %1702 = vmatpush1.msra.mxu0 0.0
        %1703 = vmatprep.subr.mxu0 0.0
        %1704 = vmatpush1.msra.mxu0 0.0
        %1705 = vmatprep.subr.mxu0 0.0
        %1706 = vmatpush1.msra.mxu0 0.0
        %1707 = vmatprep.subr.mxu0 0.0
        %1708 = vmatpush1.msra.mxu0 0.0
        %1709 = vmatprep.subr.mxu0 0.0
        %1710 = vmatpush1.msra.mxu0 0.0
        %1711 = vmatprep.subr.mxu0 0.0
        %1712 = vmatpush1.msra.mxu0 0.0
        %1713 = vmatprep.subr.mxu0 0.0
        %1714 = vmatpush1.msra.mxu0 0.0
        %1715 = vmatprep.subr.mxu0 0.0
        %1716 = vmatpush1.msra.mxu0 0.0
        %1717 = vmatprep.subr.mxu0 0.0
        %1718 = vmatpush1.msra.mxu0 0.0
        %1719 = vmatprep.subr.mxu0 0.0
        %1720 = vmatpush1.msra.mxu0 0.0
        %1721 = vmatprep.subr.mxu0 0.0
        %1722 = vmatpush1.msra.mxu0 0.0
        %1723 = vmatprep.mubr.f32.mxu0 0.0
        %1724 = vmatmul.mubr.f32.gmra.mrb[0].mxu0 %v1586
        %v1725 = vpop.f32.mrb[0].mxu0
        %v1726 = vadd.f32 0.0, %v1725
        %v1727 = vpop.f32.mrb[0].mxu0
        %v1728 = vadd.f32 0.0, %v1727
        %1729 = vdwg.mxu0
        %v1734 = vcombine.low %v1655, %v1657
        %v1735 = vcombine.low %v1726, %v1728
        %v1737 = vunpack.c.l.s4 1983009808
        %v1738 = vunpack.c.0.s8 %v1737
        %v1739 = vlaneseq
        %v1740 = vshrl.u32 %v1739, 7
        %v1741 = vsub.s32 %v1738, %v1740
        %v1742 = vrot.slane %v1734, %v1741
        %v1744 = vunpack.c.l.s4 1983009808
        %v1745 = vunpack.c.0.s8 %v1744
        %v1746 = vlaneseq
        %v1747 = vshrl.u32 %v1746, 7
        %v1748 = vsub.s32 %v1745, %v1747
        %v1749 = vrot.slane %v1735, %v1748
        %v1750 = vcombine.low %v1742, %v1749
        %v1752 = vadd.f32 %v1587, %v1750
        %v1753 = vxor.u32 %v1752, 2147483648
        %v1754 = vmul.f32 %v1753, 1.442695
        %v1755 = vpow.pop %v1754
        %v1756 = vadd.f32 %v1755, 1.0
        %v1757 = vrcp.pop %v1756
        %v1758 = vmul.f32 1.0, %v1757
        %v1760 = vrot.slane %v1752, 2
        %v1762 = vxor.u32 %v1760, 2147483648
        %v1763 = vmul.f32 %v1762, 1.442695
        %v1764 = vpow.pop %v1763
        %v1765 = vadd.f32 %v1764, 1.0
        %v1766 = vrcp.pop %v1765
        %v1767 = vmul.f32 1.0, %v1766
        %v1768 = vrot.slane %v1752, 4
        %v1770 = vtanh.pop %v1768
        %v1771 = vrot.slane %v1752, 6
        %v1773 = vxor.u32 %v1771, 2147483648
        %v1774 = vmul.f32 %v1773, 1.442695
        %v1775 = vpow.pop %v1774
        %v1776 = vadd.f32 %v1775, 1.0
        %v1777 = vrcp.pop %v1776
        %v1778 = vmul.f32 1.0, %v1777
        %v1779 = vmul.f32 %v1767, %v1584
        %v1780 = vmul.f32 %v1758, %v1770
        %v1781 = vadd.f32 %v1779, %v1780
        %v1782 = vtanh.pop %v1781
        %v1783 = vmul.f32 %v1778, %v1782
        %v1784 = vsel %vm404, %v398, %v391
        %1785 = vmatprep.subr.mxu0 %v328
        %1786 = vmatpush1.msra.mxu0 %v327
        %1787 = vmatprep.subr.mxu0 %v332
        %1788 = vmatpush1.msra.mxu0 %v331
        %1789 = vmatprep.subr.mxu0 %v336
        %1790 = vmatpush1.msra.mxu0 %v335
        %1791 = vmatprep.subr.mxu0 %v340
        %1792 = vmatpush1.msra.mxu0 %v339
        %1793 = vmatprep.subr.mxu0 %v344
        %1794 = vmatpush1.msra.mxu0 %v343
        %1795 = vmatprep.subr.mxu0 %v348
        %1796 = vmatpush1.msra.mxu0 %v347
        %1797 = vmatprep.subr.mxu0 %v352
        %1798 = vmatpush1.msra.mxu0 %v351
        %1799 = vmatprep.subr.mxu0 %v356
        %1800 = vmatpush1.msra.mxu0 %v355
        %1801 = vmatprep.subr.mxu0 %v360
        %1802 = vmatpush1.msra.mxu0 %v359
        %1803 = vmatprep.subr.mxu0 %v364
        %1804 = vmatpush1.msra.mxu0 %v363
        %1805 = vmatprep.subr.mxu0 %v368
        %1806 = vmatpush1.msra.mxu0 %v367
        %1807 = vmatprep.subr.mxu0 %v372
        %1808 = vmatpush1.msra.mxu0 %v371
        %1809 = vmatprep.subr.mxu0 %v376
        %1810 = vmatpush1.msra.mxu0 %v375
        %1811 = vmatprep.subr.mxu0 %v380
        %1812 = vmatpush1.msra.mxu0 %v379
        %1813 = vmatprep.subr.mxu0 %v384
        %1814 = vmatpush1.msra.mxu0 %v383
        %1815 = vmatprep.subr.mxu0 %v388
        %1816 = vmatpush1.msra.mxu0 %v387
        %1817 = vmatprep.subr.mxu0 0.0
        %1818 = vmatpush1.msra.mxu0 0.0
        %1819 = vmatprep.subr.mxu0 0.0
        %1820 = vmatpush1.msra.mxu0 0.0
        %1821 = vmatprep.subr.mxu0 0.0
        %1822 = vmatpush1.msra.mxu0 0.0
        %1823 = vmatprep.subr.mxu0 0.0
        %1824 = vmatpush1.msra.mxu0 0.0
        %1825 = vmatprep.subr.mxu0 0.0
        %1826 = vmatpush1.msra.mxu0 0.0
        %1827 = vmatprep.subr.mxu0 0.0
        %1828 = vmatpush1.msra.mxu0 0.0
        %1829 = vmatprep.subr.mxu0 0.0
        %1830 = vmatpush1.msra.mxu0 0.0
        %1831 = vmatprep.subr.mxu0 0.0
        %1832 = vmatpush1.msra.mxu0 0.0
        %1833 = vmatprep.subr.mxu0 0.0
        %1834 = vmatpush1.msra.mxu0 0.0
        %1835 = vmatprep.subr.mxu0 0.0
        %1836 = vmatpush1.msra.mxu0 0.0
        %1837 = vmatprep.subr.mxu0 0.0
        %1838 = vmatpush1.msra.mxu0 0.0
        %1839 = vmatprep.subr.mxu0 0.0
        %1840 = vmatpush1.msra.mxu0 0.0
        %1841 = vmatprep.subr.mxu0 0.0
        %1842 = vmatpush1.msra.mxu0 0.0
        %1843 = vmatprep.subr.mxu0 0.0
        %1844 = vmatpush1.msra.mxu0 0.0
        %1845 = vmatprep.subr.mxu0 0.0
        %1846 = vmatpush1.msra.mxu0 0.0
        %1847 = vmatprep.subr.mxu0 0.0
        %1848 = vmatpush1.msra.mxu0 0.0
        %1849 = vmatprep.mubr.f32.mxu0 0.0
        %1850 = vmatmul.mubr.f32.gmra.mrb[0].mxu0 %v1783
        %v1851 = vpop.f32.mrb[0].mxu0
        %v1852 = vadd.f32 0.0, %v1851
        %v1853 = vpop.f32.mrb[0].mxu0
        %v1854 = vadd.f32 0.0, %v1853
        %1855 = vdwg.mxu0
        %1856 = vmatprep.subr.mxu0 %v330
        %1857 = vmatpush1.msra.mxu0 %v329
        %1858 = vmatprep.subr.mxu0 %v334
        %1859 = vmatpush1.msra.mxu0 %v333
        %1860 = vmatprep.subr.mxu0 %v338
        %1861 = vmatpush1.msra.mxu0 %v337
        %1862 = vmatprep.subr.mxu0 %v342
        %1863 = vmatpush1.msra.mxu0 %v341
        %1864 = vmatprep.subr.mxu0 %v346
        %1865 = vmatpush1.msra.mxu0 %v345
        %1866 = vmatprep.subr.mxu0 %v350
        %1867 = vmatpush1.msra.mxu0 %v349
        %1868 = vmatprep.subr.mxu0 %v354
        %1869 = vmatpush1.msra.mxu0 %v353
        %1870 = vmatprep.subr.mxu0 %v358
        %1871 = vmatpush1.msra.mxu0 %v357
        %1872 = vmatprep.subr.mxu0 %v362
        %1873 = vmatpush1.msra.mxu0 %v361
        %1874 = vmatprep.subr.mxu0 %v366
        %1875 = vmatpush1.msra.mxu0 %v365
        %1876 = vmatprep.subr.mxu0 %v370
        %1877 = vmatpush1.msra.mxu0 %v369
        %1878 = vmatprep.subr.mxu0 %v374
        %1879 = vmatpush1.msra.mxu0 %v373
        %1880 = vmatprep.subr.mxu0 %v378
        %1881 = vmatpush1.msra.mxu0 %v377
        %1882 = vmatprep.subr.mxu0 %v382
        %1883 = vmatpush1.msra.mxu0 %v381
        %1884 = vmatprep.subr.mxu0 %v386
        %1885 = vmatpush1.msra.mxu0 %v385
        %1886 = vmatprep.subr.mxu0 %v390
        %1887 = vmatpush1.msra.mxu0 %v389
        %1888 = vmatprep.subr.mxu0 0.0
        %1889 = vmatpush1.msra.mxu0 0.0
        %1890 = vmatprep.subr.mxu0 0.0
        %1891 = vmatpush1.msra.mxu0 0.0
        %1892 = vmatprep.subr.mxu0 0.0
        %1893 = vmatpush1.msra.mxu0 0.0
        %1894 = vmatprep.subr.mxu0 0.0
        %1895 = vmatpush1.msra.mxu0 0.0
        %1896 = vmatprep.subr.mxu0 0.0
        %1897 = vmatpush1.msra.mxu0 0.0
        %1898 = vmatprep.subr.mxu0 0.0
        %1899 = vmatpush1.msra.mxu0 0.0
        %1900 = vmatprep.subr.mxu0 0.0
        %1901 = vmatpush1.msra.mxu0 0.0
        %1902 = vmatprep.subr.mxu0 0.0
        %1903 = vmatpush1.msra.mxu0 0.0
        %1904 = vmatprep.subr.mxu0 0.0
        %1905 = vmatpush1.msra.mxu0 0.0
        %1906 = vmatprep.subr.mxu0 0.0
        %1907 = vmatpush1.msra.mxu0 0.0
        %1908 = vmatprep.subr.mxu0 0.0
        %1909 = vmatpush1.msra.mxu0 0.0
        %1910 = vmatprep.subr.mxu0 0.0
        %1911 = vmatpush1.msra.mxu0 0.0
        %1912 = vmatprep.subr.mxu0 0.0
        %1913 = vmatpush1.msra.mxu0 0.0
        %1914 = vmatprep.subr.mxu0 0.0
        %1915 = vmatpush1.msra.mxu0 0.0
        %1916 = vmatprep.subr.mxu0 0.0
        %1917 = vmatpush1.msra.mxu0 0.0
        %1918 = vmatprep.subr.mxu0 0.0
        %1919 = vmatpush1.msra.mxu0 0.0
        %1920 = vmatprep.mubr.f32.mxu0 0.0
        %1921 = vmatmul.mubr.f32.gmra.mrb[0].mxu0 %v1783
        %v1922 = vpop.f32.mrb[0].mxu0
        %v1923 = vadd.f32 0.0, %v1922
        %v1924 = vpop.f32.mrb[0].mxu0
        %v1925 = vadd.f32 0.0, %v1924
        %1926 = vdwg.mxu0
        %v1931 = vcombine.low %v1852, %v1854
        %v1932 = vcombine.low %v1923, %v1925
        %v1934 = vunpack.c.l.s4 1983009808
        %v1935 = vunpack.c.0.s8 %v1934
        %v1936 = vlaneseq
        %v1937 = vshrl.u32 %v1936, 7
        %v1938 = vsub.s32 %v1935, %v1937
        %v1939 = vrot.slane %v1931, %v1938
        %v1941 = vunpack.c.l.s4 1983009808
        %v1942 = vunpack.c.0.s8 %v1941
        %v1943 = vlaneseq
        %v1944 = vshrl.u32 %v1943, 7
        %v1945 = vsub.s32 %v1942, %v1944
        %v1946 = vrot.slane %v1932, %v1945
        %v1947 = vcombine.low %v1939, %v1946
        %v1949 = vadd.f32 %v1784, %v1947
        %v1950 = vxor.u32 %v1949, 2147483648
        %v1951 = vmul.f32 %v1950, 1.442695
        %v1952 = vpow.pop %v1951
        %v1953 = vadd.f32 %v1952, 1.0
        %v1954 = vrcp.pop %v1953
        %v1955 = vmul.f32 1.0, %v1954
        %v1957 = vrot.slane %v1949, 2
        %v1959 = vxor.u32 %v1957, 2147483648
        %v1960 = vmul.f32 %v1959, 1.442695
        %v1961 = vpow.pop %v1960
        %v1962 = vadd.f32 %v1961, 1.0
        %v1963 = vrcp.pop %v1962
        %v1964 = vmul.f32 1.0, %v1963
        %v1965 = vrot.slane %v1949, 4
        %v1967 = vtanh.pop %v1965
        %v1968 = vrot.slane %v1949, 6
        %v1970 = vxor.u32 %v1968, 2147483648
        %v1971 = vmul.f32 %v1970, 1.442695
        %v1972 = vpow.pop %v1971
        %v1973 = vadd.f32 %v1972, 1.0
        %v1974 = vrcp.pop %v1973
        %v1975 = vmul.f32 1.0, %v1974
        %v1976 = vmul.f32 %v1964, %v1781
        %v1977 = vmul.f32 %v1955, %v1967
        %v1978 = vadd.f32 %v1976, %v1977
        %v1979 = vtanh.pop %v1978
        %v1980 = vmul.f32 %v1975, %v1979
        %1981 = vst [vmem:[#allocation2] sm:$0x3] %v1980
        %1982 = vst [vmem:[#allocation3] sm:$0x3] %v1978
        %v1983 = vsel %vm404, %v601, %v1980
        %1984 = vst [vmem:[%s268] sm:$0x3] %v1983
        %v1985 = vsel %vm404, %v798, %v1783
        %s1986 = scalar_lea.vmem %s268, 2 [#allocation4]
        %1987 = vst [vmem:[%s1986] sm:$0x3] %v1985
        %v1988 = vsel %vm404, %v995, %v1586
        %s1989 = scalar_lea.vmem %s268, 4 [#allocation4]
        %1990 = vst [vmem:[%s1989] sm:$0x3] %v1988
        %v1991 = vsel %vm404, %v1192, %v1389
        %s1992 = scalar_lea.vmem %s268, 6 [#allocation4]
        %1993 = vst [vmem:[%s1992] sm:$0x3] %v1991
        %v1994 = vsel %vm404, %v1389, %v1192
        %s1995 = scalar_lea.vmem %s268, 8 [#allocation4]
        %1996 = vst [vmem:[%s1995] sm:$0x3] %v1994
        %v1997 = vsel %vm404, %v1586, %v995
        %s1998 = scalar_lea.vmem %s268, 10 [#allocation4]
        %1999 = vst [vmem:[%s1998] sm:$0x3] %v1997
        %v2000 = vsel %vm404, %v1783, %v798
        %s2001 = scalar_lea.vmem %s268, 12 [#allocation4]
        %2002 = vst [vmem:[%s2001] sm:$0x3] %v2000
        %v2003 = vsel %vm404, %v1980, %v601
        %s2004 = scalar_lea.vmem %s268, 14 [#allocation4]
        %2005 = vst [vmem:[%s2004] sm:$0x3] %v2003
        // Predicated region
        $region33: #{encoder_forward.4} parent=27 // pred_check
          %p2006 = pneg %p321
        $region34: #{encoder_forward.4} parent=27 // pred_check_branch
          %2008 = sbr.rel (%p2006) target = $region36
        $region35: #{encoder_forward.4} parent=27 // pred_region
          %2009 = vst [vmem:[%s316] sm:$0x3] %v1980
          %2010 = vst [vmem:[%s320] sm:$0x3] %v1978
        $region36: #{encoder_forward.4} parent=27 // pred_fallthru
          _
        %s2011 = sand.u32 %s115, 1
        %s2012 = scalar_lea.sflag [#allocation5], %s2011
        %s2013 = sand.u32 %s115, 1
        %s2014 = smul.addr %s2013, 16
        %s2015 = scalar_lea.vmem [#allocation4], %s2014
        %p2016 = scmp.lt.s32.totalorder %s23, 1
        %s2017 = scalar_select %p2016, %s23, 1
        %s2018 = smul.addr %s2017, 2
        %s2019 = scalar_lea.vmem %s3, %s2018
        %p2020 = scmp.lt.s32.totalorder %s23, 1
        %s2021 = scalar_select %p2020, %s23, 1
        %s2022 = smul.addr %s2021, 2
        %s2023 = scalar_lea.vmem %s4, %s2022
        // Predicated region
        $region37: #{encoder_forward.4} parent=27 // pred_check
          %p2024 = pneg %p125
        $region38: #{encoder_forward.4} parent=27 // pred_check_branch
          %2026 = sbr.rel (%p2024) target = $region40
        $region39: #{encoder_forward.4} parent=27 // pred_region
          %s2027 = ssub.s32 1, %s23
          %s2028 = smul.u32 %s2027, %s24
          %s2029 = ssub.s32 0, %s24
          %s2030 = smul.u32 %s23, %s2029
          %s2031 = sadd.s32 %s2028, %s2030
          %s2032 = smul.u32 8, %s2031
          %s2034 = ssub.s32 256, 256
          %2035 = vsyncadd %s2012, %s2034
          %s2036 = smul.addr %s2032, 2
          %s2037 = sadd.s32 %s23, %s2036
          %s2038 = smul.addr %s2037, 32
          %s2039 = scalar_lea.hbm %s2, %s2038
          %s2040 = sshll.u32 %s2015, 4
          %s2041 = int_to_ptr.vmem [resolvable:$true] %s2040
          %2046 = dma.vmem_to_hbm [thread:$0]  %s2041, 256, %s2039, %s2012, 32, 64, 2
        $region40: #{encoder_forward.4} parent=27 // pred_fallthru
          _
        // Predicated region
        $region41: #{encoder_forward.4} parent=27 // pred_check
          %p2047 = pneg %p151
        $region42: #{encoder_forward.4} parent=27 // pred_check_branch
          %2049 = sbr.rel (%p2047) target = $region44
        $region43: #{encoder_forward.4} parent=27 // pred_region
          _
        $region44: #{encoder_forward.4} parent=27 // pred_fallthru
          _
        // Predicated region
        $region45: #{encoder_forward.4} parent=27 // pred_check
          %p2050 = pneg %p177
        $region46: #{encoder_forward.4} parent=27 // pred_check_branch
          %2052 = sbr.rel (%p2050) target = $region48
        $region47: #{encoder_forward.4} parent=27 // pred_region
          _
        $region48: #{encoder_forward.4} parent=27 // pred_fallthru
          _
      $region28: #{encoder_forward.4} parent=5 // pred_fallthru
        _
      %p2053 = scmp.le.s32.totalorder 2, %s14
      // Predicated region
      $region49: #{encoder_forward.4} parent=5 // pred_check
        %p2054 = pneg %p2053
      $region50: #{encoder_forward.4} parent=5 // pred_check_branch
        %2056 = sbr.rel (%p2054) target = $region52
      $region51: #{encoder_forward.4} parent=5 // pred_region
        %s2057 = ssub.s32 %s14, 2
        // Predicated region
        $region53: #{encoder_forward.4} parent=51 // pred_check
          %p2058 = pneg %p131
        $region54: #{encoder_forward.4} parent=51 // pred_check_branch
          %2060 = sbr.rel (%p2058) target = $region56
        $region55: #{encoder_forward.4} parent=51 // pred_region
          %s2061 = sand.u32 %s116, 1
          %s2062 = scalar_lea.sflag [#allocation5], %s2061
          %s2063 = sand.u32 %s116, 1
          %s2064 = smul.addr %s2063, 16
          %s2065 = scalar_lea.vmem [#allocation4], %s2064
          %2066 = dma.done %s2062, 256
        $region56: #{encoder_forward.4} parent=51 // pred_fallthru
          _
        // Predicated region
        $region57: #{encoder_forward.4} parent=51 // pred_check
          %p2067 = pneg %p157
        $region58: #{encoder_forward.4} parent=51 // pred_check_branch
          %2069 = sbr.rel (%p2067) target = $region60
        $region59: #{encoder_forward.4} parent=51 // pred_region
          %p2070 = scmp.lt.s32.totalorder %s25, 1
          %s2071 = scalar_select %p2070, %s25, 1
          %s2072 = smul.addr %s2071, 2
          %s2073 = scalar_lea.vmem %s3, %s2072
        $region60: #{encoder_forward.4} parent=51 // pred_fallthru
          _
        // Predicated region
        $region61: #{encoder_forward.4} parent=51 // pred_check
          %p2074 = pneg %p183
        $region62: #{encoder_forward.4} parent=51 // pred_check_branch
          %2076 = sbr.rel (%p2074) target = $region64
        $region63: #{encoder_forward.4} parent=51 // pred_region
          %p2077 = scmp.lt.s32.totalorder %s25, 1
          %s2078 = scalar_select %p2077, %s25, 1
          %s2079 = smul.addr %s2078, 2
          %s2080 = scalar_lea.vmem %s4, %s2079
        $region64: #{encoder_forward.4} parent=51 // pred_fallthru
          _
      $region52: #{encoder_forward.4} parent=5 // pred_fallthru
        _
    $region6: #{encoder_forward.4} parent=1 // loop_footer
      %s18 = sadd.s32 1, %s14
    $region7: #{encoder_forward.4} parent=1 // loop_footer_branch
      %13 = sbr.rel target = $region3
    $region8: #{encoder_forward.4} parent=1 // loop_exit
      _
    %2081 = vsyncpa [#allocation5], 1
    %s2082 = scalar_lea.sflag [#allocation5], 1
    %2083 = vsyncpa %s2082, 1

</llo_original>
